<compile_context>
chip_gen: v7x
topology: tpu7x:2x2x1
jax: 0.10.0
libtpu: 0.0.40
codegen_flags: <defaults>
</compile_context>

<pallas_src>
import jax
import jax.numpy as jnp
from jax.experimental import pallas as pl
from jax.experimental.pallas import tpu as pltpu


# ----------------------------------------------------------------------------
# Pallas kernel: fused conv1 -> ReLU -> conv2 -> ReLU -> conv3 -> max_k -> +x
# ----------------------------------------------------------------------------
def resconv_kernel(delta_ref, x_ref, w1c_ref, w1d_ref, b1_ref,
                   w2_ref, b2_ref, w3_ref, b3_ref, out_ref,
                   h1_ref, h2_ref):
    # delta_ref: (1, K, C, tn)  bf16, precomputed (neighbor - central) per point
    # x_ref    : (1, C, tn)     f32 original points (lane-dense)
    # w1c/w1d  : (CE, C) bf16   conv1 weight split into central / delta halves
    # w2       : (CE, CE) bf16 ; w3: (C, CE) bf16
    # b1, b2   : (CE, 1) f32   ; b3: (C, 1) f32
    # out_ref  : (1, C, tn)     f32 tile of the (B, C, N) output
    # h1_ref, h2_ref: (CE, K*tn) bf16 VMEM staging slabs
    K = delta_ref.shape[1]
    tn = delta_ref.shape[3]

    x_c = x_ref[0]                                            # (C, tn) f32
    # conv1 "central point" half + bias: computed once, shared by all K edges.
    pre1 = jnp.dot(w1c_ref[...], x_c.astype(w1c_ref.dtype),
                   preferred_element_type=jnp.float32) + b1_ref[...]   # (CE, tn)

    # --- conv1: K dots with the SAME weight, back-to-back, staged to VMEM ------
    for i in range(K):                    # static unroll; each h dies at its store
        h = jnp.dot(w1d_ref[...], delta_ref[0, i],
                    preferred_element_type=jnp.float32) + pre1         # (CE, tn)
        h1_ref[:, i * tn:(i + 1) * tn] = jnp.maximum(h, 0.0).astype(h1_ref.dtype)

    # --- conv2: ONE (CE,CE) @ (CE, K*tn) matmul --------------------------------
    h2 = jnp.dot(w2_ref[...], h1_ref[...],
                 preferred_element_type=jnp.float32) + b2_ref[...]     # (CE, K*tn)
    h2_ref[...] = jnp.maximum(h2, 0.0).astype(h2_ref.dtype)

    # --- conv3: ONE (C,CE) @ (CE, K*tn) matmul ---------------------------------
    h3 = jnp.dot(w3_ref[...], h2_ref[...],
                 preferred_element_type=jnp.float32) + b3_ref[...]     # (C, K*tn)

    # --- running elementwise max over the K column slabs (pure VPU) ------------
    res = h3[:, 0:tn]
    for i in range(1, K):
        res = jnp.maximum(res, h3[:, i * tn:(i + 1) * tn])

    out_ref[0] = (res + x_c).astype(out_ref.dtype)        # residual, lane-dense store


# ----------------------------------------------------------------------------
# VMEM-derived tiling
# ----------------------------------------------------------------------------
def _vmem_capacity_bytes():
    try:
        return int(pltpu.get_tpu_info().vmem_capacity_bytes)
    except Exception:
        return 64 * 1024 * 1024          # conservative fallback (v7x per-TC VMEM)


def _tile_vmem_bytes(K, C, CE, tn):
    bf16, f32 = 2, 4
    stream = 2 * (K * C * tn * bf16 + 2 * C * tn * f32)       # delta/x/out, double-buffered
    weights = 2 * ((2 * CE * C + CE * CE + C * CE) * bf16 + (2 * CE + C) * f32)
    scratch = 2 * CE * K * tn * bf16                          # h1 + h2 staging (bf16)
    transient = (CE + C) * K * tn * f32 + 2 * CE * tn * f32   # big f32 dot results + pre1
    return stream + weights + scratch + transient


def _vmem_limit_bytes(K, C, CE, tn):
    cap = _vmem_capacity_bytes()
    need = _tile_vmem_bytes(K, C, CE, tn) + (4 << 20)         # headroom for Mosaic internals
    return int(min(max(need, 32 << 20), int(cap * 0.9)))


def _choose_tn(N, K, C, CE, *, min_point_tiles=4):
    """Largest power-of-two multiple of 128 dividing N whose per-tile working set
    fits the chip's VMEM budget, while keeping >= min_point_tiles grid tiles along
    the point axis (so both v7x TensorCores stay busy)."""
    budget = int(_vmem_capacity_bytes() * 0.45)
    best, t = None, 128
    while t <= N:
        if N % t == 0:
            enough_tiles = (N // t) >= min(min_point_tiles, max(N // 128, 1))
            if enough_tiles and _tile_vmem_bytes(K, C, CE, t) <= budget:
                best = t
        t *= 2
    if best is None:
        # TODO(synk): no lane-aligned power-of-two tile divides N; fall back to a
        # single full-extent tile (legal, but lane-sparse if N % 128 != 0).
        best = N
    return best


# ----------------------------------------------------------------------------
# pallas_call wrapper
# ----------------------------------------------------------------------------
def resconv_pallas(delta, x, w1c, w1d, b1, w2, b2, w3, b3, *, tn,
                   vmem_limit_bytes=None):
    # delta: (B, K, C, N) bf16 precomputed (neighbor - central); x: (B, C, N) f32
    B, K, C, N = delta.shape
    CE = w1c.shape[0]
    assert N % tn == 0, f"N={N} must be divisible by the point tile tn={tn}"
    grid = (B, N // tn)
    if vmem_limit_bytes is None:
        vmem_limit_bytes = _vmem_limit_bytes(K, C, CE, tn)

    return pl.pallas_call(
        resconv_kernel,
        out_shape=jax.ShapeDtypeStruct((B, C, N), x.dtype),
        grid=grid,
        in_specs=[
            # TODO(synk): on v5e, if this stream becomes DMA-exposed after the
            # layer-major restructure, add pipeline_mode=pl.Buffered(3) here.
            pl.BlockSpec((1, K, C, tn), lambda b, i: (b, 0, 0, i)),   # delta
            pl.BlockSpec((1, C, tn),    lambda b, i: (b, 0, i)),      # points
            pl.BlockSpec((CE, C),  lambda b, i: (0, 0)),              # w1 central
            pl.BlockSpec((CE, C),  lambda b, i: (0, 0)),              # w1 delta
            pl.BlockSpec((CE, 1),  lambda b, i: (0, 0)),              # b1
            pl.BlockSpec((CE, CE), lambda b, i: (0, 0)),              # w2
            pl.BlockSpec((CE, 1),  lambda b, i: (0, 0)),              # b2
            pl.BlockSpec((C, CE),  lambda b, i: (0, 0)),              # w3
            pl.BlockSpec((C, 1),   lambda b, i: (0, 0)),              # b3
        ],
        out_specs=pl.BlockSpec((1, C, tn), lambda b, i: (b, 0, i)),
        scratch_shapes=[
            pltpu.VMEM((CE, K * tn), jnp.bfloat16),                   # conv1 staging
            pltpu.VMEM((CE, K * tn), jnp.bfloat16),                   # conv2 staging
        ],
        compiler_params=pltpu.CompilerParams(
            dimension_semantics=("parallel", "parallel"),
            vmem_limit_bytes=vmem_limit_bytes),
    )(delta, x, w1c, w1d, b1, w2, b2, w3, b3)


# ----------------------------------------------------------------------------
# Plain-JAX glue: KNN + neighbor gather + delta (get_edge_featureori, fused)
# ----------------------------------------------------------------------------
def knn_indices(p, k):
    # p: (B, N, C) -> indices of k nearest neighbors (self excluded), (B, N, k)
    # TODO(synk): CUDA-KNN top-(k+1) selection has no clean Pallas equivalent;
    # implemented with lax.top_k on the pairwise-distance matrix in XLA.
    sq = jnp.sum(p * p, axis=-1)
    d2 = sq[:, :, None] + sq[:, None, :] - 2.0 * jnp.einsum('bnc,bmc->bnm', p, p)
    _, idx = jax.lax.top_k(-d2, k + 1)          # nearest first (self at index 0)
    return idx[:, :, 1:]


def gather_delta(x, idx_knn, compute_dtype):
    # x: (B, C, N) f32, idx_knn: (B, N, k) -> (B, k, C, N) bf16 of (neighbor - central).
    # Subtract in f32 (avoids bf16 cancellation for near-coincident points), then
    # cast + permute so XLA can fuse them into the gather writeback.
    # TODO(synk): moving this gather in-kernel (scalar-prefetched idx + DMA gather)
    # would avoid materializing this K-times-x tensor in HBM entirely.
    nbr = jax.vmap(lambda xb, ib: xb[:, ib])(x, idx_knn)        # (B, C, N, k) f32
    delta = nbr - x[..., None]                                  # f32 subtract
    return jnp.transpose(delta, (0, 3, 1, 2)).astype(compute_dtype)   # (B, k, C, N)


def prepare_inputs(x, params, *, k, compute_dtype=jnp.bfloat16):
    # Builds exactly the argument tuple consumed by resconv_pallas / the kernel.
    w1, b1, w2, b2, w3, b3 = params
    B, C, N = x.shape
    p = jnp.transpose(x, (0, 2, 1))                             # (B, N, C)
    idx_knn = knn_indices(p, k)
    delta = gather_delta(x, idx_knn, compute_dtype)             # (B, k, C, N) bf16
    f32 = jnp.float32
    return (delta, x,
            w1[:, :C].astype(compute_dtype),                    # central half of conv1
            w1[:, C:].astype(compute_dtype),                    # delta half of conv1
            b1.reshape(-1, 1).astype(f32),
            w2.astype(compute_dtype), b2.reshape(-1, 1).astype(f32),
            w3.astype(compute_dtype), b3.reshape(-1, 1).astype(f32))


def resconv_forward(x, params, *, k, tn=None, compute_dtype=jnp.bfloat16):
    # x: (B, C, N) point cloud (PyTorch NCP layout); returns (B, C, N).
    B, C, N = x.shape
    CE = params[0].shape[0]
    args = prepare_inputs(x, params, k=k, compute_dtype=compute_dtype)
    if tn is None:
        tn = _choose_tn(N, k, C, CE)
    return resconv_pallas(*args, tn=tn)


# ----------------------------------------------------------------------------
# References
# ----------------------------------------------------------------------------
def resconv_reference(x, params, *, k):
    # Faithful f32 replica of the PyTorch module (conv weights are (out, in)).
    w1, b1, w2, b2, w3, b3 = params
    p = jnp.transpose(x, (0, 2, 1))                             # (B, N, C)
    idx_knn = knn_indices(p, k)
    nbr = jax.vmap(lambda pb, ib: pb[ib])(p, idx_knn)           # (B, N, k, C)
    central = jnp.broadcast_to(p[:, :, None, :], nbr.shape)
    edge = jnp.concatenate([central, nbr - central], axis=-1)   # (B, N, k, 2C)
    h = jnp.maximum(jnp.einsum('bnki,ei->bnke', edge, w1) + b1, 0.0)
    h = jnp.maximum(jnp.einsum('bnke,fe->bnkf', h, w2) + b2, 0.0)
    h = jnp.einsum('bnkf,cf->bnkc', h, w3) + b3
    res = jnp.max(h, axis=2)                                    # (B, N, C)
    return jnp.transpose(res + p, (0, 2, 1))                    # (B, C, N)


def matched_reference(delta, x, w1c, w1d, b1, w2, b2, w3, b3):
    # Pure-JAX replica of the kernel's exact numerics (bf16 MXU inputs, f32 math,
    # bf16 staging between layers).
    f32 = jnp.float32
    xd = x.astype(w1c.dtype)                                    # (B, C, N)
    pre1 = jnp.einsum('ec,bcn->ben', w1c, xd, preferred_element_type=f32) + b1[None]
    h = jnp.einsum('ec,bkcn->bken', w1d, delta,
                   preferred_element_type=f32) + pre1[:, None]
    h = jnp.maximum(h, 0.0).astype(w2.dtype)
    h = jnp.einsum('fe,bken->bkfn', w2, h, preferred_element_type=f32) + b2[None, None]
    h = jnp.maximum(h, 0.0).astype(w3.dtype)
    h = jnp.einsum('cf,bkfn->bkcn', w3, h, preferred_element_type=f32) + b3[None, None]
    res = jnp.max(h, axis=1)                                    # (B, C, N)
    return res + x


# ----------------------------------------------------------------------------
def init_params(key, in_channels, expansionrate=2):
    # Matches resconvori(in_channels=C): conv1 (2C -> 2C*r), conv2, conv3 (-> C).
    c2 = 2 * in_channels
    ce = c2 * expansionrate
    co = c2 // 2
    ks = jax.random.split(key, 6)
    s = 0.1
    w1 = s * jax.random.normal(ks[0], (ce, c2), jnp.float32)    # (out, in)
    b1 = s * jax.random.normal(ks[1], (ce,), jnp.float32)
    w2 = s * jax.random.normal(ks[2], (ce, ce), jnp.float32)
    b2 = s * jax.random.normal(ks[3], (ce,), jnp.float32)
    w3 = s * jax.random.normal(ks[4], (co, ce), jnp.float32)
    b3 = s * jax.random.normal(ks[5], (co,), jnp.float32)
    return (w1, b1, w2, b2, w3, b3)


if __name__ == "__main__":
    B, C, N, K = 2, 16, 1024, 8          # small but structure-faithful shapes
    key = jax.random.PRNGKey(0)
    kx, kp = jax.random.split(key)
    x = jax.random.normal(kx, (B, C, N), jnp.float32)           # point cloud (B, C, N)
    params = init_params(kp, C)
    CE = params[0].shape[0]

    args = prepare_inputs(x, params, k=K)
    tn = _choose_tn(N, K, C, CE)         # VMEM-derived; -> 256 here, grid (2, 4)
    out = jax.block_until_ready(resconv_pallas(*args, tn=tn))
    assert out.shape == (B, C, N)

    # 1) tight check vs a pure-JAX replica of the kernel's own (bf16) numerics
    ref_m = matched_reference(*args)
    assert jnp.allclose(out, ref_m, rtol=2e-3, atol=2e-3), "mismatch vs matched reference"

    # 2) loose check vs full-f32 module semantics (only MXU inputs are bf16)
    ref_f = resconv_reference(x, params, k=K)
    assert jnp.allclose(out, ref_f, rtol=5e-2, atol=5e-2), "mismatch vs f32 reference"

    print("KERNEL_OK")
</pallas_src>

<mosaic_0001>
module attributes {stable_mosaic.version = 11 : i64} {
  func.func @resconv_kernel(%arg0: i32, %arg1: i32, %arg2: memref<1x8x16x256xbf16, #tpu.memory_space<vmem>>, %arg3: memref<1x16x256xf32, #tpu.memory_space<vmem>>, %arg4: memref<64x16xbf16, #tpu.memory_space<vmem>>, %arg5: memref<64x16xbf16, #tpu.memory_space<vmem>>, %arg6: memref<64x1xf32, #tpu.memory_space<vmem>>, %arg7: memref<64x64xbf16, #tpu.memory_space<vmem>>, %arg8: memref<64x1xf32, #tpu.memory_space<vmem>>, %arg9: memref<16x64xbf16, #tpu.memory_space<vmem>>, %arg10: memref<16x1xf32, #tpu.memory_space<vmem>>, %arg11: memref<1x16x256xf32, #tpu.memory_space<vmem>>, %arg12: memref<64x2048xbf16, #tpu.memory_space<vmem>>, %arg13: memref<64x2048xbf16, #tpu.memory_space<vmem>>) attributes {dimension_semantics = [#tpu.dimension_semantics<parallel>, #tpu.dimension_semantics<parallel>], iteration_bounds = array<i64: 2, 4>, scalar_prefetch = 0 : i64, scratch_operands = 2 : i64, tpu.core_type = #tpu.core_type<tc>, window_params = [{transform_indices = @transform_0, window_bounds = array<i64: 1, 8, 16, 256>}, {transform_indices = @transform_1, window_bounds = array<i64: 1, 16, 256>}, {pipeline_mode = #tpu.pipeline_mode<synchronous>, transform_indices = @transform_2, window_bounds = array<i64: 64, 16>}, {pipeline_mode = #tpu.pipeline_mode<synchronous>, transform_indices = @transform_3, window_bounds = array<i64: 64, 16>}, {pipeline_mode = #tpu.pipeline_mode<synchronous>, transform_indices = @transform_4, window_bounds = array<i64: 64, 1>}, {pipeline_mode = #tpu.pipeline_mode<synchronous>, transform_indices = @transform_5, window_bounds = array<i64: 64, 64>}, {pipeline_mode = #tpu.pipeline_mode<synchronous>, transform_indices = @transform_6, window_bounds = array<i64: 64, 1>}, {pipeline_mode = #tpu.pipeline_mode<synchronous>, transform_indices = @transform_7, window_bounds = array<i64: 16, 64>}, {pipeline_mode = #tpu.pipeline_mode<synchronous>, transform_indices = @transform_8, window_bounds = array<i64: 16, 1>}, {transform_indices = @transform_9, window_bounds = array<i64: 1, 16, 256>}]} {
    %c0 = arith.constant 0 : index
    %c0_0 = arith.constant 0 : index
    %c0_1 = arith.constant 0 : index
    %0 = vector.load %arg3[%c0, %c0_0, %c0_1] : memref<1x16x256xf32, #tpu.memory_space<vmem>>, vector<1x16x256xf32>
    %1 = vector.shape_cast %0 : vector<1x16x256xf32> to vector<16x256xf32>
    %c0_2 = arith.constant 0 : index
    %c0_3 = arith.constant 0 : index
    %2 = vector.load %arg4[%c0_2, %c0_3] : memref<64x16xbf16, #tpu.memory_space<vmem>>, vector<64x16xbf16>
    %3 = arith.truncf %1 : vector<16x256xf32> to vector<16x256xbf16>
    %cst = arith.constant dense<0.000000e+00> : vector<64x256xf32>
    %4 = tpu.matmul %2, %3, %cst {dimension_numbers = #tpu.dot_dimension_numbers<[1], [0], [0], [1], [0, 0, 1, 1], [], []>} : vector<64x16xbf16>, vector<16x256xbf16>, vector<64x256xf32> -> vector<64x256xf32>
    %c0_4 = arith.constant 0 : index
    %c0_5 = arith.constant 0 : index
    %5 = vector.load %arg6[%c0_4, %c0_5] : memref<64x1xf32, #tpu.memory_space<vmem>>, vector<64x1xf32>
    %6 = vector.broadcast %5 : vector<64x1xf32> to vector<64x256xf32>
    %7 = arith.addf %4, %6 : vector<64x256xf32>
    %c0_6 = arith.constant 0 : index
    %c0_7 = arith.constant 0 : index
    %8 = vector.load %arg5[%c0_6, %c0_7] : memref<64x16xbf16, #tpu.memory_space<vmem>>, vector<64x16xbf16>
    %c0_8 = arith.constant 0 : index
    %c0_9 = arith.constant 0 : index
    %c0_10 = arith.constant 0 : index
    %c0_11 = arith.constant 0 : index
    %9 = vector.load %arg2[%c0_8, %c0_9, %c0_10, %c0_11] : memref<1x8x16x256xbf16, #tpu.memory_space<vmem>>, vector<1x1x16x256xbf16>
    %10 = vector.shape_cast %9 : vector<1x1x16x256xbf16> to vector<16x256xbf16>
    %cst_12 = arith.constant dense<0.000000e+00> : vector<64x256xf32>
    %11 = tpu.matmul %8, %10, %cst_12 {dimension_numbers = #tpu.dot_dimension_numbers<[1], [0], [0], [1], [0, 0, 1, 1], [], []>} : vector<64x16xbf16>, vector<16x256xbf16>, vector<64x256xf32> -> vector<64x256xf32>
    %12 = arith.addf %11, %7 : vector<64x256xf32>
    %cst_13 = arith.constant 0.000000e+00 : f32
    %13 = vector.broadcast %cst_13 : f32 to vector<64x256xf32>
    %14 = arith.maximumf %12, %13 : vector<64x256xf32>
    %15 = arith.truncf %14 : vector<64x256xf32> to vector<64x256xbf16>
    %c0_14 = arith.constant 0 : index
    %c0_15 = arith.constant 0 : index
    %16 = vector.load %arg12[%c0_14, %c0_15] : memref<64x2048xbf16, #tpu.memory_space<vmem>>, vector<64x256xbf16>
    tpu.vector_store %arg12[%c0_14, %c0_15], %15 {strides = array<i32>} : memref<64x2048xbf16, #tpu.memory_space<vmem>>, vector<64x256xbf16>,
    %c0_16 = arith.constant 0 : index
    %c0_17 = arith.constant 0 : index
    %17 = vector.load %arg5[%c0_16, %c0_17] : memref<64x16xbf16, #tpu.memory_space<vmem>>, vector<64x16xbf16>
    %c0_18 = arith.constant 0 : index
    %c1 = arith.constant 1 : index
    %c0_19 = arith.constant 0 : index
    %c0_20 = arith.constant 0 : index
    %18 = vector.load %arg2[%c0_18, %c1, %c0_19, %c0_20] : memref<1x8x16x256xbf16, #tpu.memory_space<vmem>>, vector<1x1x16x256xbf16>
    %19 = vector.shape_cast %18 : vector<1x1x16x256xbf16> to vector<16x256xbf16>
    %cst_21 = arith.constant dense<0.000000e+00> : vector<64x256xf32>
    %20 = tpu.matmul %17, %19, %cst_21 {dimension_numbers = #tpu.dot_dimension_numbers<[1], [0], [0], [1], [0, 0, 1, 1], [], []>} : vector<64x16xbf16>, vector<16x256xbf16>, vector<64x256xf32> -> vector<64x256xf32>
    %21 = arith.addf %20, %7 : vector<64x256xf32>
    %cst_22 = arith.constant 0.000000e+00 : f32
    %22 = vector.broadcast %cst_22 : f32 to vector<64x256xf32>
    %23 = arith.maximumf %21, %22 : vector<64x256xf32>
    %24 = arith.truncf %23 : vector<64x256xf32> to vector<64x256xbf16>
    %c0_23 = arith.constant 0 : index
    %c256 = arith.constant 256 : index
    %25 = vector.load %arg12[%c0_23, %c256] : memref<64x2048xbf16, #tpu.memory_space<vmem>>, vector<64x256xbf16>
    tpu.vector_store %arg12[%c0_23, %c256], %24 {strides = array<i32>} : memref<64x2048xbf16, #tpu.memory_space<vmem>>, vector<64x256xbf16>,
    %c0_24 = arith.constant 0 : index
    %c0_25 = arith.constant 0 : index
    %26 = vector.load %arg5[%c0_24, %c0_25] : memref<64x16xbf16, #tpu.memory_space<vmem>>, vector<64x16xbf16>
    %c0_26 = arith.constant 0 : index
    %c2 = arith.constant 2 : index
    %c0_27 = arith.constant 0 : index
    %c0_28 = arith.constant 0 : index
    %27 = vector.load %arg2[%c0_26, %c2, %c0_27, %c0_28] : memref<1x8x16x256xbf16, #tpu.memory_space<vmem>>, vector<1x1x16x256xbf16>
    %28 = vector.shape_cast %27 : vector<1x1x16x256xbf16> to vector<16x256xbf16>
    %cst_29 = arith.constant dense<0.000000e+00> : vector<64x256xf32>
    %29 = tpu.matmul %26, %28, %cst_29 {dimension_numbers = #tpu.dot_dimension_numbers<[1], [0], [0], [1], [0, 0, 1, 1], [], []>} : vector<64x16xbf16>, vector<16x256xbf16>, vector<64x256xf32> -> vector<64x256xf32>
    %30 = arith.addf %29, %7 : vector<64x256xf32>
    %cst_30 = arith.constant 0.000000e+00 : f32
    %31 = vector.broadcast %cst_30 : f32 to vector<64x256xf32>
    %32 = arith.maximumf %30, %31 : vector<64x256xf32>
    %33 = arith.truncf %32 : vector<64x256xf32> to vector<64x256xbf16>
    %c0_31 = arith.constant 0 : index
    %c512 = arith.constant 512 : index
    %34 = vector.load %arg12[%c0_31, %c512] : memref<64x2048xbf16, #tpu.memory_space<vmem>>, vector<64x256xbf16>
    tpu.vector_store %arg12[%c0_31, %c512], %33 {strides = array<i32>} : memref<64x2048xbf16, #tpu.memory_space<vmem>>, vector<64x256xbf16>,
    %c0_32 = arith.constant 0 : index
    %c0_33 = arith.constant 0 : index
    %35 = vector.load %arg5[%c0_32, %c0_33] : memref<64x16xbf16, #tpu.memory_space<vmem>>, vector<64x16xbf16>
    %c0_34 = arith.constant 0 : index
    %c3 = arith.constant 3 : index
    %c0_35 = arith.constant 0 : index
    %c0_36 = arith.constant 0 : index
    %36 = vector.load %arg2[%c0_34, %c3, %c0_35, %c0_36] : memref<1x8x16x256xbf16, #tpu.memory_space<vmem>>, vector<1x1x16x256xbf16>
    %37 = vector.shape_cast %36 : vector<1x1x16x256xbf16> to vector<16x256xbf16>
    %cst_37 = arith.constant dense<0.000000e+00> : vector<64x256xf32>
    %38 = tpu.matmul %35, %37, %cst_37 {dimension_numbers = #tpu.dot_dimension_numbers<[1], [0], [0], [1], [0, 0, 1, 1], [], []>} : vector<64x16xbf16>, vector<16x256xbf16>, vector<64x256xf32> -> vector<64x256xf32>
    %39 = arith.addf %38, %7 : vector<64x256xf32>
    %cst_38 = arith.constant 0.000000e+00 : f32
    %40 = vector.broadcast %cst_38 : f32 to vector<64x256xf32>
    %41 = arith.maximumf %39, %40 : vector<64x256xf32>
    %42 = arith.truncf %41 : vector<64x256xf32> to vector<64x256xbf16>
    %c0_39 = arith.constant 0 : index
    %c768 = arith.constant 768 : index
    %43 = vector.load %arg12[%c0_39, %c768] : memref<64x2048xbf16, #tpu.memory_space<vmem>>, vector<64x256xbf16>
    tpu.vector_store %arg12[%c0_39, %c768], %42 {strides = array<i32>} : memref<64x2048xbf16, #tpu.memory_space<vmem>>, vector<64x256xbf16>,
    %c0_40 = arith.constant 0 : index
    %c0_41 = arith.constant 0 : index
    %44 = vector.load %arg5[%c0_40, %c0_41] : memref<64x16xbf16, #tpu.memory_space<vmem>>, vector<64x16xbf16>
    %c0_42 = arith.constant 0 : index
    %c4 = arith.constant 4 : index
    %c0_43 = arith.constant 0 : index
    %c0_44 = arith.constant 0 : index
    %45 = vector.load %arg2[%c0_42, %c4, %c0_43, %c0_44] : memref<1x8x16x256xbf16, #tpu.memory_space<vmem>>, vector<1x1x16x256xbf16>
    %46 = vector.shape_cast %45 : vector<1x1x16x256xbf16> to vector<16x256xbf16>
    %cst_45 = arith.constant dense<0.000000e+00> : vector<64x256xf32>
    %47 = tpu.matmul %44, %46, %cst_45 {dimension_numbers = #tpu.dot_dimension_numbers<[1], [0], [0], [1], [0, 0, 1, 1], [], []>} : vector<64x16xbf16>, vector<16x256xbf16>, vector<64x256xf32> -> vector<64x256xf32>
    %48 = arith.addf %47, %7 : vector<64x256xf32>
    %cst_46 = arith.constant 0.000000e+00 : f32
    %49 = vector.broadcast %cst_46 : f32 to vector<64x256xf32>
    %50 = arith.maximumf %48, %49 : vector<64x256xf32>
    %51 = arith.truncf %50 : vector<64x256xf32> to vector<64x256xbf16>
    %c0_47 = arith.constant 0 : index
    %c1024 = arith.constant 1024 : index
    %52 = vector.load %arg12[%c0_47, %c1024] : memref<64x2048xbf16, #tpu.memory_space<vmem>>, vector<64x256xbf16>
    tpu.vector_store %arg12[%c0_47, %c1024], %51 {strides = array<i32>} : memref<64x2048xbf16, #tpu.memory_space<vmem>>, vector<64x256xbf16>,
    %c0_48 = arith.constant 0 : index
    %c0_49 = arith.constant 0 : index
    %53 = vector.load %arg5[%c0_48, %c0_49] : memref<64x16xbf16, #tpu.memory_space<vmem>>, vector<64x16xbf16>
    %c0_50 = arith.constant 0 : index
    %c5 = arith.constant 5 : index
    %c0_51 = arith.constant 0 : index
    %c0_52 = arith.constant 0 : index
    %54 = vector.load %arg2[%c0_50, %c5, %c0_51, %c0_52] : memref<1x8x16x256xbf16, #tpu.memory_space<vmem>>, vector<1x1x16x256xbf16>
    %55 = vector.shape_cast %54 : vector<1x1x16x256xbf16> to vector<16x256xbf16>
    %cst_53 = arith.constant dense<0.000000e+00> : vector<64x256xf32>
    %56 = tpu.matmul %53, %55, %cst_53 {dimension_numbers = #tpu.dot_dimension_numbers<[1], [0], [0], [1], [0, 0, 1, 1], [], []>} : vector<64x16xbf16>, vector<16x256xbf16>, vector<64x256xf32> -> vector<64x256xf32>
    %57 = arith.addf %56, %7 : vector<64x256xf32>
    %cst_54 = arith.constant 0.000000e+00 : f32
    %58 = vector.broadcast %cst_54 : f32 to vector<64x256xf32>
    %59 = arith.maximumf %57, %58 : vector<64x256xf32>
    %60 = arith.truncf %59 : vector<64x256xf32> to vector<64x256xbf16>
    %c0_55 = arith.constant 0 : index
    %c1280 = arith.constant 1280 : index
    %61 = vector.load %arg12[%c0_55, %c1280] : memref<64x2048xbf16, #tpu.memory_space<vmem>>, vector<64x256xbf16>
    tpu.vector_store %arg12[%c0_55, %c1280], %60 {strides = array<i32>} : memref<64x2048xbf16, #tpu.memory_space<vmem>>, vector<64x256xbf16>,
    %c0_56 = arith.constant 0 : index
    %c0_57 = arith.constant 0 : index
    %62 = vector.load %arg5[%c0_56, %c0_57] : memref<64x16xbf16, #tpu.memory_space<vmem>>, vector<64x16xbf16>
    %c0_58 = arith.constant 0 : index
    %c6 = arith.constant 6 : index
    %c0_59 = arith.constant 0 : index
    %c0_60 = arith.constant 0 : index
    %63 = vector.load %arg2[%c0_58, %c6, %c0_59, %c0_60] : memref<1x8x16x256xbf16, #tpu.memory_space<vmem>>, vector<1x1x16x256xbf16>
    %64 = vector.shape_cast %63 : vector<1x1x16x256xbf16> to vector<16x256xbf16>
    %cst_61 = arith.constant dense<0.000000e+00> : vector<64x256xf32>
    %65 = tpu.matmul %62, %64, %cst_61 {dimension_numbers = #tpu.dot_dimension_numbers<[1], [0], [0], [1], [0, 0, 1, 1], [], []>} : vector<64x16xbf16>, vector<16x256xbf16>, vector<64x256xf32> -> vector<64x256xf32>
    %66 = arith.addf %65, %7 : vector<64x256xf32>
    %cst_62 = arith.constant 0.000000e+00 : f32
    %67 = vector.broadcast %cst_62 : f32 to vector<64x256xf32>
    %68 = arith.maximumf %66, %67 : vector<64x256xf32>
    %69 = arith.truncf %68 : vector<64x256xf32> to vector<64x256xbf16>
    %c0_63 = arith.constant 0 : index
    %c1536 = arith.constant 1536 : index
    %70 = vector.load %arg12[%c0_63, %c1536] : memref<64x2048xbf16, #tpu.memory_space<vmem>>, vector<64x256xbf16>
    tpu.vector_store %arg12[%c0_63, %c1536], %69 {strides = array<i32>} : memref<64x2048xbf16, #tpu.memory_space<vmem>>, vector<64x256xbf16>,
    %c0_64 = arith.constant 0 : index
    %c0_65 = arith.constant 0 : index
    %71 = vector.load %arg5[%c0_64, %c0_65] : memref<64x16xbf16, #tpu.memory_space<vmem>>, vector<64x16xbf16>
    %c0_66 = arith.constant 0 : index
    %c7 = arith.constant 7 : index
    %c0_67 = arith.constant 0 : index
    %c0_68 = arith.constant 0 : index
    %72 = vector.load %arg2[%c0_66, %c7, %c0_67, %c0_68] : memref<1x8x16x256xbf16, #tpu.memory_space<vmem>>, vector<1x1x16x256xbf16>
    %73 = vector.shape_cast %72 : vector<1x1x16x256xbf16> to vector<16x256xbf16>
    %cst_69 = arith.constant dense<0.000000e+00> : vector<64x256xf32>
    %74 = tpu.matmul %71, %73, %cst_69 {dimension_numbers = #tpu.dot_dimension_numbers<[1], [0], [0], [1], [0, 0, 1, 1], [], []>} : vector<64x16xbf16>, vector<16x256xbf16>, vector<64x256xf32> -> vector<64x256xf32>
    %75 = arith.addf %74, %7 : vector<64x256xf32>
    %cst_70 = arith.constant 0.000000e+00 : f32
    %76 = vector.broadcast %cst_70 : f32 to vector<64x256xf32>
    %77 = arith.maximumf %75, %76 : vector<64x256xf32>
    %78 = arith.truncf %77 : vector<64x256xf32> to vector<64x256xbf16>
    %c0_71 = arith.constant 0 : index
    %c1792 = arith.constant 1792 : index
    %79 = vector.load %arg12[%c0_71, %c1792] : memref<64x2048xbf16, #tpu.memory_space<vmem>>, vector<64x256xbf16>
    tpu.vector_store %arg12[%c0_71, %c1792], %78 {strides = array<i32>} : memref<64x2048xbf16, #tpu.memory_space<vmem>>, vector<64x256xbf16>,
    %c0_72 = arith.constant 0 : index
    %c0_73 = arith.constant 0 : index
    %80 = vector.load %arg7[%c0_72, %c0_73] : memref<64x64xbf16, #tpu.memory_space<vmem>>, vector<64x64xbf16>
    %c0_74 = arith.constant 0 : index
    %c0_75 = arith.constant 0 : index
    %81 = vector.load %arg12[%c0_74, %c0_75] : memref<64x2048xbf16, #tpu.memory_space<vmem>>, vector<64x2048xbf16>
    %cst_76 = arith.constant dense<0.000000e+00> : vector<64x2048xf32>
    %82 = tpu.matmul %80, %81, %cst_76 {dimension_numbers = #tpu.dot_dimension_numbers<[1], [0], [0], [1], [0, 0, 1, 1], [], []>} : vector<64x64xbf16>, vector<64x2048xbf16>, vector<64x2048xf32> -> vector<64x2048xf32>
    %c0_77 = arith.constant 0 : index
    %c0_78 = arith.constant 0 : index
    %83 = vector.load %arg8[%c0_77, %c0_78] : memref<64x1xf32, #tpu.memory_space<vmem>>, vector<64x1xf32>
    %84 = vector.broadcast %83 : vector<64x1xf32> to vector<64x2048xf32>
    %85 = arith.addf %82, %84 : vector<64x2048xf32>
    %cst_79 = arith.constant 0.000000e+00 : f32
    %86 = vector.broadcast %cst_79 : f32 to vector<64x2048xf32>
    %87 = arith.maximumf %85, %86 : vector<64x2048xf32>
    %88 = arith.truncf %87 : vector<64x2048xf32> to vector<64x2048xbf16>
    %c0_80 = arith.constant 0 : index
    %c0_81 = arith.constant 0 : index
    %89 = vector.load %arg13[%c0_80, %c0_81] : memref<64x2048xbf16, #tpu.memory_space<vmem>>, vector<64x2048xbf16>
    tpu.vector_store %arg13[%c0_80, %c0_81], %88 {strides = array<i32>} : memref<64x2048xbf16, #tpu.memory_space<vmem>>, vector<64x2048xbf16>,
    %c0_82 = arith.constant 0 : index
    %c0_83 = arith.constant 0 : index
    %90 = vector.load %arg9[%c0_82, %c0_83] : memref<16x64xbf16, #tpu.memory_space<vmem>>, vector<16x64xbf16>
    %c0_84 = arith.constant 0 : index
    %c0_85 = arith.constant 0 : index
    %91 = vector.load %arg13[%c0_84, %c0_85] : memref<64x2048xbf16, #tpu.memory_space<vmem>>, vector<64x2048xbf16>
    %cst_86 = arith.constant dense<0.000000e+00> : vector<16x2048xf32>
    %92 = tpu.matmul %90, %91, %cst_86 {dimension_numbers = #tpu.dot_dimension_numbers<[1], [0], [0], [1], [0, 0, 1, 1], [], []>} : vector<16x64xbf16>, vector<64x2048xbf16>, vector<16x2048xf32> -> vector<16x2048xf32>
    %c0_87 = arith.constant 0 : index
    %c0_88 = arith.constant 0 : index
    %93 = vector.load %arg10[%c0_87, %c0_88] : memref<16x1xf32, #tpu.memory_space<vmem>>, vector<16x1xf32>
    %94 = vector.broadcast %93 : vector<16x1xf32> to vector<16x2048xf32>
    %95 = arith.addf %92, %94 : vector<16x2048xf32>
    %96 = vector.extract_strided_slice %95 {offsets = [0, 0], sizes = [16, 256], strides = [1, 1]} : vector<16x2048xf32> to vector<16x256xf32>
    %97 = vector.extract_strided_slice %95 {offsets = [0, 256], sizes = [16, 256], strides = [1, 1]} : vector<16x2048xf32> to vector<16x256xf32>
    %98 = arith.maximumf %96, %97 : vector<16x256xf32>
    %99 = vector.extract_strided_slice %95 {offsets = [0, 512], sizes = [16, 256], strides = [1, 1]} : vector<16x2048xf32> to vector<16x256xf32>
    %100 = arith.maximumf %98, %99 : vector<16x256xf32>
    %101 = vector.extract_strided_slice %95 {offsets = [0, 768], sizes = [16, 256], strides = [1, 1]} : vector<16x2048xf32> to vector<16x256xf32>
    %102 = arith.maximumf %100, %101 : vector<16x256xf32>
    %103 = vector.extract_strided_slice %95 {offsets = [0, 1024], sizes = [16, 256], strides = [1, 1]} : vector<16x2048xf32> to vector<16x256xf32>
    %104 = arith.maximumf %102, %103 : vector<16x256xf32>
    %105 = vector.extract_strided_slice %95 {offsets = [0, 1280], sizes = [16, 256], strides = [1, 1]} : vector<16x2048xf32> to vector<16x256xf32>
    %106 = arith.maximumf %104, %105 : vector<16x256xf32>
    %107 = vector.extract_strided_slice %95 {offsets = [0, 1536], sizes = [16, 256], strides = [1, 1]} : vector<16x2048xf32> to vector<16x256xf32>
    %108 = arith.maximumf %106, %107 : vector<16x256xf32>
    %109 = vector.extract_strided_slice %95 {offsets = [0, 1792], sizes = [16, 256], strides = [1, 1]} : vector<16x2048xf32> to vector<16x256xf32>
    %110 = arith.maximumf %108, %109 : vector<16x256xf32>
    %111 = arith.addf %110, %1 : vector<16x256xf32>
    %c0_89 = arith.constant 0 : index
    %c0_90 = arith.constant 0 : index
    %c0_91 = arith.constant 0 : index
    %112 = vector.load %arg11[%c0_89, %c0_90, %c0_91] : memref<1x16x256xf32, #tpu.memory_space<vmem>>, vector<1x16x256xf32>
    %113 = vector.shape_cast %112 : vector<1x16x256xf32> to vector<16x256xf32>
    %114 = vector.shape_cast %111 : vector<16x256xf32> to vector<1x16x256xf32>
    tpu.vector_store %arg11[%c0_89, %c0_90, %c0_91], %114 {strides = array<i32>} : memref<1x16x256xf32, #tpu.memory_space<vmem>>, vector<1x16x256xf32>,
    return
  }
  func.func @transform_0(%arg0: i32, %arg1: i32) -> (i32, i32, i32, i32) {
    %c0_i32 = arith.constant 0 : i32
    %c0_i32_0 = arith.constant 0 : i32
    %c0_i32_1 = arith.constant 0 : i32
    return %arg0, %c0_i32, %c0_i32_0, %arg1 : i32, i32, i32, i32
  }
  func.func @transform_1(%arg0: i32, %arg1: i32) -> (i32, i32, i32) {
    %c0_i32 = arith.constant 0 : i32
    %c0_i32_0 = arith.constant 0 : i32
    return %arg0, %c0_i32, %arg1 : i32, i32, i32
  }
  func.func @transform_2(%arg0: i32, %arg1: i32) -> (i32, i32) {
    %c0_i32 = arith.constant 0 : i32
    %c0_i32_0 = arith.constant 0 : i32
    %c0_i32_1 = arith.constant 0 : i32
    return %c0_i32, %c0_i32_0 : i32, i32
  }
  func.func @transform_3(%arg0: i32, %arg1: i32) -> (i32, i32) {
    %c0_i32 = arith.constant 0 : i32
    %c0_i32_0 = arith.constant 0 : i32
    %c0_i32_1 = arith.constant 0 : i32
    return %c0_i32, %c0_i32_0 : i32, i32
  }
  func.func @transform_4(%arg0: i32, %arg1: i32) -> (i32, i32) {
    %c0_i32 = arith.constant 0 : i32
    %c0_i32_0 = arith.constant 0 : i32
    %c0_i32_1 = arith.constant 0 : i32
    return %c0_i32, %c0_i32_0 : i32, i32
  }
  func.func @transform_5(%arg0: i32, %arg1: i32) -> (i32, i32) {
    %c0_i32 = arith.constant 0 : i32
    %c0_i32_0 = arith.constant 0 : i32
    %c0_i32_1 = arith.constant 0 : i32
    return %c0_i32, %c0_i32_0 : i32, i32
  }
  func.func @transform_6(%arg0: i32, %arg1: i32) -> (i32, i32) {
    %c0_i32 = arith.constant 0 : i32
    %c0_i32_0 = arith.constant 0 : i32
    %c0_i32_1 = arith.constant 0 : i32
    return %c0_i32, %c0_i32_0 : i32, i32
  }
  func.func @transform_7(%arg0: i32, %arg1: i32) -> (i32, i32) {
    %c0_i32 = arith.constant 0 : i32
    %c0_i32_0 = arith.constant 0 : i32
    %c0_i32_1 = arith.constant 0 : i32
    return %c0_i32, %c0_i32_0 : i32, i32
  }
  func.func @transform_8(%arg0: i32, %arg1: i32) -> (i32, i32) {
    %c0_i32 = arith.constant 0 : i32
    %c0_i32_0 = arith.constant 0 : i32
    %c0_i32_1 = arith.constant 0 : i32
    return %c0_i32, %c0_i32_0 : i32, i32
  }
  func.func @transform_9(%arg0: i32, %arg1: i32) -> (i32, i32, i32) {
    %c0_i32 = arith.constant 0 : i32
    %c0_i32_0 = arith.constant 0 : i32
    return %arg0, %c0_i32, %arg1 : i32, i32, i32
  }
}

</mosaic_0001>

<llo_original>
// kernel: tpu_custom_call.1
$region0: #{tpu_custom_call.1}
  #allocation0 [shape = 'u32[]', space=smem, size = 0x4, offset = 0x4, fixed_abs, tag = 'smem constant byte address 0x4 - core index']
  #allocation1 [shape = 'u32[144,128]{1,0:T(1,128)}', space=vmem, size = 0x12000, scoped, tag = 'internal scratch']
  #allocation2 [shape = 'bf16[64,2048]{1,0:T(16,128)(2,1)}', space=vmem, size = 0x40000, scoped, tag = 'scratch operand']
  #allocation3 [shape = 'bf16[64,2048]{1,0:T(16,128)(2,1)}', space=vmem, size = 0x40000, scoped, tag = 'scratch operand']
  %s0 = inlined_call_operand.hbm [shape: bf16[2,8,16,1024], index: 0, kind: input, shape index: {}]
  %s1 = inlined_call_operand.hbm [shape: f32[2,16,1024], index: 1, kind: input, shape index: {}]
  %s2 = inlined_call_operand.vmem [shape: bf16[64,16], index: 2, kind: input, shape index: {}]
  %s3 = inlined_call_operand.vmem [shape: bf16[64,16], index: 3, kind: input, shape index: {}]
  %s4 = inlined_call_operand.vmem [shape: f32[64,1], index: 4, kind: input, shape index: {}]
  %s5 = inlined_call_operand.vmem [shape: bf16[64,64], index: 5, kind: input, shape index: {}]
  %s6 = inlined_call_operand.vmem [shape: f32[64,1], index: 6, kind: input, shape index: {}]
  %s7 = inlined_call_operand.vmem [shape: bf16[16,64], index: 7, kind: input, shape index: {}]
  %s8 = inlined_call_operand.vmem [shape: f32[16,1], index: 8, kind: input, shape index: {}]
  %s9 = inlined_call_operand.hbm [shape: f32[2,16,1024], index: 9, kind: output, shape index: {}]
  %s10 = sld [smem:[#allocation0]]
  $region77: #{tpu_custom_call.1} parent=0
    _
  %s12 = ssub.s32 1, %s10
  %s13 = scalar_select 0, %s12, %s10
  $region1: #{tpu_custom_call.1} parent=0
    #allocation4 [shape = 'u8[131072]{0}', space=vmem, size = 0x20000, scoped, tag = 'input window, operand 0']
    #allocation5 [shape = 's32[2]{0}', space=sflag, size = 0x8, scoped, tag = 'scoped memory for tpu_custom_call.1']
    #allocation6 [shape = 's32[2]{0}', space=sflag, size = 0x8, scoped, tag = 'scoped memory for tpu_custom_call.1']
    #allocation7 [shape = 'u8[32768]{0}', space=vmem, size = 0x8000, scoped, tag = 'input window, operand 1']
    #allocation8 [shape = 's32[2]{0}', space=sflag, size = 0x8, scoped, tag = 'scoped memory for tpu_custom_call.1']
    #allocation9 [shape = 'u8[32768]{0}', space=vmem, size = 0x8000, scoped, tag = 'output window, operand 0']
    %14 = vsyncpa [#allocation5], 0
    %s15 = scalar_lea.sflag [#allocation5], 1
    %16 = vsyncpa %s15, 0
    %17 = vsyncpa [#allocation8], 0
    %s18 = scalar_lea.sflag [#allocation8], 1
    %19 = vsyncpa %s18, 0
    %20 = vsyncpa [#allocation6], 0
    %s21 = scalar_lea.sflag [#allocation6], 1
    %22 = vsyncpa %s21, 0
    loop: start=0, step=1, limit=10
    $region2: #{tpu_custom_call.1} parent=1 // loop_pre_header
      _
    $region3: #{tpu_custom_call.1} parent=1 // loop_header
      %s24 = sphi 0, %s28
      %p25 = scmp.ge.s32.totalorder %s24, 10
      %s31 = sphi 0, %s43
      %s32 = sphi 0, %s39
      %s33 = sphi 0, %s31
      %s34 = sphi 0, %s32
      %s35 = sphi 0, %s33
      %s36 = sphi 0, %s34
      %s48 = sphi 0, %s50
      %s51 = sphi 0, %s48
      %s52 = sphi 0, %s51
      %s68 = sphi 0, %s52
      %s76 = sphi 0, %s78
      %s79 = sphi 0, %s76
      %s80 = sphi 0, %s79
      %s96 = sphi 0, %s80
      %s100 = sphi 0, %s100
      %s102 = sphi 0, %s100
      %s103 = sphi 0, %s102
      %s117 = sphi 0, %s103
      %s121 = sphi 0, %s121
      %s123 = sphi 0, %s121
      %s124 = sphi 0, %s123
      %s138 = sphi 0, %s124
      %s142 = sphi 0, %s142
      %s144 = sphi 0, %s142
      %s145 = sphi 0, %s144
      %s159 = sphi 0, %s145
      %s163 = sphi 0, %s163
      %s165 = sphi 0, %s163
      %s166 = sphi 0, %s165
      %s180 = sphi 0, %s166
      %s184 = sphi 0, %s184
      %s186 = sphi 0, %s184
      %s187 = sphi 0, %s186
      %s201 = sphi 0, %s187
      %s205 = sphi 0, %s205
      %s207 = sphi 0, %s205
      %s208 = sphi 0, %s207
      %s222 = sphi 0, %s208
      %s226 = sphi 0, %s226
      %s228 = sphi 0, %s226
      %s229 = sphi 0, %s228
      %s243 = sphi 0, %s229
      %s251 = sphi 0, %s253
      %s254 = sphi 0, %s251
      %s255 = sphi 0, %s254
      %s271 = sphi 0, %s255
    $region4: #{tpu_custom_call.1} parent=1 // loop_header_branch
      %27 = sbr.rel (%p25) target = $region8
    $region5: #{tpu_custom_call.1} parent=1 // loop_body
      %s29 = ssub.s32 %s24, 1
      %s30 = ssub.s32 %s24, 2
      %s37 = sadd.s32 1, %s32
      %p38 = scmp.ge.s32.totalorder %s37, 4
      %s39 = scalar_select %p38, 0, %s37
      %s40 = sadd.s32 1, %s31
      %s41 = scalar_select %p38, %s40, %s31
      %p42 = scmp.ge.s32.totalorder %s41, 2
      %s43 = scalar_select %p42, 0, %s41
      %s44 = ssub.s32 %s31, %s43
      %s45 = ssub.s32 %s32, %s39
      %s46 = sor.u32 %s44, %s45
      %p47 = scmp.eq.s32.totalorder %s46, 0
      %s49 = sadd.s32 %s48, 1
      %s50 = scalar_select %p47, %s48, %s49
      %p53 = pneg %p47
      %p54 = scmp.eq.s32.totalorder %s24, 7
      %p55 = por %p53, %p54
      %p56 = scmp.ne.s32.totalorder %s48, %s51
      %p57 = scmp.eq.s32.totalorder %s24, 0
      %p58 = por %p56, %p57
      %p59 = scmp.ne.s32.totalorder %s48, %s51
      %p60 = scmp.eq.s32.totalorder %s29, 7
      %p61 = por %p59, %p60
      %p62 = scmp.ne.s32.totalorder %s51, %s52
      %p63 = scmp.eq.s32.totalorder %s29, 0
      %p64 = por %p62, %p63
      %p65 = scmp.ne.s32.totalorder %s51, %s52
      %p66 = scmp.eq.s32.totalorder %s30, 7
      %p67 = por %p65, %p66
      %p69 = scmp.ne.s32.totalorder %s52, %s68
      %p70 = scmp.eq.s32.totalorder %s30, 0
      %p71 = por %p69, %p70
      %s72 = ssub.s32 %s31, %s43
      %s73 = ssub.s32 %s32, %s39
      %s74 = sor.u32 %s72, %s73
      %p75 = scmp.eq.s32.totalorder %s74, 0
      %s77 = sadd.s32 %s76, 1
      %s78 = scalar_select %p75, %s76, %s77
      %p81 = pneg %p75
      %p82 = scmp.eq.s32.totalorder %s24, 7
      %p83 = por %p81, %p82
      %p84 = scmp.ne.s32.totalorder %s76, %s79
      %p85 = scmp.eq.s32.totalorder %s24, 0
      %p86 = por %p84, %p85
      %p87 = scmp.ne.s32.totalorder %s76, %s79
      %p88 = scmp.eq.s32.totalorder %s29, 7
      %p89 = por %p87, %p88
      %p90 = scmp.ne.s32.totalorder %s79, %s80
      %p91 = scmp.eq.s32.totalorder %s29, 0
      %p92 = por %p90, %p91
      %p93 = scmp.ne.s32.totalorder %s79, %s80
      %p94 = scmp.eq.s32.totalorder %s30, 7
      %p95 = por %p93, %p94
      %p97 = scmp.ne.s32.totalorder %s80, %s96
      %p98 = scmp.eq.s32.totalorder %s30, 0
      %p99 = por %p97, %p98
      %s101 = sadd.s32 %s100, 1
      %p104 = scmp.eq.s32.totalorder %s24, 7
      %p105 = scmp.ne.s32.totalorder %s100, %s102
      %p106 = scmp.eq.s32.totalorder %s24, 0
      %p107 = por %p105, %p106
      %p108 = scmp.ne.s32.totalorder %s100, %s102
      %p109 = scmp.eq.s32.totalorder %s29, 7
      %p110 = por %p108, %p109
      %p111 = scmp.ne.s32.totalorder %s102, %s103
      %p112 = scmp.eq.s32.totalorder %s29, 0
      %p113 = por %p111, %p112
      %p114 = scmp.ne.s32.totalorder %s102, %s103
      %p115 = scmp.eq.s32.totalorder %s30, 7
      %p116 = por %p114, %p115
      %p118 = scmp.ne.s32.totalorder %s103, %s117
      %p119 = scmp.eq.s32.totalorder %s30, 0
      %p120 = por %p118, %p119
      %s122 = sadd.s32 %s121, 1
      %p125 = scmp.eq.s32.totalorder %s24, 7
      %p126 = scmp.ne.s32.totalorder %s121, %s123
      %p127 = scmp.eq.s32.totalorder %s24, 0
      %p128 = por %p126, %p127
      %p129 = scmp.ne.s32.totalorder %s121, %s123
      %p130 = scmp.eq.s32.totalorder %s29, 7
      %p131 = por %p129, %p130
      %p132 = scmp.ne.s32.totalorder %s123, %s124
      %p133 = scmp.eq.s32.totalorder %s29, 0
      %p134 = por %p132, %p133
      %p135 = scmp.ne.s32.totalorder %s123, %s124
      %p136 = scmp.eq.s32.totalorder %s30, 7
      %p137 = por %p135, %p136
      %p139 = scmp.ne.s32.totalorder %s124, %s138
      %p140 = scmp.eq.s32.totalorder %s30, 0
      %p141 = por %p139, %p140
      %s143 = sadd.s32 %s142, 1
      %p146 = scmp.eq.s32.totalorder %s24, 7
      %p147 = scmp.ne.s32.totalorder %s142, %s144
      %p148 = scmp.eq.s32.totalorder %s24, 0
      %p149 = por %p147, %p148
      %p150 = scmp.ne.s32.totalorder %s142, %s144
      %p151 = scmp.eq.s32.totalorder %s29, 7
      %p152 = por %p150, %p151
      %p153 = scmp.ne.s32.totalorder %s144, %s145
      %p154 = scmp.eq.s32.totalorder %s29, 0
      %p155 = por %p153, %p154
      %p156 = scmp.ne.s32.totalorder %s144, %s145
      %p157 = scmp.eq.s32.totalorder %s30, 7
      %p158 = por %p156, %p157
      %p160 = scmp.ne.s32.totalorder %s145, %s159
      %p161 = scmp.eq.s32.totalorder %s30, 0
      %p162 = por %p160, %p161
      %s164 = sadd.s32 %s163, 1
      %p167 = scmp.eq.s32.totalorder %s24, 7
      %p168 = scmp.ne.s32.totalorder %s163, %s165
      %p169 = scmp.eq.s32.totalorder %s24, 0
      %p170 = por %p168, %p169
      %p171 = scmp.ne.s32.totalorder %s163, %s165
      %p172 = scmp.eq.s32.totalorder %s29, 7
      %p173 = por %p171, %p172
      %p174 = scmp.ne.s32.totalorder %s165, %s166
      %p175 = scmp.eq.s32.totalorder %s29, 0
      %p176 = por %p174, %p175
      %p177 = scmp.ne.s32.totalorder %s165, %s166
      %p178 = scmp.eq.s32.totalorder %s30, 7
      %p179 = por %p177, %p178
      %p181 = scmp.ne.s32.totalorder %s166, %s180
      %p182 = scmp.eq.s32.totalorder %s30, 0
      %p183 = por %p181, %p182
      %s185 = sadd.s32 %s184, 1
      %p188 = scmp.eq.s32.totalorder %s24, 7
      %p189 = scmp.ne.s32.totalorder %s184, %s186
      %p190 = scmp.eq.s32.totalorder %s24, 0
      %p191 = por %p189, %p190
      %p192 = scmp.ne.s32.totalorder %s184, %s186
      %p193 = scmp.eq.s32.totalorder %s29, 7
      %p194 = por %p192, %p193
      %p195 = scmp.ne.s32.totalorder %s186, %s187
      %p196 = scmp.eq.s32.totalorder %s29, 0
      %p197 = por %p195, %p196
      %p198 = scmp.ne.s32.totalorder %s186, %s187
      %p199 = scmp.eq.s32.totalorder %s30, 7
      %p200 = por %p198, %p199
      %p202 = scmp.ne.s32.totalorder %s187, %s201
      %p203 = scmp.eq.s32.totalorder %s30, 0
      %p204 = por %p202, %p203
      %s206 = sadd.s32 %s205, 1
      %p209 = scmp.eq.s32.totalorder %s24, 7
      %p210 = scmp.ne.s32.totalorder %s205, %s207
      %p211 = scmp.eq.s32.totalorder %s24, 0
      %p212 = por %p210, %p211
      %p213 = scmp.ne.s32.totalorder %s205, %s207
      %p214 = scmp.eq.s32.totalorder %s29, 7
      %p215 = por %p213, %p214
      %p216 = scmp.ne.s32.totalorder %s207, %s208
      %p217 = scmp.eq.s32.totalorder %s29, 0
      %p218 = por %p216, %p217
      %p219 = scmp.ne.s32.totalorder %s207, %s208
      %p220 = scmp.eq.s32.totalorder %s30, 7
      %p221 = por %p219, %p220
      %p223 = scmp.ne.s32.totalorder %s208, %s222
      %p224 = scmp.eq.s32.totalorder %s30, 0
      %p225 = por %p223, %p224
      %s227 = sadd.s32 %s226, 1
      %p230 = scmp.eq.s32.totalorder %s24, 7
      %p231 = scmp.ne.s32.totalorder %s226, %s228
      %p232 = scmp.eq.s32.totalorder %s24, 0
      %p233 = por %p231, %p232
      %p234 = scmp.ne.s32.totalorder %s226, %s228
      %p235 = scmp.eq.s32.totalorder %s29, 7
      %p236 = por %p234, %p235
      %p237 = scmp.ne.s32.totalorder %s228, %s229
      %p238 = scmp.eq.s32.totalorder %s29, 0
      %p239 = por %p237, %p238
      %p240 = scmp.ne.s32.totalorder %s228, %s229
      %p241 = scmp.eq.s32.totalorder %s30, 7
      %p242 = por %p240, %p241
      %p244 = scmp.ne.s32.totalorder %s229, %s243
      %p245 = scmp.eq.s32.totalorder %s30, 0
      %p246 = por %p244, %p245
      %s247 = ssub.s32 %s31, %s43
      %s248 = ssub.s32 %s32, %s39
      %s249 = sor.u32 %s247, %s248
      %p250 = scmp.eq.s32.totalorder %s249, 0
      %s252 = sadd.s32 %s251, 1
      %s253 = scalar_select %p250, %s251, %s252
      %p256 = pneg %p250
      %p257 = scmp.eq.s32.totalorder %s24, 7
      %p258 = por %p256, %p257
      %p259 = scmp.ne.s32.totalorder %s251, %s254
      %p260 = scmp.eq.s32.totalorder %s24, 0
      %p261 = por %p259, %p260
      %p262 = scmp.ne.s32.totalorder %s251, %s254
      %p263 = scmp.eq.s32.totalorder %s29, 7
      %p264 = por %p262, %p263
      %p265 = scmp.ne.s32.totalorder %s254, %s255
      %p266 = scmp.eq.s32.totalorder %s29, 0
      %p267 = por %p265, %p266
      %p268 = scmp.ne.s32.totalorder %s254, %s255
      %p269 = scmp.eq.s32.totalorder %s30, 7
      %p270 = por %p268, %p269
      %p272 = scmp.ne.s32.totalorder %s255, %s271
      %p273 = scmp.eq.s32.totalorder %s30, 0
      %p274 = por %p272, %p273
      %p275 = scmp.le.s32.totalorder 1, %s24
      %p276 = scmp.lt.s32.totalorder %s24, 9
      %p277 = pnand %p275, %p276
      %p278 = pneg %p277
      // Predicated region
      $region9: #{tpu_custom_call.1} parent=5 // pred_check
        _
      $region10: #{tpu_custom_call.1} parent=5 // pred_check_branch
        %280 = sbr.rel (%p277) target = $region12
      $region11: #{tpu_custom_call.1} parent=5 // pred_region
        %s281 = ssub.s32 %s24, 1
        // Predicated region
        $region13: #{tpu_custom_call.1} parent=11 // pred_check
          %p282 = pneg %p113
        $region14: #{tpu_custom_call.1} parent=11 // pred_check_branch
          %284 = sbr.rel (%p282) target = $region16
        $region15: #{tpu_custom_call.1} parent=11 // pred_region
          _
        $region16: #{tpu_custom_call.1} parent=11 // pred_fallthru
          _
        // Predicated region
        $region17: #{tpu_custom_call.1} parent=11 // pred_check
          %p285 = pneg %p134
        $region18: #{tpu_custom_call.1} parent=11 // pred_check_branch
          %287 = sbr.rel (%p285) target = $region20
        $region19: #{tpu_custom_call.1} parent=11 // pred_region
          _
        $region20: #{tpu_custom_call.1} parent=11 // pred_fallthru
          _
        // Predicated region
        $region21: #{tpu_custom_call.1} parent=11 // pred_check
          %p288 = pneg %p155
        $region22: #{tpu_custom_call.1} parent=11 // pred_check_branch
          %290 = sbr.rel (%p288) target = $region24
        $region23: #{tpu_custom_call.1} parent=11 // pred_region
          _
        $region24: #{tpu_custom_call.1} parent=11 // pred_fallthru
          _
        // Predicated region
        $region25: #{tpu_custom_call.1} parent=11 // pred_check
          %p291 = pneg %p176
        $region26: #{tpu_custom_call.1} parent=11 // pred_check_branch
          %293 = sbr.rel (%p291) target = $region28
        $region27: #{tpu_custom_call.1} parent=11 // pred_region
          _
        $region28: #{tpu_custom_call.1} parent=11 // pred_fallthru
          _
        // Predicated region
        $region29: #{tpu_custom_call.1} parent=11 // pred_check
          %p294 = pneg %p197
        $region30: #{tpu_custom_call.1} parent=11 // pred_check_branch
          %296 = sbr.rel (%p294) target = $region32
        $region31: #{tpu_custom_call.1} parent=11 // pred_region
          _
        $region32: #{tpu_custom_call.1} parent=11 // pred_fallthru
          _
        // Predicated region
        $region33: #{tpu_custom_call.1} parent=11 // pred_check
          %p297 = pneg %p218
        $region34: #{tpu_custom_call.1} parent=11 // pred_check_branch
          %299 = sbr.rel (%p297) target = $region36
        $region35: #{tpu_custom_call.1} parent=11 // pred_region
          _
        $region36: #{tpu_custom_call.1} parent=11 // pred_fallthru
          _
        // Predicated region
        $region37: #{tpu_custom_call.1} parent=11 // pred_check
          %p300 = pneg %p239
        $region38: #{tpu_custom_call.1} parent=11 // pred_check_branch
          %302 = sbr.rel (%p300) target = $region40
        $region39: #{tpu_custom_call.1} parent=11 // pred_region
          _
        $region40: #{tpu_custom_call.1} parent=11 // pred_fallthru
          _
      $region12: #{tpu_custom_call.1} parent=5 // pred_fallthru
        _
      %p303 = scmp.lt.s32.totalorder %s24, 8
      // Predicated region
      $region41: #{tpu_custom_call.1} parent=5 // pred_check
        %p304 = pneg %p303
      $region42: #{tpu_custom_call.1} parent=5 // pred_check_branch
        %306 = sbr.rel (%p304) target = $region44
      $region43: #{tpu_custom_call.1} parent=5 // pred_region
        // Predicated region
        $region45: #{tpu_custom_call.1} parent=43 // pred_check
          %p307 = pneg %p58
        $region46: #{tpu_custom_call.1} parent=43 // pred_check_branch
          %309 = sbr.rel (%p307) target = $region48
        $region47: #{tpu_custom_call.1} parent=43 // pred_region
          %s310 = sand.u32 %s48, 1
          %s311 = scalar_lea.sflag [#allocation5], %s310
          %s312 = sand.u32 %s48, 1
          %s313 = smul.addr %s312, 128
          %s314 = scalar_lea.vmem [#allocation4], %s313
          %s315 = smul.u32 2, %s32
          %s317 = ssub.s32 2048, 2048
          %318 = vsyncadd %s311, %s317
          %s319 = smul.addr %s31, 128
          %s320 = sadd.s32 %s315, %s319
          %s321 = smul.addr %s320, 64
          %s322 = scalar_lea.hbm %s0, %s321
          %s323 = sshll.u32 %s314, 4
          %s324 = int_to_ptr.vmem [resolvable:$true] %s323
          %329 = dma.hbm_to_vmem [thread:$0]  %s322, 2048, %s324, %s311, 512, 128, 8
        $region48: #{tpu_custom_call.1} parent=43 // pred_fallthru
          _
        // Predicated region
        $region49: #{tpu_custom_call.1} parent=43 // pred_check
          %p330 = pneg %p86
        $region50: #{tpu_custom_call.1} parent=43 // pred_check_branch
          %332 = sbr.rel (%p330) target = $region52
        $region51: #{tpu_custom_call.1} parent=43 // pred_region
          %s333 = sand.u32 %s76, 1
          %s334 = scalar_lea.sflag [#allocation8], %s333
          %s335 = sand.u32 %s76, 1
          %s336 = smul.addr %s335, 32
          %s337 = scalar_lea.vmem [#allocation7], %s336
          %s338 = smul.u32 2, %s32
          %s340 = ssub.s32 512, 512
          %341 = vsyncadd %s334, %s340
          %s342 = smul.addr %s31, 16
          %s343 = sadd.s32 %s338, %s342
          %s344 = smul.addr %s343, 128
          %s345 = scalar_lea.hbm %s1, %s344
          %s346 = sshll.u32 %s337, 4
          %s347 = int_to_ptr.vmem [resolvable:$true] %s346
          %352 = dma.hbm_to_vmem [thread:$0]  %s345, 512, %s347, %s334, 1024, 256, 16
        $region52: #{tpu_custom_call.1} parent=43 // pred_fallthru
          _
      $region44: #{tpu_custom_call.1} parent=5 // pred_fallthru
        _
      %p353 = scmp.le.s32.totalorder 1, %s24
      %p354 = scmp.lt.s32.totalorder %s24, 9
      %p355 = pnand %p353, %p354
      %p356 = pneg %p355
      // Predicated region
      $region53: #{tpu_custom_call.1} parent=5 // pred_check
        _
      $region54: #{tpu_custom_call.1} parent=5 // pred_check_branch
        %358 = sbr.rel (%p355) target = $region56
      $region55: #{tpu_custom_call.1} parent=5 // pred_region
        %s359 = ssub.s32 %s24, 1
        %s360 = sand.u32 %s51, 1
        %s361 = scalar_lea.sflag [#allocation5], %s360
        %s362 = sand.u32 %s51, 1
        %s363 = smul.addr %s362, 128
        %s364 = scalar_lea.vmem [#allocation4], %s363
        // Predicated region
        $region57: #{tpu_custom_call.1} parent=55 // pred_check
          %p365 = pneg %p64
        $region58: #{tpu_custom_call.1} parent=55 // pred_check_branch
          %367 = sbr.rel (%p365) target = $region60
        $region59: #{tpu_custom_call.1} parent=55 // pred_region
          %368 = dma.done %s361, 2048
        $region60: #{tpu_custom_call.1} parent=55 // pred_fallthru
          _
        %s369 = sand.u32 %s79, 1
        %s370 = scalar_lea.sflag [#allocation8], %s369
        %s371 = sand.u32 %s79, 1
        %s372 = smul.addr %s371, 32
        %s373 = scalar_lea.vmem [#allocation7], %s372
        // Predicated region
        $region61: #{tpu_custom_call.1} parent=55 // pred_check
          %p374 = pneg %p92
        $region62: #{tpu_custom_call.1} parent=55 // pred_check_branch
          %376 = sbr.rel (%p374) target = $region64
        $region63: #{tpu_custom_call.1} parent=55 // pred_region
          %377 = dma.done %s370, 512
        $region64: #{tpu_custom_call.1} parent=55 // pred_fallthru
          _
        %s378 = sand.u32 %s51, 1
        %s379 = scalar_lea.sflag [#allocation5], %s378
        %s380 = sand.u32 %s51, 1
        %s381 = smul.addr %s380, 128
        %s382 = scalar_lea.vmem [#allocation4], %s381
        %p383 = pneg %p64
        %p384 = pneg %p61
        %s385 = sand.u32 %s79, 1
        %s386 = scalar_lea.sflag [#allocation8], %s385
        %s387 = sand.u32 %s79, 1
        %s388 = smul.addr %s387, 32
        %s389 = scalar_lea.vmem [#allocation7], %s388
        %p390 = pneg %p92
        %p391 = pneg %p89
        %p392 = pneg %p113
        %p393 = pneg %p110
        %p394 = pneg %p134
        %p395 = pneg %p131
        %p396 = pneg %p155
        %p397 = pneg %p152
        %p398 = pneg %p176
        %p399 = pneg %p173
        %p400 = pneg %p197
        %p401 = pneg %p194
        %p402 = pneg %p218
        %p403 = pneg %p215
        %p404 = pneg %p239
        %p405 = pneg %p236
        %p406 = pneg %p267
        %p407 = pneg %p264
        %s408 = sand.u32 %s254, 1
        %s409 = scalar_lea.sflag [#allocation6], %s408
        %s410 = sand.u32 %s254, 1
        %s411 = smul.addr %s410, 32
        %s412 = scalar_lea.vmem [#allocation9], %s411
        %s413 = smul.u32 2, %s34
        %s414 = smul.u32 2, %s34
        %s415 = smul.u32 2, %s34
        %v417 = vld [vmem:[%s373] sm:$0xff]
        %v418 = vld [vmem:[%s373 + $0x8] sm:$0xff]
        %v419 = vld [vmem:[%s373 + $0x10] sm:$0xff]
        %v420 = vld [vmem:[%s373 + $0x18] sm:$0xff]
        %v421 = vld [vmem:[%s2] sm:$0xf]
        %v422 = vld [vmem:[%s2 + $0x4] sm:$0xf]
        %v423 = vld [vmem:[%s2 + $0x8] sm:$0xf]
        %v424 = vld [vmem:[%s2 + $0xc] sm:$0xf]
        %v425 = vld [vmem:[%s2 + $0x10] sm:$0xf]
        %v426 = vld [vmem:[%s2 + $0x14] sm:$0xf]
        %v427 = vld [vmem:[%s2 + $0x18] sm:$0xf]
        %v428 = vld [vmem:[%s2 + $0x1c] sm:$0xf]
        %v429 = vpack.c.bf16 %v419, %v417
        %v430 = vpack.c.bf16 %v420, %v418
        %v431 = vld [vmem:[%s4] sm:$0xff]
        %v432 = vld [vmem:[%s4 + $0x8] sm:$0xff]
        %v433 = vld [vmem:[%s4 + $0x10] sm:$0xff]
        %v434 = vld [vmem:[%s4 + $0x18] sm:$0xff]
        %v435 = vld [vmem:[%s4 + $0x20] sm:$0xff]
        %v436 = vld [vmem:[%s4 + $0x28] sm:$0xff]
        %v437 = vld [vmem:[%s4 + $0x30] sm:$0xff]
        %v438 = vld [vmem:[%s4 + $0x38] sm:$0xff]
        %440 = vset.pattern.permute.xlu0 0
        %441 = vperm.xlu0 %440, %v431
        %v442 = vpop.permute.xlu0 %441
        %445 = vset.pattern.permute.xlu0 0
        %446 = vperm.xlu0 %445, %v432
        %v447 = vpop.permute.xlu0 %446
        %450 = vset.pattern.permute.xlu0 0
        %451 = vperm.xlu0 %450, %v433
        %v452 = vpop.permute.xlu0 %451
        %455 = vset.pattern.permute.xlu0 0
        %456 = vperm.xlu0 %455, %v434
        %v457 = vpop.permute.xlu0 %456
        %460 = vset.pattern.permute.xlu0 0
        %461 = vperm.xlu0 %460, %v435
        %v462 = vpop.permute.xlu0 %461
        %465 = vset.pattern.permute.xlu0 0
        %466 = vperm.xlu0 %465, %v436
        %v467 = vpop.permute.xlu0 %466
        %470 = vset.pattern.permute.xlu0 0
        %471 = vperm.xlu0 %470, %v437
        %v472 = vpop.permute.xlu0 %471
        %475 = vset.pattern.permute.xlu0 0
        %476 = vperm.xlu0 %475, %v438
        %v477 = vpop.permute.xlu0 %476
        %v487 = vunpack.c.l.b16 %v421
        %v488 = vunpack.c.l.b16 %v422
        %v489 = vunpack.c.l.b16 %v423
        %v490 = vunpack.c.l.b16 %v424
        %v491 = vunpack.c.l.b16 %v425
        %v492 = vunpack.c.l.b16 %v426
        %v493 = vunpack.c.l.b16 %v427
        %v494 = vunpack.c.l.b16 %v428
        %v495 = vpack.c.b16 %v488, %v487
        %v496 = vpack.c.b16 %v490, %v489
        %v497 = vpack.c.b16 %v492, %v491
        %v498 = vpack.c.b16 %v494, %v493
        %vm499 = vcmask 130048
        %v501 = vsel %vm499, %v495, 0
        %v504 = vsel %vm499, %v496, 0
        %v507 = vsel %vm499, %v497, 0
        %v510 = vsel %vm499, %v498, 0
        %512 = vmatprep.subr.bf16.mxu0 %v430
        %513 = vmatpush1.bf16.msra.mxu0 %v429
        %514 = vmatprep.subr.bf16.mxu0 0
        %515 = vmatpush1.bf16.msra.mxu0 0
        %516 = vmatprep.subr.bf16.mxu0 0
        %517 = vmatpush1.bf16.msra.mxu0 0
        %518 = vmatprep.subr.bf16.mxu0 0
        %519 = vmatpush1.bf16.msra.mxu0 0
        %520 = vmatprep.subr.bf16.mxu0 0
        %521 = vmatpush1.bf16.msra.mxu0 0
        %522 = vmatprep.subr.bf16.mxu0 0
        %523 = vmatpush1.bf16.msra.mxu0 0
        %524 = vmatprep.subr.bf16.mxu0 0
        %525 = vmatpush1.bf16.msra.mxu0 0
        %526 = vmatprep.subr.bf16.mxu0 0
        %527 = vmatpush1.bf16.msra.mxu0 0
        %528 = vmatprep.subr.bf16.mxu0 0
        %529 = vmatpush1.bf16.msra.mxu0 0
        %530 = vmatprep.subr.bf16.mxu0 0
        %531 = vmatpush1.bf16.msra.mxu0 0
        %532 = vmatprep.subr.bf16.mxu0 0
        %533 = vmatpush1.bf16.msra.mxu0 0
        %534 = vmatprep.subr.bf16.mxu0 0
        %535 = vmatpush1.bf16.msra.mxu0 0
        %536 = vmatprep.subr.bf16.mxu0 0
        %537 = vmatpush1.bf16.msra.mxu0 0
        %538 = vmatprep.subr.bf16.mxu0 0
        %539 = vmatpush1.bf16.msra.mxu0 0
        %540 = vmatprep.subr.bf16.mxu0 0
        %541 = vmatpush1.bf16.msra.mxu0 0
        %542 = vmatprep.subr.bf16.mxu0 0
        %543 = vmatpush1.bf16.msra.mxu0 0
        %544 = vmatprep.mubr.bf16.mxu0 0
        %545 = vmatmul.mubr.bf16.gmra.mrb[0].mxu0 %v501
        %v546 = vpop.f32.mrb[0].mxu0
        %v547 = vadd.f32 %v442, %v546
        %v548 = vpop.f32.mrb[0].mxu0
        %v549 = vadd.f32 %v442, %v548
        %v550 = vpop.f32.mrb[0].mxu0
        %v551 = vadd.f32 %v447, %v550
        %v552 = vpop.f32.mrb[0].mxu0
        %v553 = vadd.f32 %v447, %v552
        %554 = vmatprep.mubr.bf16.mxu0 0
        %555 = vmatmul.mubr.bf16.gmra.mrb[0].mxu0 %v504
        %v556 = vpop.f32.mrb[0].mxu0
        %v557 = vadd.f32 %v452, %v556
        %v558 = vpop.f32.mrb[0].mxu0
        %v559 = vadd.f32 %v452, %v558
        %v560 = vpop.f32.mrb[0].mxu0
        %v561 = vadd.f32 %v457, %v560
        %v562 = vpop.f32.mrb[0].mxu0
        %v563 = vadd.f32 %v457, %v562
        %564 = vmatprep.mubr.bf16.mxu0 0
        %565 = vmatmul.mubr.bf16.gmra.mrb[0].mxu0 %v507
        %v566 = vpop.f32.mrb[0].mxu0
        %v567 = vadd.f32 %v462, %v566
        %v568 = vpop.f32.mrb[0].mxu0
        %v569 = vadd.f32 %v462, %v568
        %v570 = vpop.f32.mrb[0].mxu0
        %v571 = vadd.f32 %v467, %v570
        %v572 = vpop.f32.mrb[0].mxu0
        %v573 = vadd.f32 %v467, %v572
        %574 = vmatprep.mubr.bf16.mxu0 0
        %575 = vmatmul.mubr.bf16.gmra.mrb[0].mxu0 %v510
        %v576 = vpop.f32.mrb[0].mxu0
        %v577 = vadd.f32 %v472, %v576
        %v578 = vpop.f32.mrb[0].mxu0
        %v579 = vadd.f32 %v472, %v578
        %v580 = vpop.f32.mrb[0].mxu0
        %v581 = vadd.f32 %v477, %v580
        %v582 = vpop.f32.mrb[0].mxu0
        %v583 = vadd.f32 %v477, %v582
        %584 = vdwg.mxu0
        %v585 = vld [vmem:[%s3] sm:$0xf]
        %v586 = vld [vmem:[%s3 + $0x4] sm:$0xf]
        %v587 = vld [vmem:[%s3 + $0x8] sm:$0xf]
        %v588 = vld [vmem:[%s3 + $0xc] sm:$0xf]
        %v589 = vld [vmem:[%s3 + $0x10] sm:$0xf]
        %v590 = vld [vmem:[%s3 + $0x14] sm:$0xf]
        %v591 = vld [vmem:[%s3 + $0x18] sm:$0xf]
        %v592 = vld [vmem:[%s3 + $0x1c] sm:$0xf]
        %v593 = vld [vmem:[%s364] sm:$0xff]
        %v594 = vld [vmem:[%s364 + $0x8] sm:$0xff]
        %v603 = vunpack.c.l.b16 %v585
        %v604 = vunpack.c.l.b16 %v586
        %v605 = vunpack.c.l.b16 %v587
        %v606 = vunpack.c.l.b16 %v588
        %v607 = vunpack.c.l.b16 %v589
        %v608 = vunpack.c.l.b16 %v590
        %v609 = vunpack.c.l.b16 %v591
        %v610 = vunpack.c.l.b16 %v592
        %v611 = vpack.c.b16 %v604, %v603
        %v612 = vpack.c.b16 %v606, %v605
        %v613 = vpack.c.b16 %v608, %v607
        %v614 = vpack.c.b16 %v610, %v609
        %v617 = vunpack.c.l.b16 %v593
        %v618 = vunpack.c.h.b16 %v593
        %v619 = vunpack.c.l.b16 %v594
        %v620 = vunpack.c.h.b16 %v594
        %v621 = vpack.c.b16 %v619, %v617
        %v622 = vpack.c.b16 %v620, %v618
        %v626 = vsel %vm499, %v611, 0
        %v629 = vsel %vm499, %v612, 0
        %v632 = vsel %vm499, %v613, 0
        %v635 = vsel %vm499, %v614, 0
        %637 = vmatprep.subr.bf16.mxu0 %v622
        %638 = vmatpush1.bf16.msra.mxu0 %v621
        %639 = vmatprep.subr.bf16.mxu0 0
        %640 = vmatpush1.bf16.msra.mxu0 0
        %641 = vmatprep.subr.bf16.mxu0 0
        %642 = vmatpush1.bf16.msra.mxu0 0
        %643 = vmatprep.subr.bf16.mxu0 0
        %644 = vmatpush1.bf16.msra.mxu0 0
        %645 = vmatprep.subr.bf16.mxu0 0
        %646 = vmatpush1.bf16.msra.mxu0 0
        %647 = vmatprep.subr.bf16.mxu0 0
        %648 = vmatpush1.bf16.msra.mxu0 0
        %649 = vmatprep.subr.bf16.mxu0 0
        %650 = vmatpush1.bf16.msra.mxu0 0
        %651 = vmatprep.subr.bf16.mxu0 0
        %652 = vmatpush1.bf16.msra.mxu0 0
        %653 = vmatprep.subr.bf16.mxu0 0
        %654 = vmatpush1.bf16.msra.mxu0 0
        %655 = vmatprep.subr.bf16.mxu0 0
        %656 = vmatpush1.bf16.msra.mxu0 0
        %657 = vmatprep.subr.bf16.mxu0 0
        %658 = vmatpush1.bf16.msra.mxu0 0
        %659 = vmatprep.subr.bf16.mxu0 0
        %660 = vmatpush1.bf16.msra.mxu0 0
        %661 = vmatprep.subr.bf16.mxu0 0
        %662 = vmatpush1.bf16.msra.mxu0 0
        %663 = vmatprep.subr.bf16.mxu0 0
        %664 = vmatpush1.bf16.msra.mxu0 0
        %665 = vmatprep.subr.bf16.mxu0 0
        %666 = vmatpush1.bf16.msra.mxu0 0
        %667 = vmatprep.subr.bf16.mxu0 0
        %668 = vmatpush1.bf16.msra.mxu0 0
        %669 = vmatprep.mubr.bf16.mxu0 0
        %670 = vmatmul.mubr.bf16.gmra.mrb[0].mxu0 %v626
        %v671 = vpop.f32.mrb[0].mxu0
        %v672 = vadd.f32 %v547, %v671
        %v673 = vpop.f32.mrb[0].mxu0
        %v674 = vadd.f32 %v549, %v673
        %v675 = vpop.f32.mrb[0].mxu0
        %v676 = vadd.f32 %v551, %v675
        %v677 = vpop.f32.mrb[0].mxu0
        %v678 = vadd.f32 %v553, %v677
        %679 = vmatprep.mubr.bf16.mxu0 0
        %680 = vmatmul.mubr.bf16.gmra.mrb[0].mxu0 %v629
        %v681 = vpop.f32.mrb[0].mxu0
        %v682 = vadd.f32 %v557, %v681
        %v683 = vpop.f32.mrb[0].mxu0
        %v684 = vadd.f32 %v559, %v683
        %v685 = vpop.f32.mrb[0].mxu0
        %v686 = vadd.f32 %v561, %v685
        %v687 = vpop.f32.mrb[0].mxu0
        %v688 = vadd.f32 %v563, %v687
        %689 = vmatprep.mubr.bf16.mxu0 0
        %690 = vmatmul.mubr.bf16.gmra.mrb[0].mxu0 %v632
        %v691 = vpop.f32.mrb[0].mxu0
        %v692 = vadd.f32 %v567, %v691
        %v693 = vpop.f32.mrb[0].mxu0
        %v694 = vadd.f32 %v569, %v693
        %v695 = vpop.f32.mrb[0].mxu0
        %v696 = vadd.f32 %v571, %v695
        %v697 = vpop.f32.mrb[0].mxu0
        %v698 = vadd.f32 %v573, %v697
        %699 = vmatprep.mubr.bf16.mxu0 0
        %700 = vmatmul.mubr.bf16.gmra.mrb[0].mxu0 %v635
        %v701 = vpop.f32.mrb[0].mxu0
        %v702 = vadd.f32 %v577, %v701
        %v703 = vpop.f32.mrb[0].mxu0
        %v704 = vadd.f32 %v579, %v703
        %v705 = vpop.f32.mrb[0].mxu0
        %v706 = vadd.f32 %v581, %v705
        %v707 = vpop.f32.mrb[0].mxu0
        %v708 = vadd.f32 %v583, %v707
        %709 = vdwg.mxu0
        %v710 = vmax.f32 %v672, 0.0
        %v711 = vmax.f32 %v674, 0.0
        %v712 = vmax.f32 %v676, 0.0
        %v713 = vmax.f32 %v678, 0.0
        %v714 = vmax.f32 %v682, 0.0
        %v715 = vmax.f32 %v684, 0.0
        %v716 = vmax.f32 %v686, 0.0
        %v717 = vmax.f32 %v688, 0.0
        %v718 = vmax.f32 %v692, 0.0
        %v719 = vmax.f32 %v694, 0.0
        %v720 = vmax.f32 %v696, 0.0
        %v721 = vmax.f32 %v698, 0.0
        %v722 = vmax.f32 %v702, 0.0
        %v723 = vmax.f32 %v704, 0.0
        %v724 = vmax.f32 %v706, 0.0
        %v725 = vmax.f32 %v708, 0.0
        %v726 = vpack.c.bf16 %v712, %v710
        %v727 = vpack.c.bf16 %v713, %v711
        %v728 = vpack.c.bf16 %v716, %v714
        %v729 = vpack.c.bf16 %v717, %v715
        %v730 = vpack.c.bf16 %v720, %v718
        %v731 = vpack.c.bf16 %v721, %v719
        %v732 = vpack.c.bf16 %v724, %v722
        %v733 = vpack.c.bf16 %v725, %v723
        %734 = vst [vmem:[#allocation2] sm:$0xff] %v726
        %735 = vst [vmem:[#allocation2 + $0x8] sm:$0xff] %v727
        %736 = vst [vmem:[#allocation2 + $0x80] sm:$0xff] %v728
        %737 = vst [vmem:[#allocation2 + $0x88] sm:$0xff] %v729
        %738 = vst [vmem:[#allocation2 + $0x100] sm:$0xff] %v730
        %739 = vst [vmem:[#allocation2 + $0x108] sm:$0xff] %v731
        %740 = vst [vmem:[#allocation2 + $0x180] sm:$0xff] %v732
        %741 = vst [vmem:[#allocation2 + $0x188] sm:$0xff] %v733
        %v742 = vld [vmem:[%s3] sm:$0xf]
        %v743 = vld [vmem:[%s3 + $0x4] sm:$0xf]
        %v744 = vld [vmem:[%s3 + $0x8] sm:$0xf]
        %v745 = vld [vmem:[%s3 + $0xc] sm:$0xf]
        %v746 = vld [vmem:[%s3 + $0x10] sm:$0xf]
        %v747 = vld [vmem:[%s3 + $0x14] sm:$0xf]
        %v748 = vld [vmem:[%s3 + $0x18] sm:$0xf]
        %v749 = vld [vmem:[%s3 + $0x1c] sm:$0xf]
        %s750 = scalar_lea.vmem %s364, 16 [#allocation4]
        %v751 = vld [vmem:[%s750] sm:$0xff]
        %v752 = vld [vmem:[%s750 + $0x8] sm:$0xff]
        %v761 = vunpack.c.l.b16 %v742
        %v762 = vunpack.c.l.b16 %v743
        %v763 = vunpack.c.l.b16 %v744
        %v764 = vunpack.c.l.b16 %v745
        %v765 = vunpack.c.l.b16 %v746
        %v766 = vunpack.c.l.b16 %v747
        %v767 = vunpack.c.l.b16 %v748
        %v768 = vunpack.c.l.b16 %v749
        %v769 = vpack.c.b16 %v762, %v761
        %v770 = vpack.c.b16 %v764, %v763
        %v771 = vpack.c.b16 %v766, %v765
        %v772 = vpack.c.b16 %v768, %v767
        %v775 = vunpack.c.l.b16 %v751
        %v776 = vunpack.c.h.b16 %v751
        %v777 = vunpack.c.l.b16 %v752
        %v778 = vunpack.c.h.b16 %v752
        %v779 = vpack.c.b16 %v777, %v775
        %v780 = vpack.c.b16 %v778, %v776
        %v784 = vsel %vm499, %v769, 0
        %v787 = vsel %vm499, %v770, 0
        %v790 = vsel %vm499, %v771, 0
        %v793 = vsel %vm499, %v772, 0
        %795 = vmatprep.subr.bf16.mxu0 %v780
        %796 = vmatpush1.bf16.msra.mxu0 %v779
        %797 = vmatprep.subr.bf16.mxu0 0
        %798 = vmatpush1.bf16.msra.mxu0 0
        %799 = vmatprep.subr.bf16.mxu0 0
        %800 = vmatpush1.bf16.msra.mxu0 0
        %801 = vmatprep.subr.bf16.mxu0 0
        %802 = vmatpush1.bf16.msra.mxu0 0
        %803 = vmatprep.subr.bf16.mxu0 0
        %804 = vmatpush1.bf16.msra.mxu0 0
        %805 = vmatprep.subr.bf16.mxu0 0
        %806 = vmatpush1.bf16.msra.mxu0 0
        %807 = vmatprep.subr.bf16.mxu0 0
        %808 = vmatpush1.bf16.msra.mxu0 0
        %809 = vmatprep.subr.bf16.mxu0 0
        %810 = vmatpush1.bf16.msra.mxu0 0
        %811 = vmatprep.subr.bf16.mxu0 0
        %812 = vmatpush1.bf16.msra.mxu0 0
        %813 = vmatprep.subr.bf16.mxu0 0
        %814 = vmatpush1.bf16.msra.mxu0 0
        %815 = vmatprep.subr.bf16.mxu0 0
        %816 = vmatpush1.bf16.msra.mxu0 0
        %817 = vmatprep.subr.bf16.mxu0 0
        %818 = vmatpush1.bf16.msra.mxu0 0
        %819 = vmatprep.subr.bf16.mxu0 0
        %820 = vmatpush1.bf16.msra.mxu0 0
        %821 = vmatprep.subr.bf16.mxu0 0
        %822 = vmatpush1.bf16.msra.mxu0 0
        %823 = vmatprep.subr.bf16.mxu0 0
        %824 = vmatpush1.bf16.msra.mxu0 0
        %825 = vmatprep.subr.bf16.mxu0 0
        %826 = vmatpush1.bf16.msra.mxu0 0
        %827 = vmatprep.mubr.bf16.mxu0 0
        %828 = vmatmul.mubr.bf16.gmra.mrb[0].mxu0 %v784
        %v829 = vpop.f32.mrb[0].mxu0
        %v830 = vadd.f32 %v547, %v829
        %v831 = vpop.f32.mrb[0].mxu0
        %v832 = vadd.f32 %v549, %v831
        %v833 = vpop.f32.mrb[0].mxu0
        %v834 = vadd.f32 %v551, %v833
        %v835 = vpop.f32.mrb[0].mxu0
        %v836 = vadd.f32 %v553, %v835
        %837 = vmatprep.mubr.bf16.mxu0 0
        %838 = vmatmul.mubr.bf16.gmra.mrb[0].mxu0 %v787
        %v839 = vpop.f32.mrb[0].mxu0
        %v840 = vadd.f32 %v557, %v839
        %v841 = vpop.f32.mrb[0].mxu0
        %v842 = vadd.f32 %v559, %v841
        %v843 = vpop.f32.mrb[0].mxu0
        %v844 = vadd.f32 %v561, %v843
        %v845 = vpop.f32.mrb[0].mxu0
        %v846 = vadd.f32 %v563, %v845
        %847 = vmatprep.mubr.bf16.mxu0 0
        %848 = vmatmul.mubr.bf16.gmra.mrb[0].mxu0 %v790
        %v849 = vpop.f32.mrb[0].mxu0
        %v850 = vadd.f32 %v567, %v849
        %v851 = vpop.f32.mrb[0].mxu0
        %v852 = vadd.f32 %v569, %v851
        %v853 = vpop.f32.mrb[0].mxu0
        %v854 = vadd.f32 %v571, %v853
        %v855 = vpop.f32.mrb[0].mxu0
        %v856 = vadd.f32 %v573, %v855
        %857 = vmatprep.mubr.bf16.mxu0 0
        %858 = vmatmul.mubr.bf16.gmra.mrb[0].mxu0 %v793
        %v859 = vpop.f32.mrb[0].mxu0
        %v860 = vadd.f32 %v577, %v859
        %v861 = vpop.f32.mrb[0].mxu0
        %v862 = vadd.f32 %v579, %v861
        %v863 = vpop.f32.mrb[0].mxu0
        %v864 = vadd.f32 %v581, %v863
        %v865 = vpop.f32.mrb[0].mxu0
        %v866 = vadd.f32 %v583, %v865
        %867 = vdwg.mxu0
        %v868 = vmax.f32 %v830, 0.0
        %v869 = vmax.f32 %v832, 0.0
        %v870 = vmax.f32 %v834, 0.0
        %v871 = vmax.f32 %v836, 0.0
        %v872 = vmax.f32 %v840, 0.0
        %v873 = vmax.f32 %v842, 0.0
        %v874 = vmax.f32 %v844, 0.0
        %v875 = vmax.f32 %v846, 0.0
        %v876 = vmax.f32 %v850, 0.0
        %v877 = vmax.f32 %v852, 0.0
        %v878 = vmax.f32 %v854, 0.0
        %v879 = vmax.f32 %v856, 0.0
        %v880 = vmax.f32 %v860, 0.0
        %v881 = vmax.f32 %v862, 0.0
        %v882 = vmax.f32 %v864, 0.0
        %v883 = vmax.f32 %v866, 0.0
        %v884 = vpack.c.bf16 %v870, %v868
        %v885 = vpack.c.bf16 %v871, %v869
        %v886 = vpack.c.bf16 %v874, %v872
        %v887 = vpack.c.bf16 %v875, %v873
        %v888 = vpack.c.bf16 %v878, %v876
        %v889 = vpack.c.bf16 %v879, %v877
        %v890 = vpack.c.bf16 %v882, %v880
        %v891 = vpack.c.bf16 %v883, %v881
        %892 = vst [vmem:[#allocation2 + $0x10] sm:$0xff] %v884
        %893 = vst [vmem:[#allocation2 + $0x18] sm:$0xff] %v885
        %894 = vst [vmem:[#allocation2 + $0x90] sm:$0xff] %v886
        %895 = vst [vmem:[#allocation2 + $0x98] sm:$0xff] %v887
        %896 = vst [vmem:[#allocation2 + $0x110] sm:$0xff] %v888
        %897 = vst [vmem:[#allocation2 + $0x118] sm:$0xff] %v889
        %898 = vst [vmem:[#allocation2 + $0x190] sm:$0xff] %v890
        %899 = vst [vmem:[#allocation2 + $0x198] sm:$0xff] %v891
        %v900 = vld [vmem:[%s3] sm:$0xf]
        %v901 = vld [vmem:[%s3 + $0x4] sm:$0xf]
        %v902 = vld [vmem:[%s3 + $0x8] sm:$0xf]
        %v903 = vld [vmem:[%s3 + $0xc] sm:$0xf]
        %v904 = vld [vmem:[%s3 + $0x10] sm:$0xf]
        %v905 = vld [vmem:[%s3 + $0x14] sm:$0xf]
        %v906 = vld [vmem:[%s3 + $0x18] sm:$0xf]
        %v907 = vld [vmem:[%s3 + $0x1c] sm:$0xf]
        %s908 = scalar_lea.vmem %s364, 32 [#allocation4]
        %v909 = vld [vmem:[%s908] sm:$0xff]
        %v910 = vld [vmem:[%s908 + $0x8] sm:$0xff]
        %v919 = vunpack.c.l.b16 %v900
        %v920 = vunpack.c.l.b16 %v901
        %v921 = vunpack.c.l.b16 %v902
        %v922 = vunpack.c.l.b16 %v903
        %v923 = vunpack.c.l.b16 %v904
        %v924 = vunpack.c.l.b16 %v905
        %v925 = vunpack.c.l.b16 %v906
        %v926 = vunpack.c.l.b16 %v907
        %v927 = vpack.c.b16 %v920, %v919
        %v928 = vpack.c.b16 %v922, %v921
        %v929 = vpack.c.b16 %v924, %v923
        %v930 = vpack.c.b16 %v926, %v925
        %v933 = vunpack.c.l.b16 %v909
        %v934 = vunpack.c.h.b16 %v909
        %v935 = vunpack.c.l.b16 %v910
        %v936 = vunpack.c.h.b16 %v910
        %v937 = vpack.c.b16 %v935, %v933
        %v938 = vpack.c.b16 %v936, %v934
        %v942 = vsel %vm499, %v927, 0
        %v945 = vsel %vm499, %v928, 0
        %v948 = vsel %vm499, %v929, 0
        %v951 = vsel %vm499, %v930, 0
        %953 = vmatprep.subr.bf16.mxu0 %v938
        %954 = vmatpush1.bf16.msra.mxu0 %v937
        %955 = vmatprep.subr.bf16.mxu0 0
        %956 = vmatpush1.bf16.msra.mxu0 0
        %957 = vmatprep.subr.bf16.mxu0 0
        %958 = vmatpush1.bf16.msra.mxu0 0
        %959 = vmatprep.subr.bf16.mxu0 0
        %960 = vmatpush1.bf16.msra.mxu0 0
        %961 = vmatprep.subr.bf16.mxu0 0
        %962 = vmatpush1.bf16.msra.mxu0 0
        %963 = vmatprep.subr.bf16.mxu0 0
        %964 = vmatpush1.bf16.msra.mxu0 0
        %965 = vmatprep.subr.bf16.mxu0 0
        %966 = vmatpush1.bf16.msra.mxu0 0
        %967 = vmatprep.subr.bf16.mxu0 0
        %968 = vmatpush1.bf16.msra.mxu0 0
        %969 = vmatprep.subr.bf16.mxu0 0
        %970 = vmatpush1.bf16.msra.mxu0 0
        %971 = vmatprep.subr.bf16.mxu0 0
        %972 = vmatpush1.bf16.msra.mxu0 0
        %973 = vmatprep.subr.bf16.mxu0 0
        %974 = vmatpush1.bf16.msra.mxu0 0
        %975 = vmatprep.subr.bf16.mxu0 0
        %976 = vmatpush1.bf16.msra.mxu0 0
        %977 = vmatprep.subr.bf16.mxu0 0
        %978 = vmatpush1.bf16.msra.mxu0 0
        %979 = vmatprep.subr.bf16.mxu0 0
        %980 = vmatpush1.bf16.msra.mxu0 0
        %981 = vmatprep.subr.bf16.mxu0 0
        %982 = vmatpush1.bf16.msra.mxu0 0
        %983 = vmatprep.subr.bf16.mxu0 0
        %984 = vmatpush1.bf16.msra.mxu0 0
        %985 = vmatprep.mubr.bf16.mxu0 0
        %986 = vmatmul.mubr.bf16.gmra.mrb[0].mxu0 %v942
        %v987 = vpop.f32.mrb[0].mxu0
        %v988 = vadd.f32 %v547, %v987
        %v989 = vpop.f32.mrb[0].mxu0
        %v990 = vadd.f32 %v549, %v989
        %v991 = vpop.f32.mrb[0].mxu0
        %v992 = vadd.f32 %v551, %v991
        %v993 = vpop.f32.mrb[0].mxu0
        %v994 = vadd.f32 %v553, %v993
        %995 = vmatprep.mubr.bf16.mxu0 0
        %996 = vmatmul.mubr.bf16.gmra.mrb[0].mxu0 %v945
        %v997 = vpop.f32.mrb[0].mxu0
        %v998 = vadd.f32 %v557, %v997
        %v999 = vpop.f32.mrb[0].mxu0
        %v1000 = vadd.f32 %v559, %v999
        %v1001 = vpop.f32.mrb[0].mxu0
        %v1002 = vadd.f32 %v561, %v1001
        %v1003 = vpop.f32.mrb[0].mxu0
        %v1004 = vadd.f32 %v563, %v1003
        %1005 = vmatprep.mubr.bf16.mxu0 0
        %1006 = vmatmul.mubr.bf16.gmra.mrb[0].mxu0 %v948
        %v1007 = vpop.f32.mrb[0].mxu0
        %v1008 = vadd.f32 %v567, %v1007
        %v1009 = vpop.f32.mrb[0].mxu0
        %v1010 = vadd.f32 %v569, %v1009
        %v1011 = vpop.f32.mrb[0].mxu0
        %v1012 = vadd.f32 %v571, %v1011
        %v1013 = vpop.f32.mrb[0].mxu0
        %v1014 = vadd.f32 %v573, %v1013
        %1015 = vmatprep.mubr.bf16.mxu0 0
        %1016 = vmatmul.mubr.bf16.gmra.mrb[0].mxu0 %v951
        %v1017 = vpop.f32.mrb[0].mxu0
        %v1018 = vadd.f32 %v577, %v1017
        %v1019 = vpop.f32.mrb[0].mxu0
        %v1020 = vadd.f32 %v579, %v1019
        %v1021 = vpop.f32.mrb[0].mxu0
        %v1022 = vadd.f32 %v581, %v1021
        %v1023 = vpop.f32.mrb[0].mxu0
        %v1024 = vadd.f32 %v583, %v1023
        %1025 = vdwg.mxu0
        %v1026 = vmax.f32 %v988, 0.0
        %v1027 = vmax.f32 %v990, 0.0
        %v1028 = vmax.f32 %v992, 0.0
        %v1029 = vmax.f32 %v994, 0.0
        %v1030 = vmax.f32 %v998, 0.0
        %v1031 = vmax.f32 %v1000, 0.0
        %v1032 = vmax.f32 %v1002, 0.0
        %v1033 = vmax.f32 %v1004, 0.0
        %v1034 = vmax.f32 %v1008, 0.0
        %v1035 = vmax.f32 %v1010, 0.0
        %v1036 = vmax.f32 %v1012, 0.0
        %v1037 = vmax.f32 %v1014, 0.0
        %v1038 = vmax.f32 %v1018, 0.0
        %v1039 = vmax.f32 %v1020, 0.0
        %v1040 = vmax.f32 %v1022, 0.0
        %v1041 = vmax.f32 %v1024, 0.0
        %v1042 = vpack.c.bf16 %v1028, %v1026
        %v1043 = vpack.c.bf16 %v1029, %v1027
        %v1044 = vpack.c.bf16 %v1032, %v1030
        %v1045 = vpack.c.bf16 %v1033, %v1031
        %v1046 = vpack.c.bf16 %v1036, %v1034
        %v1047 = vpack.c.bf16 %v1037, %v1035
        %v1048 = vpack.c.bf16 %v1040, %v1038
        %v1049 = vpack.c.bf16 %v1041, %v1039
        %1050 = vst [vmem:[#allocation2 + $0x20] sm:$0xff] %v1042
        %1051 = vst [vmem:[#allocation2 + $0x28] sm:$0xff] %v1043
        %1052 = vst [vmem:[#allocation2 + $0xa0] sm:$0xff] %v1044
        %1053 = vst [vmem:[#allocation2 + $0xa8] sm:$0xff] %v1045
        %1054 = vst [vmem:[#allocation2 + $0x120] sm:$0xff] %v1046
        %1055 = vst [vmem:[#allocation2 + $0x128] sm:$0xff] %v1047
        %1056 = vst [vmem:[#allocation2 + $0x1a0] sm:$0xff] %v1048
        %1057 = vst [vmem:[#allocation2 + $0x1a8] sm:$0xff] %v1049
        %v1058 = vld [vmem:[%s3] sm:$0xf]
        %v1059 = vld [vmem:[%s3 + $0x4] sm:$0xf]
        %v1060 = vld [vmem:[%s3 + $0x8] sm:$0xf]
        %v1061 = vld [vmem:[%s3 + $0xc] sm:$0xf]
        %v1062 = vld [vmem:[%s3 + $0x10] sm:$0xf]
        %v1063 = vld [vmem:[%s3 + $0x14] sm:$0xf]
        %v1064 = vld [vmem:[%s3 + $0x18] sm:$0xf]
        %v1065 = vld [vmem:[%s3 + $0x1c] sm:$0xf]
        %s1066 = scalar_lea.vmem %s364, 48 [#allocation4]
        %v1067 = vld [vmem:[%s1066] sm:$0xff]
        %v1068 = vld [vmem:[%s1066 + $0x8] sm:$0xff]
        %v1077 = vunpack.c.l.b16 %v1058
        %v1078 = vunpack.c.l.b16 %v1059
        %v1079 = vunpack.c.l.b16 %v1060
        %v1080 = vunpack.c.l.b16 %v1061
        %v1081 = vunpack.c.l.b16 %v1062
        %v1082 = vunpack.c.l.b16 %v1063
        %v1083 = vunpack.c.l.b16 %v1064
        %v1084 = vunpack.c.l.b16 %v1065
        %v1085 = vpack.c.b16 %v1078, %v1077
        %v1086 = vpack.c.b16 %v1080, %v1079
        %v1087 = vpack.c.b16 %v1082, %v1081
        %v1088 = vpack.c.b16 %v1084, %v1083
        %v1091 = vunpack.c.l.b16 %v1067
        %v1092 = vunpack.c.h.b16 %v1067
        %v1093 = vunpack.c.l.b16 %v1068
        %v1094 = vunpack.c.h.b16 %v1068
        %v1095 = vpack.c.b16 %v1093, %v1091
        %v1096 = vpack.c.b16 %v1094, %v1092
        %v1100 = vsel %vm499, %v1085, 0
        %v1103 = vsel %vm499, %v1086, 0
        %v1106 = vsel %vm499, %v1087, 0
        %v1109 = vsel %vm499, %v1088, 0
        %1111 = vmatprep.subr.bf16.mxu0 %v1096
        %1112 = vmatpush1.bf16.msra.mxu0 %v1095
        %1113 = vmatprep.subr.bf16.mxu0 0
        %1114 = vmatpush1.bf16.msra.mxu0 0
        %1115 = vmatprep.subr.bf16.mxu0 0
        %1116 = vmatpush1.bf16.msra.mxu0 0
        %1117 = vmatprep.subr.bf16.mxu0 0
        %1118 = vmatpush1.bf16.msra.mxu0 0
        %1119 = vmatprep.subr.bf16.mxu0 0
        %1120 = vmatpush1.bf16.msra.mxu0 0
        %1121 = vmatprep.subr.bf16.mxu0 0
        %1122 = vmatpush1.bf16.msra.mxu0 0
        %1123 = vmatprep.subr.bf16.mxu0 0
        %1124 = vmatpush1.bf16.msra.mxu0 0
        %1125 = vmatprep.subr.bf16.mxu0 0
        %1126 = vmatpush1.bf16.msra.mxu0 0
        %1127 = vmatprep.subr.bf16.mxu0 0
        %1128 = vmatpush1.bf16.msra.mxu0 0
        %1129 = vmatprep.subr.bf16.mxu0 0
        %1130 = vmatpush1.bf16.msra.mxu0 0
        %1131 = vmatprep.subr.bf16.mxu0 0
        %1132 = vmatpush1.bf16.msra.mxu0 0
        %1133 = vmatprep.subr.bf16.mxu0 0
        %1134 = vmatpush1.bf16.msra.mxu0 0
        %1135 = vmatprep.subr.bf16.mxu0 0
        %1136 = vmatpush1.bf16.msra.mxu0 0
        %1137 = vmatprep.subr.bf16.mxu0 0
        %1138 = vmatpush1.bf16.msra.mxu0 0
        %1139 = vmatprep.subr.bf16.mxu0 0
        %1140 = vmatpush1.bf16.msra.mxu0 0
        %1141 = vmatprep.subr.bf16.mxu0 0
        %1142 = vmatpush1.bf16.msra.mxu0 0
        %1143 = vmatprep.mubr.bf16.mxu0 0
        %1144 = vmatmul.mubr.bf16.gmra.mrb[0].mxu0 %v1100
        %v1145 = vpop.f32.mrb[0].mxu0
        %v1146 = vadd.f32 %v547, %v1145
        %v1147 = vpop.f32.mrb[0].mxu0
        %v1148 = vadd.f32 %v549, %v1147
        %v1149 = vpop.f32.mrb[0].mxu0
        %v1150 = vadd.f32 %v551, %v1149
        %v1151 = vpop.f32.mrb[0].mxu0
        %v1152 = vadd.f32 %v553, %v1151
        %1153 = vmatprep.mubr.bf16.mxu0 0
        %1154 = vmatmul.mubr.bf16.gmra.mrb[0].mxu0 %v1103
        %v1155 = vpop.f32.mrb[0].mxu0
        %v1156 = vadd.f32 %v557, %v1155
        %v1157 = vpop.f32.mrb[0].mxu0
        %v1158 = vadd.f32 %v559, %v1157
        %v1159 = vpop.f32.mrb[0].mxu0
        %v1160 = vadd.f32 %v561, %v1159
        %v1161 = vpop.f32.mrb[0].mxu0
        %v1162 = vadd.f32 %v563, %v1161
        %1163 = vmatprep.mubr.bf16.mxu0 0
        %1164 = vmatmul.mubr.bf16.gmra.mrb[0].mxu0 %v1106
        %v1165 = vpop.f32.mrb[0].mxu0
        %v1166 = vadd.f32 %v567, %v1165
        %v1167 = vpop.f32.mrb[0].mxu0
        %v1168 = vadd.f32 %v569, %v1167
        %v1169 = vpop.f32.mrb[0].mxu0
        %v1170 = vadd.f32 %v571, %v1169
        %v1171 = vpop.f32.mrb[0].mxu0
        %v1172 = vadd.f32 %v573, %v1171
        %1173 = vmatprep.mubr.bf16.mxu0 0
        %1174 = vmatmul.mubr.bf16.gmra.mrb[0].mxu0 %v1109
        %v1175 = vpop.f32.mrb[0].mxu0
        %v1176 = vadd.f32 %v577, %v1175
        %v1177 = vpop.f32.mrb[0].mxu0
        %v1178 = vadd.f32 %v579, %v1177
        %v1179 = vpop.f32.mrb[0].mxu0
        %v1180 = vadd.f32 %v581, %v1179
        %v1181 = vpop.f32.mrb[0].mxu0
        %v1182 = vadd.f32 %v583, %v1181
        %1183 = vdwg.mxu0
        %v1184 = vmax.f32 %v1146, 0.0
        %v1185 = vmax.f32 %v1148, 0.0
        %v1186 = vmax.f32 %v1150, 0.0
        %v1187 = vmax.f32 %v1152, 0.0
        %v1188 = vmax.f32 %v1156, 0.0
        %v1189 = vmax.f32 %v1158, 0.0
        %v1190 = vmax.f32 %v1160, 0.0
        %v1191 = vmax.f32 %v1162, 0.0
        %v1192 = vmax.f32 %v1166, 0.0
        %v1193 = vmax.f32 %v1168, 0.0
        %v1194 = vmax.f32 %v1170, 0.0
        %v1195 = vmax.f32 %v1172, 0.0
        %v1196 = vmax.f32 %v1176, 0.0
        %v1197 = vmax.f32 %v1178, 0.0
        %v1198 = vmax.f32 %v1180, 0.0
        %v1199 = vmax.f32 %v1182, 0.0
        %v1200 = vpack.c.bf16 %v1186, %v1184
        %v1201 = vpack.c.bf16 %v1187, %v1185
        %v1202 = vpack.c.bf16 %v1190, %v1188
        %v1203 = vpack.c.bf16 %v1191, %v1189
        %v1204 = vpack.c.bf16 %v1194, %v1192
        %v1205 = vpack.c.bf16 %v1195, %v1193
        %v1206 = vpack.c.bf16 %v1198, %v1196
        %v1207 = vpack.c.bf16 %v1199, %v1197
        %1208 = vst [vmem:[#allocation2 + $0x30] sm:$0xff] %v1200
        %1209 = vst [vmem:[#allocation2 + $0x38] sm:$0xff] %v1201
        %1210 = vst [vmem:[#allocation2 + $0xb0] sm:$0xff] %v1202
        %1211 = vst [vmem:[#allocation2 + $0xb8] sm:$0xff] %v1203
        %1212 = vst [vmem:[#allocation2 + $0x130] sm:$0xff] %v1204
        %1213 = vst [vmem:[#allocation2 + $0x138] sm:$0xff] %v1205
        %1214 = vst [vmem:[#allocation2 + $0x1b0] sm:$0xff] %v1206
        %1215 = vst [vmem:[#allocation2 + $0x1b8] sm:$0xff] %v1207
        %v1216 = vld [vmem:[%s3] sm:$0xf]
        %v1217 = vld [vmem:[%s3 + $0x4] sm:$0xf]
        %v1218 = vld [vmem:[%s3 + $0x8] sm:$0xf]
        %v1219 = vld [vmem:[%s3 + $0xc] sm:$0xf]
        %v1220 = vld [vmem:[%s3 + $0x10] sm:$0xf]
        %v1221 = vld [vmem:[%s3 + $0x14] sm:$0xf]
        %v1222 = vld [vmem:[%s3 + $0x18] sm:$0xf]
        %v1223 = vld [vmem:[%s3 + $0x1c] sm:$0xf]
        %s1224 = scalar_lea.vmem %s364, 64 [#allocation4]
        %v1225 = vld [vmem:[%s1224] sm:$0xff]
        %v1226 = vld [vmem:[%s1224 + $0x8] sm:$0xff]
        %v1235 = vunpack.c.l.b16 %v1216
        %v1236 = vunpack.c.l.b16 %v1217
        %v1237 = vunpack.c.l.b16 %v1218
        %v1238 = vunpack.c.l.b16 %v1219
        %v1239 = vunpack.c.l.b16 %v1220
        %v1240 = vunpack.c.l.b16 %v1221
        %v1241 = vunpack.c.l.b16 %v1222
        %v1242 = vunpack.c.l.b16 %v1223
        %v1243 = vpack.c.b16 %v1236, %v1235
        %v1244 = vpack.c.b16 %v1238, %v1237
        %v1245 = vpack.c.b16 %v1240, %v1239
        %v1246 = vpack.c.b16 %v1242, %v1241
        %v1249 = vunpack.c.l.b16 %v1225
        %v1250 = vunpack.c.h.b16 %v1225
        %v1251 = vunpack.c.l.b16 %v1226
        %v1252 = vunpack.c.h.b16 %v1226
        %v1253 = vpack.c.b16 %v1251, %v1249
        %v1254 = vpack.c.b16 %v1252, %v1250
        %v1258 = vsel %vm499, %v1243, 0
        %v1261 = vsel %vm499, %v1244, 0
        %v1264 = vsel %vm499, %v1245, 0
        %v1267 = vsel %vm499, %v1246, 0
        %1269 = vmatprep.subr.bf16.mxu0 %v1254
        %1270 = vmatpush1.bf16.msra.mxu0 %v1253
        %1271 = vmatprep.subr.bf16.mxu0 0
        %1272 = vmatpush1.bf16.msra.mxu0 0
        %1273 = vmatprep.subr.bf16.mxu0 0
        %1274 = vmatpush1.bf16.msra.mxu0 0
        %1275 = vmatprep.subr.bf16.mxu0 0
        %1276 = vmatpush1.bf16.msra.mxu0 0
        %1277 = vmatprep.subr.bf16.mxu0 0
        %1278 = vmatpush1.bf16.msra.mxu0 0
        %1279 = vmatprep.subr.bf16.mxu0 0
        %1280 = vmatpush1.bf16.msra.mxu0 0
        %1281 = vmatprep.subr.bf16.mxu0 0
        %1282 = vmatpush1.bf16.msra.mxu0 0
        %1283 = vmatprep.subr.bf16.mxu0 0
        %1284 = vmatpush1.bf16.msra.mxu0 0
        %1285 = vmatprep.subr.bf16.mxu0 0
        %1286 = vmatpush1.bf16.msra.mxu0 0
        %1287 = vmatprep.subr.bf16.mxu0 0
        %1288 = vmatpush1.bf16.msra.mxu0 0
        %1289 = vmatprep.subr.bf16.mxu0 0
        %1290 = vmatpush1.bf16.msra.mxu0 0
        %1291 = vmatprep.subr.bf16.mxu0 0
        %1292 = vmatpush1.bf16.msra.mxu0 0
        %1293 = vmatprep.subr.bf16.mxu0 0
        %1294 = vmatpush1.bf16.msra.mxu0 0
        %1295 = vmatprep.subr.bf16.mxu0 0
        %1296 = vmatpush1.bf16.msra.mxu0 0
        %1297 = vmatprep.subr.bf16.mxu0 0
        %1298 = vmatpush1.bf16.msra.mxu0 0
        %1299 = vmatprep.subr.bf16.mxu0 0
        %1300 = vmatpush1.bf16.msra.mxu0 0
        %1301 = vmatprep.mubr.bf16.mxu0 0
        %1302 = vmatmul.mubr.bf16.gmra.mrb[0].mxu0 %v1258
        %v1303 = vpop.f32.mrb[0].mxu0
        %v1304 = vadd.f32 %v547, %v1303
        %v1305 = vpop.f32.mrb[0].mxu0
        %v1306 = vadd.f32 %v549, %v1305
        %v1307 = vpop.f32.mrb[0].mxu0
        %v1308 = vadd.f32 %v551, %v1307
        %v1309 = vpop.f32.mrb[0].mxu0
        %v1310 = vadd.f32 %v553, %v1309
        %1311 = vmatprep.mubr.bf16.mxu0 0
        %1312 = vmatmul.mubr.bf16.gmra.mrb[0].mxu0 %v1261
        %v1313 = vpop.f32.mrb[0].mxu0
        %v1314 = vadd.f32 %v557, %v1313
        %v1315 = vpop.f32.mrb[0].mxu0
        %v1316 = vadd.f32 %v559, %v1315
        %v1317 = vpop.f32.mrb[0].mxu0
        %v1318 = vadd.f32 %v561, %v1317
        %v1319 = vpop.f32.mrb[0].mxu0
        %v1320 = vadd.f32 %v563, %v1319
        %1321 = vmatprep.mubr.bf16.mxu0 0
        %1322 = vmatmul.mubr.bf16.gmra.mrb[0].mxu0 %v1264
        %v1323 = vpop.f32.mrb[0].mxu0
        %v1324 = vadd.f32 %v567, %v1323
        %v1325 = vpop.f32.mrb[0].mxu0
        %v1326 = vadd.f32 %v569, %v1325
        %v1327 = vpop.f32.mrb[0].mxu0
        %v1328 = vadd.f32 %v571, %v1327
        %v1329 = vpop.f32.mrb[0].mxu0
        %v1330 = vadd.f32 %v573, %v1329
        %1331 = vmatprep.mubr.bf16.mxu0 0
        %1332 = vmatmul.mubr.bf16.gmra.mrb[0].mxu0 %v1267
        %v1333 = vpop.f32.mrb[0].mxu0
        %v1334 = vadd.f32 %v577, %v1333
        %v1335 = vpop.f32.mrb[0].mxu0
        %v1336 = vadd.f32 %v579, %v1335
        %v1337 = vpop.f32.mrb[0].mxu0
        %v1338 = vadd.f32 %v581, %v1337
        %v1339 = vpop.f32.mrb[0].mxu0
        %v1340 = vadd.f32 %v583, %v1339
        %1341 = vdwg.mxu0
        %v1342 = vmax.f32 %v1304, 0.0
        %v1343 = vmax.f32 %v1306, 0.0
        %v1344 = vmax.f32 %v1308, 0.0
        %v1345 = vmax.f32 %v1310, 0.0
        %v1346 = vmax.f32 %v1314, 0.0
        %v1347 = vmax.f32 %v1316, 0.0
        %v1348 = vmax.f32 %v1318, 0.0
        %v1349 = vmax.f32 %v1320, 0.0
        %v1350 = vmax.f32 %v1324, 0.0
        %v1351 = vmax.f32 %v1326, 0.0
        %v1352 = vmax.f32 %v1328, 0.0
        %v1353 = vmax.f32 %v1330, 0.0
        %v1354 = vmax.f32 %v1334, 0.0
        %v1355 = vmax.f32 %v1336, 0.0
        %v1356 = vmax.f32 %v1338, 0.0
        %v1357 = vmax.f32 %v1340, 0.0
        %v1358 = vpack.c.bf16 %v1344, %v1342
        %v1359 = vpack.c.bf16 %v1345, %v1343
        %v1360 = vpack.c.bf16 %v1348, %v1346
        %v1361 = vpack.c.bf16 %v1349, %v1347
        %v1362 = vpack.c.bf16 %v1352, %v1350
        %v1363 = vpack.c.bf16 %v1353, %v1351
        %v1364 = vpack.c.bf16 %v1356, %v1354
        %v1365 = vpack.c.bf16 %v1357, %v1355
        %1366 = vst [vmem:[#allocation2 + $0x40] sm:$0xff] %v1358
        %1367 = vst [vmem:[#allocation2 + $0x48] sm:$0xff] %v1359
        %1368 = vst [vmem:[#allocation2 + $0xc0] sm:$0xff] %v1360
        %1369 = vst [vmem:[#allocation2 + $0xc8] sm:$0xff] %v1361
        %1370 = vst [vmem:[#allocation2 + $0x140] sm:$0xff] %v1362
        %1371 = vst [vmem:[#allocation2 + $0x148] sm:$0xff] %v1363
        %1372 = vst [vmem:[#allocation2 + $0x1c0] sm:$0xff] %v1364
        %1373 = vst [vmem:[#allocation2 + $0x1c8] sm:$0xff] %v1365
        %v1374 = vld [vmem:[%s3] sm:$0xf]
        %v1375 = vld [vmem:[%s3 + $0x4] sm:$0xf]
        %v1376 = vld [vmem:[%s3 + $0x8] sm:$0xf]
        %v1377 = vld [vmem:[%s3 + $0xc] sm:$0xf]
        %v1378 = vld [vmem:[%s3 + $0x10] sm:$0xf]
        %v1379 = vld [vmem:[%s3 + $0x14] sm:$0xf]
        %v1380 = vld [vmem:[%s3 + $0x18] sm:$0xf]
        %v1381 = vld [vmem:[%s3 + $0x1c] sm:$0xf]
        %s1382 = scalar_lea.vmem %s364, 80 [#allocation4]
        %v1383 = vld [vmem:[%s1382] sm:$0xff]
        %v1384 = vld [vmem:[%s1382 + $0x8] sm:$0xff]
        %v1393 = vunpack.c.l.b16 %v1374
        %v1394 = vunpack.c.l.b16 %v1375
        %v1395 = vunpack.c.l.b16 %v1376
        %v1396 = vunpack.c.l.b16 %v1377
        %v1397 = vunpack.c.l.b16 %v1378
        %v1398 = vunpack.c.l.b16 %v1379
        %v1399 = vunpack.c.l.b16 %v1380
        %v1400 = vunpack.c.l.b16 %v1381
        %v1401 = vpack.c.b16 %v1394, %v1393
        %v1402 = vpack.c.b16 %v1396, %v1395
        %v1403 = vpack.c.b16 %v1398, %v1397
        %v1404 = vpack.c.b16 %v1400, %v1399
        %v1407 = vunpack.c.l.b16 %v1383
        %v1408 = vunpack.c.h.b16 %v1383
        %v1409 = vunpack.c.l.b16 %v1384
        %v1410 = vunpack.c.h.b16 %v1384
        %v1411 = vpack.c.b16 %v1409, %v1407
        %v1412 = vpack.c.b16 %v1410, %v1408
        %v1416 = vsel %vm499, %v1401, 0
        %v1419 = vsel %vm499, %v1402, 0
        %v1422 = vsel %vm499, %v1403, 0
        %v1425 = vsel %vm499, %v1404, 0
        %1427 = vmatprep.subr.bf16.mxu0 %v1412
        %1428 = vmatpush1.bf16.msra.mxu0 %v1411
        %1429 = vmatprep.subr.bf16.mxu0 0
        %1430 = vmatpush1.bf16.msra.mxu0 0
        %1431 = vmatprep.subr.bf16.mxu0 0
        %1432 = vmatpush1.bf16.msra.mxu0 0
        %1433 = vmatprep.subr.bf16.mxu0 0
        %1434 = vmatpush1.bf16.msra.mxu0 0
        %1435 = vmatprep.subr.bf16.mxu0 0
        %1436 = vmatpush1.bf16.msra.mxu0 0
        %1437 = vmatprep.subr.bf16.mxu0 0
        %1438 = vmatpush1.bf16.msra.mxu0 0
        %1439 = vmatprep.subr.bf16.mxu0 0
        %1440 = vmatpush1.bf16.msra.mxu0 0
        %1441 = vmatprep.subr.bf16.mxu0 0
        %1442 = vmatpush1.bf16.msra.mxu0 0
        %1443 = vmatprep.subr.bf16.mxu0 0
        %1444 = vmatpush1.bf16.msra.mxu0 0
        %1445 = vmatprep.subr.bf16.mxu0 0
        %1446 = vmatpush1.bf16.msra.mxu0 0
        %1447 = vmatprep.subr.bf16.mxu0 0
        %1448 = vmatpush1.bf16.msra.mxu0 0
        %1449 = vmatprep.subr.bf16.mxu0 0
        %1450 = vmatpush1.bf16.msra.mxu0 0
        %1451 = vmatprep.subr.bf16.mxu0 0
        %1452 = vmatpush1.bf16.msra.mxu0 0
        %1453 = vmatprep.subr.bf16.mxu0 0
        %1454 = vmatpush1.bf16.msra.mxu0 0
        %1455 = vmatprep.subr.bf16.mxu0 0
        %1456 = vmatpush1.bf16.msra.mxu0 0
        %1457 = vmatprep.subr.bf16.mxu0 0
        %1458 = vmatpush1.bf16.msra.mxu0 0
        %1459 = vmatprep.mubr.bf16.mxu0 0
        %1460 = vmatmul.mubr.bf16.gmra.mrb[0].mxu0 %v1416
        %v1461 = vpop.f32.mrb[0].mxu0
        %v1462 = vadd.f32 %v547, %v1461
        %v1463 = vpop.f32.mrb[0].mxu0
        %v1464 = vadd.f32 %v549, %v1463
        %v1465 = vpop.f32.mrb[0].mxu0
        %v1466 = vadd.f32 %v551, %v1465
        %v1467 = vpop.f32.mrb[0].mxu0
        %v1468 = vadd.f32 %v553, %v1467
        %1469 = vmatprep.mubr.bf16.mxu0 0
        %1470 = vmatmul.mubr.bf16.gmra.mrb[0].mxu0 %v1419
        %v1471 = vpop.f32.mrb[0].mxu0
        %v1472 = vadd.f32 %v557, %v1471
        %v1473 = vpop.f32.mrb[0].mxu0
        %v1474 = vadd.f32 %v559, %v1473
        %v1475 = vpop.f32.mrb[0].mxu0
        %v1476 = vadd.f32 %v561, %v1475
        %v1477 = vpop.f32.mrb[0].mxu0
        %v1478 = vadd.f32 %v563, %v1477
        %1479 = vmatprep.mubr.bf16.mxu0 0
        %1480 = vmatmul.mubr.bf16.gmra.mrb[0].mxu0 %v1422
        %v1481 = vpop.f32.mrb[0].mxu0
        %v1482 = vadd.f32 %v567, %v1481
        %v1483 = vpop.f32.mrb[0].mxu0
        %v1484 = vadd.f32 %v569, %v1483
        %v1485 = vpop.f32.mrb[0].mxu0
        %v1486 = vadd.f32 %v571, %v1485
        %v1487 = vpop.f32.mrb[0].mxu0
        %v1488 = vadd.f32 %v573, %v1487
        %1489 = vmatprep.mubr.bf16.mxu0 0
        %1490 = vmatmul.mubr.bf16.gmra.mrb[0].mxu0 %v1425
        %v1491 = vpop.f32.mrb[0].mxu0
        %v1492 = vadd.f32 %v577, %v1491
        %v1493 = vpop.f32.mrb[0].mxu0
        %v1494 = vadd.f32 %v579, %v1493
        %v1495 = vpop.f32.mrb[0].mxu0
        %v1496 = vadd.f32 %v581, %v1495
        %v1497 = vpop.f32.mrb[0].mxu0
        %v1498 = vadd.f32 %v583, %v1497
        %1499 = vdwg.mxu0
        %v1500 = vmax.f32 %v1462, 0.0
        %v1501 = vmax.f32 %v1464, 0.0
        %v1502 = vmax.f32 %v1466, 0.0
        %v1503 = vmax.f32 %v1468, 0.0
        %v1504 = vmax.f32 %v1472, 0.0
        %v1505 = vmax.f32 %v1474, 0.0
        %v1506 = vmax.f32 %v1476, 0.0
        %v1507 = vmax.f32 %v1478, 0.0
        %v1508 = vmax.f32 %v1482, 0.0
        %v1509 = vmax.f32 %v1484, 0.0
        %v1510 = vmax.f32 %v1486, 0.0
        %v1511 = vmax.f32 %v1488, 0.0
        %v1512 = vmax.f32 %v1492, 0.0
        %v1513 = vmax.f32 %v1494, 0.0
        %v1514 = vmax.f32 %v1496, 0.0
        %v1515 = vmax.f32 %v1498, 0.0
        %v1516 = vpack.c.bf16 %v1502, %v1500
        %v1517 = vpack.c.bf16 %v1503, %v1501
        %v1518 = vpack.c.bf16 %v1506, %v1504
        %v1519 = vpack.c.bf16 %v1507, %v1505
        %v1520 = vpack.c.bf16 %v1510, %v1508
        %v1521 = vpack.c.bf16 %v1511, %v1509
        %v1522 = vpack.c.bf16 %v1514, %v1512
        %v1523 = vpack.c.bf16 %v1515, %v1513
        %1524 = vst [vmem:[#allocation2 + $0x50] sm:$0xff] %v1516
        %1525 = vst [vmem:[#allocation2 + $0x58] sm:$0xff] %v1517
        %1526 = vst [vmem:[#allocation2 + $0xd0] sm:$0xff] %v1518
        %1527 = vst [vmem:[#allocation2 + $0xd8] sm:$0xff] %v1519
        %1528 = vst [vmem:[#allocation2 + $0x150] sm:$0xff] %v1520
        %1529 = vst [vmem:[#allocation2 + $0x158] sm:$0xff] %v1521
        %1530 = vst [vmem:[#allocation2 + $0x1d0] sm:$0xff] %v1522
        %1531 = vst [vmem:[#allocation2 + $0x1d8] sm:$0xff] %v1523
        %v1532 = vld [vmem:[%s3] sm:$0xf]
        %v1533 = vld [vmem:[%s3 + $0x4] sm:$0xf]
        %v1534 = vld [vmem:[%s3 + $0x8] sm:$0xf]
        %v1535 = vld [vmem:[%s3 + $0xc] sm:$0xf]
        %v1536 = vld [vmem:[%s3 + $0x10] sm:$0xf]
        %v1537 = vld [vmem:[%s3 + $0x14] sm:$0xf]
        %v1538 = vld [vmem:[%s3 + $0x18] sm:$0xf]
        %v1539 = vld [vmem:[%s3 + $0x1c] sm:$0xf]
        %s1540 = scalar_lea.vmem %s364, 96 [#allocation4]
        %v1541 = vld [vmem:[%s1540] sm:$0xff]
        %v1542 = vld [vmem:[%s1540 + $0x8] sm:$0xff]
        %v1551 = vunpack.c.l.b16 %v1532
        %v1552 = vunpack.c.l.b16 %v1533
        %v1553 = vunpack.c.l.b16 %v1534
        %v1554 = vunpack.c.l.b16 %v1535
        %v1555 = vunpack.c.l.b16 %v1536
        %v1556 = vunpack.c.l.b16 %v1537
        %v1557 = vunpack.c.l.b16 %v1538
        %v1558 = vunpack.c.l.b16 %v1539
        %v1559 = vpack.c.b16 %v1552, %v1551
        %v1560 = vpack.c.b16 %v1554, %v1553
        %v1561 = vpack.c.b16 %v1556, %v1555
        %v1562 = vpack.c.b16 %v1558, %v1557
        %v1565 = vunpack.c.l.b16 %v1541
        %v1566 = vunpack.c.h.b16 %v1541
        %v1567 = vunpack.c.l.b16 %v1542
        %v1568 = vunpack.c.h.b16 %v1542
        %v1569 = vpack.c.b16 %v1567, %v1565
        %v1570 = vpack.c.b16 %v1568, %v1566
        %v1574 = vsel %vm499, %v1559, 0
        %v1577 = vsel %vm499, %v1560, 0
        %v1580 = vsel %vm499, %v1561, 0
        %v1583 = vsel %vm499, %v1562, 0
        %1585 = vmatprep.subr.bf16.mxu0 %v1570
        %1586 = vmatpush1.bf16.msra.mxu0 %v1569
        %1587 = vmatprep.subr.bf16.mxu0 0
        %1588 = vmatpush1.bf16.msra.mxu0 0
        %1589 = vmatprep.subr.bf16.mxu0 0
        %1590 = vmatpush1.bf16.msra.mxu0 0
        %1591 = vmatprep.subr.bf16.mxu0 0
        %1592 = vmatpush1.bf16.msra.mxu0 0
        %1593 = vmatprep.subr.bf16.mxu0 0
        %1594 = vmatpush1.bf16.msra.mxu0 0
        %1595 = vmatprep.subr.bf16.mxu0 0
        %1596 = vmatpush1.bf16.msra.mxu0 0
        %1597 = vmatprep.subr.bf16.mxu0 0
        %1598 = vmatpush1.bf16.msra.mxu0 0
        %1599 = vmatprep.subr.bf16.mxu0 0
        %1600 = vmatpush1.bf16.msra.mxu0 0
        %1601 = vmatprep.subr.bf16.mxu0 0
        %1602 = vmatpush1.bf16.msra.mxu0 0
        %1603 = vmatprep.subr.bf16.mxu0 0
        %1604 = vmatpush1.bf16.msra.mxu0 0
        %1605 = vmatprep.subr.bf16.mxu0 0
        %1606 = vmatpush1.bf16.msra.mxu0 0
        %1607 = vmatprep.subr.bf16.mxu0 0
        %1608 = vmatpush1.bf16.msra.mxu0 0
        %1609 = vmatprep.subr.bf16.mxu0 0
        %1610 = vmatpush1.bf16.msra.mxu0 0
        %1611 = vmatprep.subr.bf16.mxu0 0
        %1612 = vmatpush1.bf16.msra.mxu0 0
        %1613 = vmatprep.subr.bf16.mxu0 0
        %1614 = vmatpush1.bf16.msra.mxu0 0
        %1615 = vmatprep.subr.bf16.mxu0 0
        %1616 = vmatpush1.bf16.msra.mxu0 0
        %1617 = vmatprep.mubr.bf16.mxu0 0
        %1618 = vmatmul.mubr.bf16.gmra.mrb[0].mxu0 %v1574
        %v1619 = vpop.f32.mrb[0].mxu0
        %v1620 = vadd.f32 %v547, %v1619
        %v1621 = vpop.f32.mrb[0].mxu0
        %v1622 = vadd.f32 %v549, %v1621
        %v1623 = vpop.f32.mrb[0].mxu0
        %v1624 = vadd.f32 %v551, %v1623
        %v1625 = vpop.f32.mrb[0].mxu0
        %v1626 = vadd.f32 %v553, %v1625
        %1627 = vmatprep.mubr.bf16.mxu0 0
        %1628 = vmatmul.mubr.bf16.gmra.mrb[0].mxu0 %v1577
        %v1629 = vpop.f32.mrb[0].mxu0
        %v1630 = vadd.f32 %v557, %v1629
        %v1631 = vpop.f32.mrb[0].mxu0
        %v1632 = vadd.f32 %v559, %v1631
        %v1633 = vpop.f32.mrb[0].mxu0
        %v1634 = vadd.f32 %v561, %v1633
        %v1635 = vpop.f32.mrb[0].mxu0
        %v1636 = vadd.f32 %v563, %v1635
        %1637 = vmatprep.mubr.bf16.mxu0 0
        %1638 = vmatmul.mubr.bf16.gmra.mrb[0].mxu0 %v1580
        %v1639 = vpop.f32.mrb[0].mxu0
        %v1640 = vadd.f32 %v567, %v1639
        %v1641 = vpop.f32.mrb[0].mxu0
        %v1642 = vadd.f32 %v569, %v1641
        %v1643 = vpop.f32.mrb[0].mxu0
        %v1644 = vadd.f32 %v571, %v1643
        %v1645 = vpop.f32.mrb[0].mxu0
        %v1646 = vadd.f32 %v573, %v1645
        %1647 = vmatprep.mubr.bf16.mxu0 0
        %1648 = vmatmul.mubr.bf16.gmra.mrb[0].mxu0 %v1583
        %v1649 = vpop.f32.mrb[0].mxu0
        %v1650 = vadd.f32 %v577, %v1649
        %v1651 = vpop.f32.mrb[0].mxu0
        %v1652 = vadd.f32 %v579, %v1651
        %v1653 = vpop.f32.mrb[0].mxu0
        %v1654 = vadd.f32 %v581, %v1653
        %v1655 = vpop.f32.mrb[0].mxu0
        %v1656 = vadd.f32 %v583, %v1655
        %1657 = vdwg.mxu0
        %v1658 = vmax.f32 %v1620, 0.0
        %v1659 = vmax.f32 %v1622, 0.0
        %v1660 = vmax.f32 %v1624, 0.0
        %v1661 = vmax.f32 %v1626, 0.0
        %v1662 = vmax.f32 %v1630, 0.0
        %v1663 = vmax.f32 %v1632, 0.0
        %v1664 = vmax.f32 %v1634, 0.0
        %v1665 = vmax.f32 %v1636, 0.0
        %v1666 = vmax.f32 %v1640, 0.0
        %v1667 = vmax.f32 %v1642, 0.0
        %v1668 = vmax.f32 %v1644, 0.0
        %v1669 = vmax.f32 %v1646, 0.0
        %v1670 = vmax.f32 %v1650, 0.0
        %v1671 = vmax.f32 %v1652, 0.0
        %v1672 = vmax.f32 %v1654, 0.0
        %v1673 = vmax.f32 %v1656, 0.0
        %v1674 = vpack.c.bf16 %v1660, %v1658
        %v1675 = vpack.c.bf16 %v1661, %v1659
        %v1676 = vpack.c.bf16 %v1664, %v1662
        %v1677 = vpack.c.bf16 %v1665, %v1663
        %v1678 = vpack.c.bf16 %v1668, %v1666
        %v1679 = vpack.c.bf16 %v1669, %v1667
        %v1680 = vpack.c.bf16 %v1672, %v1670
        %v1681 = vpack.c.bf16 %v1673, %v1671
        %1682 = vst [vmem:[#allocation2 + $0x60] sm:$0xff] %v1674
        %1683 = vst [vmem:[#allocation2 + $0x68] sm:$0xff] %v1675
        %1684 = vst [vmem:[#allocation2 + $0xe0] sm:$0xff] %v1676
        %1685 = vst [vmem:[#allocation2 + $0xe8] sm:$0xff] %v1677
        %1686 = vst [vmem:[#allocation2 + $0x160] sm:$0xff] %v1678
        %1687 = vst [vmem:[#allocation2 + $0x168] sm:$0xff] %v1679
        %1688 = vst [vmem:[#allocation2 + $0x1e0] sm:$0xff] %v1680
        %1689 = vst [vmem:[#allocation2 + $0x1e8] sm:$0xff] %v1681
        %v1690 = vld [vmem:[%s3] sm:$0xf]
        %v1691 = vld [vmem:[%s3 + $0x4] sm:$0xf]
        %v1692 = vld [vmem:[%s3 + $0x8] sm:$0xf]
        %v1693 = vld [vmem:[%s3 + $0xc] sm:$0xf]
        %v1694 = vld [vmem:[%s3 + $0x10] sm:$0xf]
        %v1695 = vld [vmem:[%s3 + $0x14] sm:$0xf]
        %v1696 = vld [vmem:[%s3 + $0x18] sm:$0xf]
        %v1697 = vld [vmem:[%s3 + $0x1c] sm:$0xf]
        %s1698 = scalar_lea.vmem %s364, 112 [#allocation4]
        %v1699 = vld [vmem:[%s1698] sm:$0xff]
        %v1700 = vld [vmem:[%s1698 + $0x8] sm:$0xff]
        %v1709 = vunpack.c.l.b16 %v1690
        %v1710 = vunpack.c.l.b16 %v1691
        %v1711 = vunpack.c.l.b16 %v1692
        %v1712 = vunpack.c.l.b16 %v1693
        %v1713 = vunpack.c.l.b16 %v1694
        %v1714 = vunpack.c.l.b16 %v1695
        %v1715 = vunpack.c.l.b16 %v1696
        %v1716 = vunpack.c.l.b16 %v1697
        %v1717 = vpack.c.b16 %v1710, %v1709
        %v1718 = vpack.c.b16 %v1712, %v1711
        %v1719 = vpack.c.b16 %v1714, %v1713
        %v1720 = vpack.c.b16 %v1716, %v1715
        %v1723 = vunpack.c.l.b16 %v1699
        %v1724 = vunpack.c.h.b16 %v1699
        %v1725 = vunpack.c.l.b16 %v1700
        %v1726 = vunpack.c.h.b16 %v1700
        %v1727 = vpack.c.b16 %v1725, %v1723
        %v1728 = vpack.c.b16 %v1726, %v1724
        %v1732 = vsel %vm499, %v1717, 0
        %v1735 = vsel %vm499, %v1718, 0
        %v1738 = vsel %vm499, %v1719, 0
        %v1741 = vsel %vm499, %v1720, 0
        %1743 = vmatprep.subr.bf16.mxu0 %v1728
        %1744 = vmatpush1.bf16.msra.mxu0 %v1727
        %1745 = vmatprep.subr.bf16.mxu0 0
        %1746 = vmatpush1.bf16.msra.mxu0 0
        %1747 = vmatprep.subr.bf16.mxu0 0
        %1748 = vmatpush1.bf16.msra.mxu0 0
        %1749 = vmatprep.subr.bf16.mxu0 0
        %1750 = vmatpush1.bf16.msra.mxu0 0
        %1751 = vmatprep.subr.bf16.mxu0 0
        %1752 = vmatpush1.bf16.msra.mxu0 0
        %1753 = vmatprep.subr.bf16.mxu0 0
        %1754 = vmatpush1.bf16.msra.mxu0 0
        %1755 = vmatprep.subr.bf16.mxu0 0
        %1756 = vmatpush1.bf16.msra.mxu0 0
        %1757 = vmatprep.subr.bf16.mxu0 0
        %1758 = vmatpush1.bf16.msra.mxu0 0
        %1759 = vmatprep.subr.bf16.mxu0 0
        %1760 = vmatpush1.bf16.msra.mxu0 0
        %1761 = vmatprep.subr.bf16.mxu0 0
        %1762 = vmatpush1.bf16.msra.mxu0 0
        %1763 = vmatprep.subr.bf16.mxu0 0
        %1764 = vmatpush1.bf16.msra.mxu0 0
        %1765 = vmatprep.subr.bf16.mxu0 0
        %1766 = vmatpush1.bf16.msra.mxu0 0
        %1767 = vmatprep.subr.bf16.mxu0 0
        %1768 = vmatpush1.bf16.msra.mxu0 0
        %1769 = vmatprep.subr.bf16.mxu0 0
        %1770 = vmatpush1.bf16.msra.mxu0 0
        %1771 = vmatprep.subr.bf16.mxu0 0
        %1772 = vmatpush1.bf16.msra.mxu0 0
        %1773 = vmatprep.subr.bf16.mxu0 0
        %1774 = vmatpush1.bf16.msra.mxu0 0
        %1775 = vmatprep.mubr.bf16.mxu0 0
        %1776 = vmatmul.mubr.bf16.gmra.mrb[0].mxu0 %v1732
        %v1777 = vpop.f32.mrb[0].mxu0
        %v1778 = vadd.f32 %v547, %v1777
        %v1779 = vpop.f32.mrb[0].mxu0
        %v1780 = vadd.f32 %v549, %v1779
        %v1781 = vpop.f32.mrb[0].mxu0
        %v1782 = vadd.f32 %v551, %v1781
        %v1783 = vpop.f32.mrb[0].mxu0
        %v1784 = vadd.f32 %v553, %v1783
        %1785 = vmatprep.mubr.bf16.mxu0 0
        %1786 = vmatmul.mubr.bf16.gmra.mrb[0].mxu0 %v1735
        %v1787 = vpop.f32.mrb[0].mxu0
        %v1788 = vadd.f32 %v557, %v1787
        %v1789 = vpop.f32.mrb[0].mxu0
        %v1790 = vadd.f32 %v559, %v1789
        %v1791 = vpop.f32.mrb[0].mxu0
        %v1792 = vadd.f32 %v561, %v1791
        %v1793 = vpop.f32.mrb[0].mxu0
        %v1794 = vadd.f32 %v563, %v1793
        %1795 = vmatprep.mubr.bf16.mxu0 0
        %1796 = vmatmul.mubr.bf16.gmra.mrb[0].mxu0 %v1738
        %v1797 = vpop.f32.mrb[0].mxu0
        %v1798 = vadd.f32 %v567, %v1797
        %v1799 = vpop.f32.mrb[0].mxu0
        %v1800 = vadd.f32 %v569, %v1799
        %v1801 = vpop.f32.mrb[0].mxu0
        %v1802 = vadd.f32 %v571, %v1801
        %v1803 = vpop.f32.mrb[0].mxu0
        %v1804 = vadd.f32 %v573, %v1803
        %1805 = vmatprep.mubr.bf16.mxu0 0
        %1806 = vmatmul.mubr.bf16.gmra.mrb[0].mxu0 %v1741
        %v1807 = vpop.f32.mrb[0].mxu0
        %v1808 = vadd.f32 %v577, %v1807
        %v1809 = vpop.f32.mrb[0].mxu0
        %v1810 = vadd.f32 %v579, %v1809
        %v1811 = vpop.f32.mrb[0].mxu0
        %v1812 = vadd.f32 %v581, %v1811
        %v1813 = vpop.f32.mrb[0].mxu0
        %v1814 = vadd.f32 %v583, %v1813
        %1815 = vdwg.mxu0
        %v1816 = vmax.f32 %v1778, 0.0
        %v1817 = vmax.f32 %v1780, 0.0
        %v1818 = vmax.f32 %v1782, 0.0
        %v1819 = vmax.f32 %v1784, 0.0
        %v1820 = vmax.f32 %v1788, 0.0
        %v1821 = vmax.f32 %v1790, 0.0
        %v1822 = vmax.f32 %v1792, 0.0
        %v1823 = vmax.f32 %v1794, 0.0
        %v1824 = vmax.f32 %v1798, 0.0
        %v1825 = vmax.f32 %v1800, 0.0
        %v1826 = vmax.f32 %v1802, 0.0
        %v1827 = vmax.f32 %v1804, 0.0
        %v1828 = vmax.f32 %v1808, 0.0
        %v1829 = vmax.f32 %v1810, 0.0
        %v1830 = vmax.f32 %v1812, 0.0
        %v1831 = vmax.f32 %v1814, 0.0
        %v1832 = vpack.c.bf16 %v1818, %v1816
        %v1833 = vpack.c.bf16 %v1819, %v1817
        %v1834 = vpack.c.bf16 %v1822, %v1820
        %v1835 = vpack.c.bf16 %v1823, %v1821
        %v1836 = vpack.c.bf16 %v1826, %v1824
        %v1837 = vpack.c.bf16 %v1827, %v1825
        %v1838 = vpack.c.bf16 %v1830, %v1828
        %v1839 = vpack.c.bf16 %v1831, %v1829
        %1840 = vst [vmem:[#allocation2 + $0x70] sm:$0xff] %v1832
        %1841 = vst [vmem:[#allocation2 + $0x78] sm:$0xff] %v1833
        %1842 = vst [vmem:[#allocation2 + $0xf0] sm:$0xff] %v1834
        %1843 = vst [vmem:[#allocation2 + $0xf8] sm:$0xff] %v1835
        %1844 = vst [vmem:[#allocation2 + $0x170] sm:$0xff] %v1836
        %1845 = vst [vmem:[#allocation2 + $0x178] sm:$0xff] %v1837
        %1846 = vst [vmem:[#allocation2 + $0x1f0] sm:$0xff] %v1838
        %1847 = vst [vmem:[#allocation2 + $0x1f8] sm:$0xff] %v1839
        %v1848 = vld [vmem:[%s5] sm:$0xf]
        %v1849 = vld [vmem:[%s5 + $0x4] sm:$0xf]
        %v1850 = vld [vmem:[%s5 + $0x8] sm:$0xf]
        %v1851 = vld [vmem:[%s5 + $0xc] sm:$0xf]
        %v1852 = vld [vmem:[%s5 + $0x10] sm:$0xf]
        %v1853 = vld [vmem:[%s5 + $0x14] sm:$0xf]
        %v1854 = vld [vmem:[%s5 + $0x18] sm:$0xf]
        %v1855 = vld [vmem:[%s5 + $0x1c] sm:$0xf]
        %v1856 = vld [vmem:[#allocation2] sm:$0xff]
        %v1857 = vld [vmem:[#allocation2 + $0x8] sm:$0xff]
        %v1858 = vld [vmem:[#allocation2 + $0x10] sm:$0xff]
        %v1859 = vld [vmem:[#allocation2 + $0x18] sm:$0xff]
        %v1860 = vld [vmem:[#allocation2 + $0x20] sm:$0xff]
        %v1861 = vld [vmem:[#allocation2 + $0x28] sm:$0xff]
        %v1862 = vld [vmem:[#allocation2 + $0x30] sm:$0xff]
        %v1863 = vld [vmem:[#allocation2 + $0x38] sm:$0xff]
        %v1864 = vld [vmem:[#allocation2 + $0x40] sm:$0xff]
        %v1865 = vld [vmem:[#allocation2 + $0x48] sm:$0xff]
        %v1866 = vld [vmem:[#allocation2 + $0x50] sm:$0xff]
        %v1867 = vld [vmem:[#allocation2 + $0x58] sm:$0xff]
        %v1868 = vld [vmem:[#allocation2 + $0x60] sm:$0xff]
        %v1869 = vld [vmem:[#allocation2 + $0x68] sm:$0xff]
        %v1870 = vld [vmem:[#allocation2 + $0x70] sm:$0xff]
        %v1871 = vld [vmem:[#allocation2 + $0x78] sm:$0xff]
        %v1872 = vld [vmem:[#allocation2 + $0x80] sm:$0xff]
        %v1873 = vld [vmem:[#allocation2 + $0x88] sm:$0xff]
        %v1874 = vld [vmem:[#allocation2 + $0x90] sm:$0xff]
        %v1875 = vld [vmem:[#allocation2 + $0x98] sm:$0xff]
        %v1876 = vld [vmem:[#allocation2 + $0xa0] sm:$0xff]
        %v1877 = vld [vmem:[#allocation2 + $0xa8] sm:$0xff]
        %v1878 = vld [vmem:[#allocation2 + $0xb0] sm:$0xff]
        %v1879 = vld [vmem:[#allocation2 + $0xb8] sm:$0xff]
        %v1880 = vld [vmem:[#allocation2 + $0xc0] sm:$0xff]
        %v1881 = vld [vmem:[#allocation2 + $0xc8] sm:$0xff]
        %v1882 = vld [vmem:[#allocation2 + $0xd0] sm:$0xff]
        %v1883 = vld [vmem:[#allocation2 + $0xd8] sm:$0xff]
        %v1884 = vld [vmem:[#allocation2 + $0xe0] sm:$0xff]
        %v1885 = vld [vmem:[#allocation2 + $0xe8] sm:$0xff]
        %v1886 = vld [vmem:[#allocation2 + $0xf0] sm:$0xff]
        %v1887 = vld [vmem:[#allocation2 + $0xf8] sm:$0xff]
        %v1888 = vld [vmem:[#allocation2 + $0x100] sm:$0xff]
        %v1889 = vld [vmem:[#allocation2 + $0x108] sm:$0xff]
        %v1890 = vld [vmem:[#allocation2 + $0x110] sm:$0xff]
        %v1891 = vld [vmem:[#allocation2 + $0x118] sm:$0xff]
        %v1892 = vld [vmem:[#allocation2 + $0x120] sm:$0xff]
        %v1893 = vld [vmem:[#allocation2 + $0x128] sm:$0xff]
        %v1894 = vld [vmem:[#allocation2 + $0x130] sm:$0xff]
        %v1895 = vld [vmem:[#allocation2 + $0x138] sm:$0xff]
        %v1896 = vld [vmem:[#allocation2 + $0x140] sm:$0xff]
        %v1897 = vld [vmem:[#allocation2 + $0x148] sm:$0xff]
        %v1898 = vld [vmem:[#allocation2 + $0x150] sm:$0xff]
        %v1899 = vld [vmem:[#allocation2 + $0x158] sm:$0xff]
        %v1900 = vld [vmem:[#allocation2 + $0x160] sm:$0xff]
        %v1901 = vld [vmem:[#allocation2 + $0x168] sm:$0xff]
        %v1902 = vld [vmem:[#allocation2 + $0x170] sm:$0xff]
        %v1903 = vld [vmem:[#allocation2 + $0x178] sm:$0xff]
        %v1904 = vld [vmem:[#allocation2 + $0x180] sm:$0xff]
        %v1905 = vld [vmem:[#allocation2 + $0x188] sm:$0xff]
        %v1906 = vld [vmem:[#allocation2 + $0x190] sm:$0xff]
        %v1907 = vld [vmem:[#allocation2 + $0x198] sm:$0xff]
        %v1908 = vld [vmem:[#allocation2 + $0x1a0] sm:$0xff]
        %v1909 = vld [vmem:[#allocation2 + $0x1a8] sm:$0xff]
        %v1910 = vld [vmem:[#allocation2 + $0x1b0] sm:$0xff]
        %v1911 = vld [vmem:[#allocation2 + $0x1b8] sm:$0xff]
        %v1912 = vld [vmem:[#allocation2 + $0x1c0] sm:$0xff]
        %v1913 = vld [vmem:[#allocation2 + $0x1c8] sm:$0xff]
        %v1914 = vld [vmem:[#allocation2 + $0x1d0] sm:$0xff]
        %v1915 = vld [vmem:[#allocation2 + $0x1d8] sm:$0xff]
        %v1916 = vld [vmem:[#allocation2 + $0x1e0] sm:$0xff]
        %v1917 = vld [vmem:[#allocation2 + $0x1e8] sm:$0xff]
        %v1918 = vld [vmem:[#allocation2 + $0x1f0] sm:$0xff]
        %v1919 = vld [vmem:[#allocation2 + $0x1f8] sm:$0xff]
        %v1920 = vld [vmem:[%s6] sm:$0xff]
        %v1921 = vld [vmem:[%s6 + $0x8] sm:$0xff]
        %v1922 = vld [vmem:[%s6 + $0x10] sm:$0xff]
        %v1923 = vld [vmem:[%s6 + $0x18] sm:$0xff]
        %v1924 = vld [vmem:[%s6 + $0x20] sm:$0xff]
        %v1925 = vld [vmem:[%s6 + $0x28] sm:$0xff]
        %v1926 = vld [vmem:[%s6 + $0x30] sm:$0xff]
        %v1927 = vld [vmem:[%s6 + $0x38] sm:$0xff]
        %1929 = vset.pattern.permute.xlu0 0
        %1930 = vperm.xlu0 %1929, %v1920
        %v1931 = vpop.permute.xlu0 %1930
        %1934 = vset.pattern.permute.xlu0 0
        %1935 = vperm.xlu0 %1934, %v1921
        %v1936 = vpop.permute.xlu0 %1935
        %1939 = vset.pattern.permute.xlu0 0
        %1940 = vperm.xlu0 %1939, %v1922
        %v1941 = vpop.permute.xlu0 %1940
        %1944 = vset.pattern.permute.xlu0 0
        %1945 = vperm.xlu0 %1944, %v1923
        %v1946 = vpop.permute.xlu0 %1945
        %1949 = vset.pattern.permute.xlu0 0
        %1950 = vperm.xlu0 %1949, %v1924
        %v1951 = vpop.permute.xlu0 %1950
        %1954 = vset.pattern.permute.xlu0 0
        %1955 = vperm.xlu0 %1954, %v1925
        %v1956 = vpop.permute.xlu0 %1955
        %1959 = vset.pattern.permute.xlu0 0
        %1960 = vperm.xlu0 %1959, %v1926
        %v1961 = vpop.permute.xlu0 %1960
        %1964 = vset.pattern.permute.xlu0 0
        %1965 = vperm.xlu0 %1964, %v1927
        %v1966 = vpop.permute.xlu0 %1965
        %v1976 = vunpack.c.l.b16 %v1848
        %v1977 = vunpack.c.l.b16 %v1849
        %v1978 = vunpack.c.l.b16 %v1850
        %v1979 = vunpack.c.l.b16 %v1851
        %v1980 = vunpack.c.l.b16 %v1852
        %v1981 = vunpack.c.l.b16 %v1853
        %v1982 = vunpack.c.l.b16 %v1854
        %v1983 = vunpack.c.l.b16 %v1855
        %v1984 = vpack.c.b16 %v1977, %v1976
        %v1985 = vpack.c.b16 %v1979, %v1978
        %v1986 = vpack.c.b16 %v1981, %v1980
        %v1987 = vpack.c.b16 %v1983, %v1982
        %vm1988 = vcmask 523264
        %v1990 = vsel %vm1988, %v1984, 0
        %v1993 = vsel %vm1988, %v1985, 0
        %v1996 = vsel %vm1988, %v1986, 0
        %v1999 = vsel %vm1988, %v1987, 0
        %2001 = vmatprep.subr.bf16.mxu0 %v1857
        %2002 = vmatpush1.bf16.msra.mxu0 %v1856
        %2003 = vmatprep.subr.bf16.mxu0 %v1873
        %2004 = vmatpush1.bf16.msra.mxu0 %v1872
        %2005 = vmatprep.subr.bf16.mxu0 %v1889
        %2006 = vmatpush1.bf16.msra.mxu0 %v1888
        %2007 = vmatprep.subr.bf16.mxu0 %v1905
        %2008 = vmatpush1.bf16.msra.mxu0 %v1904
        %2009 = vmatprep.subr.bf16.mxu0 0
        %2010 = vmatpush1.bf16.msra.mxu0 0
        %2011 = vmatprep.subr.bf16.mxu0 0
        %2012 = vmatpush1.bf16.msra.mxu0 0
        %2013 = vmatprep.subr.bf16.mxu0 0
        %2014 = vmatpush1.bf16.msra.mxu0 0
        %2015 = vmatprep.subr.bf16.mxu0 0
        %2016 = vmatpush1.bf16.msra.mxu0 0
        %2017 = vmatprep.subr.bf16.mxu0 0
        %2018 = vmatpush1.bf16.msra.mxu0 0
        %2019 = vmatprep.subr.bf16.mxu0 0
        %2020 = vmatpush1.bf16.msra.mxu0 0
        %2021 = vmatprep.subr.bf16.mxu0 0
        %2022 = vmatpush1.bf16.msra.mxu0 0
        %2023 = vmatprep.subr.bf16.mxu0 0
        %2024 = vmatpush1.bf16.msra.mxu0 0
        %2025 = vmatprep.subr.bf16.mxu0 0
        %2026 = vmatpush1.bf16.msra.mxu0 0
        %2027 = vmatprep.subr.bf16.mxu0 0
        %2028 = vmatpush1.bf16.msra.mxu0 0
        %2029 = vmatprep.subr.bf16.mxu0 0
        %2030 = vmatpush1.bf16.msra.mxu0 0
        %2031 = vmatprep.subr.bf16.mxu0 0
        %2032 = vmatpush1.bf16.msra.mxu0 0
        %2033 = vmatprep.mubr.bf16.mxu0 0
        %2034 = vmatmul.mubr.bf16.gmra.mrb[0].mxu0 %v1990
        %v2035 = vpop.f32.mrb[0].mxu0
        %v2036 = vadd.f32 %v1931, %v2035
        %v2037 = vpop.f32.mrb[0].mxu0
        %v2038 = vadd.f32 %v1931, %v2037
        %v2039 = vpop.f32.mrb[0].mxu0
        %v2040 = vadd.f32 %v1936, %v2039
        %v2041 = vpop.f32.mrb[0].mxu0
        %v2042 = vadd.f32 %v1936, %v2041
        %2043 = vmatprep.mubr.bf16.mxu0 0
        %2044 = vmatmul.mubr.bf16.gmra.mrb[0].mxu0 %v1993
        %v2045 = vpop.f32.mrb[0].mxu0
        %v2046 = vadd.f32 %v1941, %v2045
        %v2047 = vpop.f32.mrb[0].mxu0
        %v2048 = vadd.f32 %v1941, %v2047
        %v2049 = vpop.f32.mrb[0].mxu0
        %v2050 = vadd.f32 %v1946, %v2049
        %v2051 = vpop.f32.mrb[0].mxu0
        %v2052 = vadd.f32 %v1946, %v2051
        %2053 = vmatprep.mubr.bf16.mxu0 0
        %2054 = vmatmul.mubr.bf16.gmra.mrb[0].mxu0 %v1996
        %v2055 = vpop.f32.mrb[0].mxu0
        %v2056 = vadd.f32 %v1951, %v2055
        %v2057 = vpop.f32.mrb[0].mxu0
        %v2058 = vadd.f32 %v1951, %v2057
        %v2059 = vpop.f32.mrb[0].mxu0
        %v2060 = vadd.f32 %v1956, %v2059
        %v2061 = vpop.f32.mrb[0].mxu0
        %v2062 = vadd.f32 %v1956, %v2061
        %2063 = vmatprep.mubr.bf16.mxu0 0
        %2064 = vmatmul.mubr.bf16.gmra.mrb[0].mxu0 %v1999
        %v2065 = vpop.f32.mrb[0].mxu0
        %v2066 = vadd.f32 %v1961, %v2065
        %v2067 = vpop.f32.mrb[0].mxu0
        %v2068 = vadd.f32 %v1961, %v2067
        %v2069 = vpop.f32.mrb[0].mxu0
        %v2070 = vadd.f32 %v1966, %v2069
        %v2071 = vpop.f32.mrb[0].mxu0
        %v2072 = vadd.f32 %v1966, %v2071
        %2073 = vdwg.mxu0
        %2074 = vmatprep.subr.bf16.mxu0 %v1859
        %2075 = vmatpush1.bf16.msra.mxu0 %v1858
        %2076 = vmatprep.subr.bf16.mxu0 %v1875
        %2077 = vmatpush1.bf16.msra.mxu0 %v1874
        %2078 = vmatprep.subr.bf16.mxu0 %v1891
        %2079 = vmatpush1.bf16.msra.mxu0 %v1890
        %2080 = vmatprep.subr.bf16.mxu0 %v1907
        %2081 = vmatpush1.bf16.msra.mxu0 %v1906
        %2082 = vmatprep.subr.bf16.mxu0 0
        %2083 = vmatpush1.bf16.msra.mxu0 0
        %2084 = vmatprep.subr.bf16.mxu0 0
        %2085 = vmatpush1.bf16.msra.mxu0 0
        %2086 = vmatprep.subr.bf16.mxu0 0
        %2087 = vmatpush1.bf16.msra.mxu0 0
        %2088 = vmatprep.subr.bf16.mxu0 0
        %2089 = vmatpush1.bf16.msra.mxu0 0
        %2090 = vmatprep.subr.bf16.mxu0 0
        %2091 = vmatpush1.bf16.msra.mxu0 0
        %2092 = vmatprep.subr.bf16.mxu0 0
        %2093 = vmatpush1.bf16.msra.mxu0 0
        %2094 = vmatprep.subr.bf16.mxu0 0
        %2095 = vmatpush1.bf16.msra.mxu0 0
        %2096 = vmatprep.subr.bf16.mxu0 0
        %2097 = vmatpush1.bf16.msra.mxu0 0
        %2098 = vmatprep.subr.bf16.mxu0 0
        %2099 = vmatpush1.bf16.msra.mxu0 0
        %2100 = vmatprep.subr.bf16.mxu0 0
        %2101 = vmatpush1.bf16.msra.mxu0 0
        %2102 = vmatprep.subr.bf16.mxu0 0
        %2103 = vmatpush1.bf16.msra.mxu0 0
        %2104 = vmatprep.subr.bf16.mxu0 0
        %2105 = vmatpush1.bf16.msra.mxu0 0
        %2106 = vmatprep.mubr.bf16.mxu0 0
        %2107 = vmatmul.mubr.bf16.gmra.mrb[0].mxu0 %v1990
        %v2108 = vpop.f32.mrb[0].mxu0
        %v2109 = vadd.f32 %v1931, %v2108
        %v2110 = vpop.f32.mrb[0].mxu0
        %v2111 = vadd.f32 %v1931, %v2110
        %v2112 = vpop.f32.mrb[0].mxu0
        %v2113 = vadd.f32 %v1936, %v2112
        %v2114 = vpop.f32.mrb[0].mxu0
        %v2115 = vadd.f32 %v1936, %v2114
        %2116 = vmatprep.mubr.bf16.mxu0 0
        %2117 = vmatmul.mubr.bf16.gmra.mrb[0].mxu0 %v1993
        %v2118 = vpop.f32.mrb[0].mxu0
        %v2119 = vadd.f32 %v1941, %v2118
        %v2120 = vpop.f32.mrb[0].mxu0
        %v2121 = vadd.f32 %v1941, %v2120
        %v2122 = vpop.f32.mrb[0].mxu0
        %v2123 = vadd.f32 %v1946, %v2122
        %v2124 = vpop.f32.mrb[0].mxu0
        %v2125 = vadd.f32 %v1946, %v2124
        %2126 = vmatprep.mubr.bf16.mxu0 0
        %2127 = vmatmul.mubr.bf16.gmra.mrb[0].mxu0 %v1996
        %v2128 = vpop.f32.mrb[0].mxu0
        %v2129 = vadd.f32 %v1951, %v2128
        %v2130 = vpop.f32.mrb[0].mxu0
        %v2131 = vadd.f32 %v1951, %v2130
        %v2132 = vpop.f32.mrb[0].mxu0
        %v2133 = vadd.f32 %v1956, %v2132
        %v2134 = vpop.f32.mrb[0].mxu0
        %v2135 = vadd.f32 %v1956, %v2134
        %2136 = vmatprep.mubr.bf16.mxu0 0
        %2137 = vmatmul.mubr.bf16.gmra.mrb[0].mxu0 %v1999
        %v2138 = vpop.f32.mrb[0].mxu0
        %v2139 = vadd.f32 %v1961, %v2138
        %v2140 = vpop.f32.mrb[0].mxu0
        %v2141 = vadd.f32 %v1961, %v2140
        %v2142 = vpop.f32.mrb[0].mxu0
        %v2143 = vadd.f32 %v1966, %v2142
        %v2144 = vpop.f32.mrb[0].mxu0
        %v2145 = vadd.f32 %v1966, %v2144
        %2146 = vdwg.mxu0
        %2147 = vmatprep.subr.bf16.mxu0 %v1861
        %2148 = vmatpush1.bf16.msra.mxu0 %v1860
        %2149 = vmatprep.subr.bf16.mxu0 %v1877
        %2150 = vmatpush1.bf16.msra.mxu0 %v1876
        %2151 = vmatprep.subr.bf16.mxu0 %v1893
        %2152 = vmatpush1.bf16.msra.mxu0 %v1892
        %2153 = vmatprep.subr.bf16.mxu0 %v1909
        %2154 = vmatpush1.bf16.msra.mxu0 %v1908
        %2155 = vmatprep.subr.bf16.mxu0 0
        %2156 = vmatpush1.bf16.msra.mxu0 0
        %2157 = vmatprep.subr.bf16.mxu0 0
        %2158 = vmatpush1.bf16.msra.mxu0 0
        %2159 = vmatprep.subr.bf16.mxu0 0
        %2160 = vmatpush1.bf16.msra.mxu0 0
        %2161 = vmatprep.subr.bf16.mxu0 0
        %2162 = vmatpush1.bf16.msra.mxu0 0
        %2163 = vmatprep.subr.bf16.mxu0 0
        %2164 = vmatpush1.bf16.msra.mxu0 0
        %2165 = vmatprep.subr.bf16.mxu0 0
        %2166 = vmatpush1.bf16.msra.mxu0 0
        %2167 = vmatprep.subr.bf16.mxu0 0
        %2168 = vmatpush1.bf16.msra.mxu0 0
        %2169 = vmatprep.subr.bf16.mxu0 0
        %2170 = vmatpush1.bf16.msra.mxu0 0
        %2171 = vmatprep.subr.bf16.mxu0 0
        %2172 = vmatpush1.bf16.msra.mxu0 0
        %2173 = vmatprep.subr.bf16.mxu0 0
        %2174 = vmatpush1.bf16.msra.mxu0 0
        %2175 = vmatprep.subr.bf16.mxu0 0
        %2176 = vmatpush1.bf16.msra.mxu0 0
        %2177 = vmatprep.subr.bf16.mxu0 0
        %2178 = vmatpush1.bf16.msra.mxu0 0
        %2179 = vmatprep.mubr.bf16.mxu0 0
        %2180 = vmatmul.mubr.bf16.gmra.mrb[0].mxu0 %v1990
        %v2181 = vpop.f32.mrb[0].mxu0
        %v2182 = vadd.f32 %v1931, %v2181
        %v2183 = vpop.f32.mrb[0].mxu0
        %v2184 = vadd.f32 %v1931, %v2183
        %v2185 = vpop.f32.mrb[0].mxu0
        %v2186 = vadd.f32 %v1936, %v2185
        %v2187 = vpop.f32.mrb[0].mxu0
        %v2188 = vadd.f32 %v1936, %v2187
        %2189 = vmatprep.mubr.bf16.mxu0 0
        %2190 = vmatmul.mubr.bf16.gmra.mrb[0].mxu0 %v1993
        %v2191 = vpop.f32.mrb[0].mxu0
        %v2192 = vadd.f32 %v1941, %v2191
        %v2193 = vpop.f32.mrb[0].mxu0
        %v2194 = vadd.f32 %v1941, %v2193
        %v2195 = vpop.f32.mrb[0].mxu0
        %v2196 = vadd.f32 %v1946, %v2195
        %v2197 = vpop.f32.mrb[0].mxu0
        %v2198 = vadd.f32 %v1946, %v2197
        %2199 = vmatprep.mubr.bf16.mxu0 0
        %2200 = vmatmul.mubr.bf16.gmra.mrb[0].mxu0 %v1996
        %v2201 = vpop.f32.mrb[0].mxu0
        %v2202 = vadd.f32 %v1951, %v2201
        %v2203 = vpop.f32.mrb[0].mxu0
        %v2204 = vadd.f32 %v1951, %v2203
        %v2205 = vpop.f32.mrb[0].mxu0
        %v2206 = vadd.f32 %v1956, %v2205
        %v2207 = vpop.f32.mrb[0].mxu0
        %v2208 = vadd.f32 %v1956, %v2207
        %2209 = vmatprep.mubr.bf16.mxu0 0
        %2210 = vmatmul.mubr.bf16.gmra.mrb[0].mxu0 %v1999
        %v2211 = vpop.f32.mrb[0].mxu0
        %v2212 = vadd.f32 %v1961, %v2211
        %v2213 = vpop.f32.mrb[0].mxu0
        %v2214 = vadd.f32 %v1961, %v2213
        %v2215 = vpop.f32.mrb[0].mxu0
        %v2216 = vadd.f32 %v1966, %v2215
        %v2217 = vpop.f32.mrb[0].mxu0
        %v2218 = vadd.f32 %v1966, %v2217
        %2219 = vdwg.mxu0
        %2220 = vmatprep.subr.bf16.mxu0 %v1863
        %2221 = vmatpush1.bf16.msra.mxu0 %v1862
        %2222 = vmatprep.subr.bf16.mxu0 %v1879
        %2223 = vmatpush1.bf16.msra.mxu0 %v1878
        %2224 = vmatprep.subr.bf16.mxu0 %v1895
        %2225 = vmatpush1.bf16.msra.mxu0 %v1894
        %2226 = vmatprep.subr.bf16.mxu0 %v1911
        %2227 = vmatpush1.bf16.msra.mxu0 %v1910
        %2228 = vmatprep.subr.bf16.mxu0 0
        %2229 = vmatpush1.bf16.msra.mxu0 0
        %2230 = vmatprep.subr.bf16.mxu0 0
        %2231 = vmatpush1.bf16.msra.mxu0 0
        %2232 = vmatprep.subr.bf16.mxu0 0
        %2233 = vmatpush1.bf16.msra.mxu0 0
        %2234 = vmatprep.subr.bf16.mxu0 0
        %2235 = vmatpush1.bf16.msra.mxu0 0
        %2236 = vmatprep.subr.bf16.mxu0 0
        %2237 = vmatpush1.bf16.msra.mxu0 0
        %2238 = vmatprep.subr.bf16.mxu0 0
        %2239 = vmatpush1.bf16.msra.mxu0 0
        %2240 = vmatprep.subr.bf16.mxu0 0
        %2241 = vmatpush1.bf16.msra.mxu0 0
        %2242 = vmatprep.subr.bf16.mxu0 0
        %2243 = vmatpush1.bf16.msra.mxu0 0
        %2244 = vmatprep.subr.bf16.mxu0 0
        %2245 = vmatpush1.bf16.msra.mxu0 0
        %2246 = vmatprep.subr.bf16.mxu0 0
        %2247 = vmatpush1.bf16.msra.mxu0 0
        %2248 = vmatprep.subr.bf16.mxu0 0
        %2249 = vmatpush1.bf16.msra.mxu0 0
        %2250 = vmatprep.subr.bf16.mxu0 0
        %2251 = vmatpush1.bf16.msra.mxu0 0
        %2252 = vmatprep.mubr.bf16.mxu0 0
        %2253 = vmatmul.mubr.bf16.gmra.mrb[0].mxu0 %v1990
        %v2254 = vpop.f32.mrb[0].mxu0
        %v2255 = vadd.f32 %v1931, %v2254
        %v2256 = vpop.f32.mrb[0].mxu0
        %v2257 = vadd.f32 %v1931, %v2256
        %v2258 = vpop.f32.mrb[0].mxu0
        %v2259 = vadd.f32 %v1936, %v2258
        %v2260 = vpop.f32.mrb[0].mxu0
        %v2261 = vadd.f32 %v1936, %v2260
        %2262 = vmatprep.mubr.bf16.mxu0 0
        %2263 = vmatmul.mubr.bf16.gmra.mrb[0].mxu0 %v1993
        %v2264 = vpop.f32.mrb[0].mxu0
        %v2265 = vadd.f32 %v1941, %v2264
        %v2266 = vpop.f32.mrb[0].mxu0
        %v2267 = vadd.f32 %v1941, %v2266
        %v2268 = vpop.f32.mrb[0].mxu0
        %v2269 = vadd.f32 %v1946, %v2268
        %v2270 = vpop.f32.mrb[0].mxu0
        %v2271 = vadd.f32 %v1946, %v2270
        %2272 = vmatprep.mubr.bf16.mxu0 0
        %2273 = vmatmul.mubr.bf16.gmra.mrb[0].mxu0 %v1996
        %v2274 = vpop.f32.mrb[0].mxu0
        %v2275 = vadd.f32 %v1951, %v2274
        %v2276 = vpop.f32.mrb[0].mxu0
        %v2277 = vadd.f32 %v1951, %v2276
        %v2278 = vpop.f32.mrb[0].mxu0
        %v2279 = vadd.f32 %v1956, %v2278
        %v2280 = vpop.f32.mrb[0].mxu0
        %v2281 = vadd.f32 %v1956, %v2280
        %2282 = vmatprep.mubr.bf16.mxu0 0
        %2283 = vmatmul.mubr.bf16.gmra.mrb[0].mxu0 %v1999
        %v2284 = vpop.f32.mrb[0].mxu0
        %v2285 = vadd.f32 %v1961, %v2284
        %v2286 = vpop.f32.mrb[0].mxu0
        %v2287 = vadd.f32 %v1961, %v2286
        %v2288 = vpop.f32.mrb[0].mxu0
        %v2289 = vadd.f32 %v1966, %v2288
        %v2290 = vpop.f32.mrb[0].mxu0
        %v2291 = vadd.f32 %v1966, %v2290
        %2292 = vdwg.mxu0
        %2293 = vmatprep.subr.bf16.mxu0 %v1865
        %2294 = vmatpush1.bf16.msra.mxu0 %v1864
        %2295 = vmatprep.subr.bf16.mxu0 %v1881
        %2296 = vmatpush1.bf16.msra.mxu0 %v1880
        %2297 = vmatprep.subr.bf16.mxu0 %v1897
        %2298 = vmatpush1.bf16.msra.mxu0 %v1896
        %2299 = vmatprep.subr.bf16.mxu0 %v1913
        %2300 = vmatpush1.bf16.msra.mxu0 %v1912
        %2301 = vmatprep.subr.bf16.mxu0 0
        %2302 = vmatpush1.bf16.msra.mxu0 0
        %2303 = vmatprep.subr.bf16.mxu0 0
        %2304 = vmatpush1.bf16.msra.mxu0 0
        %2305 = vmatprep.subr.bf16.mxu0 0
        %2306 = vmatpush1.bf16.msra.mxu0 0
        %2307 = vmatprep.subr.bf16.mxu0 0
        %2308 = vmatpush1.bf16.msra.mxu0 0
        %2309 = vmatprep.subr.bf16.mxu0 0
        %2310 = vmatpush1.bf16.msra.mxu0 0
        %2311 = vmatprep.subr.bf16.mxu0 0
        %2312 = vmatpush1.bf16.msra.mxu0 0
        %2313 = vmatprep.subr.bf16.mxu0 0
        %2314 = vmatpush1.bf16.msra.mxu0 0
        %2315 = vmatprep.subr.bf16.mxu0 0
        %2316 = vmatpush1.bf16.msra.mxu0 0
        %2317 = vmatprep.subr.bf16.mxu0 0
        %2318 = vmatpush1.bf16.msra.mxu0 0
        %2319 = vmatprep.subr.bf16.mxu0 0
        %2320 = vmatpush1.bf16.msra.mxu0 0
        %2321 = vmatprep.subr.bf16.mxu0 0
        %2322 = vmatpush1.bf16.msra.mxu0 0
        %2323 = vmatprep.subr.bf16.mxu0 0
        %2324 = vmatpush1.bf16.msra.mxu0 0
        %2325 = vmatprep.mubr.bf16.mxu0 0
        %2326 = vmatmul.mubr.bf16.gmra.mrb[0].mxu0 %v1990
        %v2327 = vpop.f32.mrb[0].mxu0
        %v2328 = vadd.f32 %v1931, %v2327
        %v2329 = vpop.f32.mrb[0].mxu0
        %v2330 = vadd.f32 %v1931, %v2329
        %v2331 = vpop.f32.mrb[0].mxu0
        %v2332 = vadd.f32 %v1936, %v2331
        %v2333 = vpop.f32.mrb[0].mxu0
        %v2334 = vadd.f32 %v1936, %v2333
        %2335 = vmatprep.mubr.bf16.mxu0 0
        %2336 = vmatmul.mubr.bf16.gmra.mrb[0].mxu0 %v1993
        %v2337 = vpop.f32.mrb[0].mxu0
        %v2338 = vadd.f32 %v1941, %v2337
        %v2339 = vpop.f32.mrb[0].mxu0
        %v2340 = vadd.f32 %v1941, %v2339
        %v2341 = vpop.f32.mrb[0].mxu0
        %v2342 = vadd.f32 %v1946, %v2341
        %v2343 = vpop.f32.mrb[0].mxu0
        %v2344 = vadd.f32 %v1946, %v2343
        %2345 = vmatprep.mubr.bf16.mxu0 0
        %2346 = vmatmul.mubr.bf16.gmra.mrb[0].mxu0 %v1996
        %v2347 = vpop.f32.mrb[0].mxu0
        %v2348 = vadd.f32 %v1951, %v2347
        %v2349 = vpop.f32.mrb[0].mxu0
        %v2350 = vadd.f32 %v1951, %v2349
        %v2351 = vpop.f32.mrb[0].mxu0
        %v2352 = vadd.f32 %v1956, %v2351
        %v2353 = vpop.f32.mrb[0].mxu0
        %v2354 = vadd.f32 %v1956, %v2353
        %2355 = vmatprep.mubr.bf16.mxu0 0
        %2356 = vmatmul.mubr.bf16.gmra.mrb[0].mxu0 %v1999
        %v2357 = vpop.f32.mrb[0].mxu0
        %v2358 = vadd.f32 %v1961, %v2357
        %v2359 = vpop.f32.mrb[0].mxu0
        %v2360 = vadd.f32 %v1961, %v2359
        %v2361 = vpop.f32.mrb[0].mxu0
        %v2362 = vadd.f32 %v1966, %v2361
        %v2363 = vpop.f32.mrb[0].mxu0
        %v2364 = vadd.f32 %v1966, %v2363
        %2365 = vdwg.mxu0
        %2366 = vmatprep.subr.bf16.mxu0 %v1867
        %2367 = vmatpush1.bf16.msra.mxu0 %v1866
        %2368 = vmatprep.subr.bf16.mxu0 %v1883
        %2369 = vmatpush1.bf16.msra.mxu0 %v1882
        %2370 = vmatprep.subr.bf16.mxu0 %v1899
        %2371 = vmatpush1.bf16.msra.mxu0 %v1898
        %2372 = vmatprep.subr.bf16.mxu0 %v1915
        %2373 = vmatpush1.bf16.msra.mxu0 %v1914
        %2374 = vmatprep.subr.bf16.mxu0 0
        %2375 = vmatpush1.bf16.msra.mxu0 0
        %2376 = vmatprep.subr.bf16.mxu0 0
        %2377 = vmatpush1.bf16.msra.mxu0 0
        %2378 = vmatprep.subr.bf16.mxu0 0
        %2379 = vmatpush1.bf16.msra.mxu0 0
        %2380 = vmatprep.subr.bf16.mxu0 0
        %2381 = vmatpush1.bf16.msra.mxu0 0
        %2382 = vmatprep.subr.bf16.mxu0 0
        %2383 = vmatpush1.bf16.msra.mxu0 0
        %2384 = vmatprep.subr.bf16.mxu0 0
        %2385 = vmatpush1.bf16.msra.mxu0 0
        %2386 = vmatprep.subr.bf16.mxu0 0
        %2387 = vmatpush1.bf16.msra.mxu0 0
        %2388 = vmatprep.subr.bf16.mxu0 0
        %2389 = vmatpush1.bf16.msra.mxu0 0
        %2390 = vmatprep.subr.bf16.mxu0 0
        %2391 = vmatpush1.bf16.msra.mxu0 0
        %2392 = vmatprep.subr.bf16.mxu0 0
        %2393 = vmatpush1.bf16.msra.mxu0 0
        %2394 = vmatprep.subr.bf16.mxu0 0
        %2395 = vmatpush1.bf16.msra.mxu0 0
        %2396 = vmatprep.subr.bf16.mxu0 0
        %2397 = vmatpush1.bf16.msra.mxu0 0
        %2398 = vmatprep.mubr.bf16.mxu0 0
        %2399 = vmatmul.mubr.bf16.gmra.mrb[0].mxu0 %v1990
        %v2400 = vpop.f32.mrb[0].mxu0
        %v2401 = vadd.f32 %v1931, %v2400
        %v2402 = vpop.f32.mrb[0].mxu0
        %v2403 = vadd.f32 %v1931, %v2402
        %v2404 = vpop.f32.mrb[0].mxu0
        %v2405 = vadd.f32 %v1936, %v2404
        %v2406 = vpop.f32.mrb[0].mxu0
        %v2407 = vadd.f32 %v1936, %v2406
        %2408 = vmatprep.mubr.bf16.mxu0 0
        %2409 = vmatmul.mubr.bf16.gmra.mrb[0].mxu0 %v1993
        %v2410 = vpop.f32.mrb[0].mxu0
        %v2411 = vadd.f32 %v1941, %v2410
        %v2412 = vpop.f32.mrb[0].mxu0
        %v2413 = vadd.f32 %v1941, %v2412
        %v2414 = vpop.f32.mrb[0].mxu0
        %v2415 = vadd.f32 %v1946, %v2414
        %v2416 = vpop.f32.mrb[0].mxu0
        %v2417 = vadd.f32 %v1946, %v2416
        %2418 = vmatprep.mubr.bf16.mxu0 0
        %2419 = vmatmul.mubr.bf16.gmra.mrb[0].mxu0 %v1996
        %v2420 = vpop.f32.mrb[0].mxu0
        %v2421 = vadd.f32 %v1951, %v2420
        %v2422 = vpop.f32.mrb[0].mxu0
        %v2423 = vadd.f32 %v1951, %v2422
        %v2424 = vpop.f32.mrb[0].mxu0
        %v2425 = vadd.f32 %v1956, %v2424
        %v2426 = vpop.f32.mrb[0].mxu0
        %v2427 = vadd.f32 %v1956, %v2426
        %2428 = vmatprep.mubr.bf16.mxu0 0
        %2429 = vmatmul.mubr.bf16.gmra.mrb[0].mxu0 %v1999
        %v2430 = vpop.f32.mrb[0].mxu0
        %v2431 = vadd.f32 %v1961, %v2430
        %v2432 = vpop.f32.mrb[0].mxu0
        %v2433 = vadd.f32 %v1961, %v2432
        %v2434 = vpop.f32.mrb[0].mxu0
        %v2435 = vadd.f32 %v1966, %v2434
        %v2436 = vpop.f32.mrb[0].mxu0
        %v2437 = vadd.f32 %v1966, %v2436
        %2438 = vdwg.mxu0
        %2439 = vmatprep.subr.bf16.mxu0 %v1869
        %2440 = vmatpush1.bf16.msra.mxu0 %v1868
        %2441 = vmatprep.subr.bf16.mxu0 %v1885
        %2442 = vmatpush1.bf16.msra.mxu0 %v1884
        %2443 = vmatprep.subr.bf16.mxu0 %v1901
        %2444 = vmatpush1.bf16.msra.mxu0 %v1900
        %2445 = vmatprep.subr.bf16.mxu0 %v1917
        %2446 = vmatpush1.bf16.msra.mxu0 %v1916
        %2447 = vmatprep.subr.bf16.mxu0 0
        %2448 = vmatpush1.bf16.msra.mxu0 0
        %2449 = vmatprep.subr.bf16.mxu0 0
        %2450 = vmatpush1.bf16.msra.mxu0 0
        %2451 = vmatprep.subr.bf16.mxu0 0
        %2452 = vmatpush1.bf16.msra.mxu0 0
        %2453 = vmatprep.subr.bf16.mxu0 0
        %2454 = vmatpush1.bf16.msra.mxu0 0
        %2455 = vmatprep.subr.bf16.mxu0 0
        %2456 = vmatpush1.bf16.msra.mxu0 0
        %2457 = vmatprep.subr.bf16.mxu0 0
        %2458 = vmatpush1.bf16.msra.mxu0 0
        %2459 = vmatprep.subr.bf16.mxu0 0
        %2460 = vmatpush1.bf16.msra.mxu0 0
        %2461 = vmatprep.subr.bf16.mxu0 0
        %2462 = vmatpush1.bf16.msra.mxu0 0
        %2463 = vmatprep.subr.bf16.mxu0 0
        %2464 = vmatpush1.bf16.msra.mxu0 0
        %2465 = vmatprep.subr.bf16.mxu0 0
        %2466 = vmatpush1.bf16.msra.mxu0 0
        %2467 = vmatprep.subr.bf16.mxu0 0
        %2468 = vmatpush1.bf16.msra.mxu0 0
        %2469 = vmatprep.subr.bf16.mxu0 0
        %2470 = vmatpush1.bf16.msra.mxu0 0
        %2471 = vmatprep.mubr.bf16.mxu0 0
        %2472 = vmatmul.mubr.bf16.gmra.mrb[0].mxu0 %v1990
        %v2473 = vpop.f32.mrb[0].mxu0
        %v2474 = vadd.f32 %v1931, %v2473
        %v2475 = vpop.f32.mrb[0].mxu0
        %v2476 = vadd.f32 %v1931, %v2475
        %v2477 = vpop.f32.mrb[0].mxu0
        %v2478 = vadd.f32 %v1936, %v2477
        %v2479 = vpop.f32.mrb[0].mxu0
        %v2480 = vadd.f32 %v1936, %v2479
        %2481 = vmatprep.mubr.bf16.mxu0 0
        %2482 = vmatmul.mubr.bf16.gmra.mrb[0].mxu0 %v1993
        %v2483 = vpop.f32.mrb[0].mxu0
        %v2484 = vadd.f32 %v1941, %v2483
        %v2485 = vpop.f32.mrb[0].mxu0
        %v2486 = vadd.f32 %v1941, %v2485
        %v2487 = vpop.f32.mrb[0].mxu0
        %v2488 = vadd.f32 %v1946, %v2487
        %v2489 = vpop.f32.mrb[0].mxu0
        %v2490 = vadd.f32 %v1946, %v2489
        %2491 = vmatprep.mubr.bf16.mxu0 0
        %2492 = vmatmul.mubr.bf16.gmra.mrb[0].mxu0 %v1996
        %v2493 = vpop.f32.mrb[0].mxu0
        %v2494 = vadd.f32 %v1951, %v2493
        %v2495 = vpop.f32.mrb[0].mxu0
        %v2496 = vadd.f32 %v1951, %v2495
        %v2497 = vpop.f32.mrb[0].mxu0
        %v2498 = vadd.f32 %v1956, %v2497
        %v2499 = vpop.f32.mrb[0].mxu0
        %v2500 = vadd.f32 %v1956, %v2499
        %2501 = vmatprep.mubr.bf16.mxu0 0
        %2502 = vmatmul.mubr.bf16.gmra.mrb[0].mxu0 %v1999
        %v2503 = vpop.f32.mrb[0].mxu0
        %v2504 = vadd.f32 %v1961, %v2503
        %v2505 = vpop.f32.mrb[0].mxu0
        %v2506 = vadd.f32 %v1961, %v2505
        %v2507 = vpop.f32.mrb[0].mxu0
        %v2508 = vadd.f32 %v1966, %v2507
        %v2509 = vpop.f32.mrb[0].mxu0
        %v2510 = vadd.f32 %v1966, %v2509
        %2511 = vdwg.mxu0
        %2512 = vmatprep.subr.bf16.mxu0 %v1871
        %2513 = vmatpush1.bf16.msra.mxu0 %v1870
        %2514 = vmatprep.subr.bf16.mxu0 %v1887
        %2515 = vmatpush1.bf16.msra.mxu0 %v1886
        %2516 = vmatprep.subr.bf16.mxu0 %v1903
        %2517 = vmatpush1.bf16.msra.mxu0 %v1902
        %2518 = vmatprep.subr.bf16.mxu0 %v1919
        %2519 = vmatpush1.bf16.msra.mxu0 %v1918
        %2520 = vmatprep.subr.bf16.mxu0 0
        %2521 = vmatpush1.bf16.msra.mxu0 0
        %2522 = vmatprep.subr.bf16.mxu0 0
        %2523 = vmatpush1.bf16.msra.mxu0 0
        %2524 = vmatprep.subr.bf16.mxu0 0
        %2525 = vmatpush1.bf16.msra.mxu0 0
        %2526 = vmatprep.subr.bf16.mxu0 0
        %2527 = vmatpush1.bf16.msra.mxu0 0
        %2528 = vmatprep.subr.bf16.mxu0 0
        %2529 = vmatpush1.bf16.msra.mxu0 0
        %2530 = vmatprep.subr.bf16.mxu0 0
        %2531 = vmatpush1.bf16.msra.mxu0 0
        %2532 = vmatprep.subr.bf16.mxu0 0
        %2533 = vmatpush1.bf16.msra.mxu0 0
        %2534 = vmatprep.subr.bf16.mxu0 0
        %2535 = vmatpush1.bf16.msra.mxu0 0
        %2536 = vmatprep.subr.bf16.mxu0 0
        %2537 = vmatpush1.bf16.msra.mxu0 0
        %2538 = vmatprep.subr.bf16.mxu0 0
        %2539 = vmatpush1.bf16.msra.mxu0 0
        %2540 = vmatprep.subr.bf16.mxu0 0
        %2541 = vmatpush1.bf16.msra.mxu0 0
        %2542 = vmatprep.subr.bf16.mxu0 0
        %2543 = vmatpush1.bf16.msra.mxu0 0
        %2544 = vmatprep.mubr.bf16.mxu0 0
        %2545 = vmatmul.mubr.bf16.gmra.mrb[0].mxu0 %v1990
        %v2546 = vpop.f32.mrb[0].mxu0
        %v2547 = vadd.f32 %v1931, %v2546
        %v2548 = vpop.f32.mrb[0].mxu0
        %v2549 = vadd.f32 %v1931, %v2548
        %v2550 = vpop.f32.mrb[0].mxu0
        %v2551 = vadd.f32 %v1936, %v2550
        %v2552 = vpop.f32.mrb[0].mxu0
        %v2553 = vadd.f32 %v1936, %v2552
        %2554 = vmatprep.mubr.bf16.mxu0 0
        %2555 = vmatmul.mubr.bf16.gmra.mrb[0].mxu0 %v1993
        %v2556 = vpop.f32.mrb[0].mxu0
        %v2557 = vadd.f32 %v1941, %v2556
        %v2558 = vpop.f32.mrb[0].mxu0
        %v2559 = vadd.f32 %v1941, %v2558
        %v2560 = vpop.f32.mrb[0].mxu0
        %v2561 = vadd.f32 %v1946, %v2560
        %v2562 = vpop.f32.mrb[0].mxu0
        %v2563 = vadd.f32 %v1946, %v2562
        %2564 = vmatprep.mubr.bf16.mxu0 0
        %2565 = vmatmul.mubr.bf16.gmra.mrb[0].mxu0 %v1996
        %v2566 = vpop.f32.mrb[0].mxu0
        %v2567 = vadd.f32 %v1951, %v2566
        %v2568 = vpop.f32.mrb[0].mxu0
        %v2569 = vadd.f32 %v1951, %v2568
        %v2570 = vpop.f32.mrb[0].mxu0
        %v2571 = vadd.f32 %v1956, %v2570
        %v2572 = vpop.f32.mrb[0].mxu0
        %v2573 = vadd.f32 %v1956, %v2572
        %2574 = vmatprep.mubr.bf16.mxu0 0
        %2575 = vmatmul.mubr.bf16.gmra.mrb[0].mxu0 %v1999
        %v2576 = vpop.f32.mrb[0].mxu0
        %v2577 = vadd.f32 %v1961, %v2576
        %v2578 = vpop.f32.mrb[0].mxu0
        %v2579 = vadd.f32 %v1961, %v2578
        %v2580 = vpop.f32.mrb[0].mxu0
        %v2581 = vadd.f32 %v1966, %v2580
        %v2582 = vpop.f32.mrb[0].mxu0
        %v2583 = vadd.f32 %v1966, %v2582
        %2584 = vdwg.mxu0
        %v2585 = vmax.f32 %v2036, 0.0
        %v2586 = vmax.f32 %v2038, 0.0
        %v2587 = vmax.f32 %v2109, 0.0
        %v2588 = vmax.f32 %v2111, 0.0
        %v2589 = vmax.f32 %v2182, 0.0
        %v2590 = vmax.f32 %v2184, 0.0
        %v2591 = vmax.f32 %v2255, 0.0
        %v2592 = vmax.f32 %v2257, 0.0
        %v2593 = vmax.f32 %v2328, 0.0
        %v2594 = vmax.f32 %v2330, 0.0
        %v2595 = vmax.f32 %v2401, 0.0
        %v2596 = vmax.f32 %v2403, 0.0
        %v2597 = vmax.f32 %v2474, 0.0
        %v2598 = vmax.f32 %v2476, 0.0
        %v2599 = vmax.f32 %v2547, 0.0
        %v2600 = vmax.f32 %v2549, 0.0
        %v2601 = vmax.f32 %v2040, 0.0
        %v2602 = vmax.f32 %v2042, 0.0
        %v2603 = vmax.f32 %v2113, 0.0
        %v2604 = vmax.f32 %v2115, 0.0
        %v2605 = vmax.f32 %v2186, 0.0
        %v2606 = vmax.f32 %v2188, 0.0
        %v2607 = vmax.f32 %v2259, 0.0
        %v2608 = vmax.f32 %v2261, 0.0
        %v2609 = vmax.f32 %v2332, 0.0
        %v2610 = vmax.f32 %v2334, 0.0
        %v2611 = vmax.f32 %v2405, 0.0
        %v2612 = vmax.f32 %v2407, 0.0
        %v2613 = vmax.f32 %v2478, 0.0
        %v2614 = vmax.f32 %v2480, 0.0
        %v2615 = vmax.f32 %v2551, 0.0
        %v2616 = vmax.f32 %v2553, 0.0
        %v2617 = vmax.f32 %v2046, 0.0
        %v2618 = vmax.f32 %v2048, 0.0
        %v2619 = vmax.f32 %v2119, 0.0
        %v2620 = vmax.f32 %v2121, 0.0
        %v2621 = vmax.f32 %v2192, 0.0
        %v2622 = vmax.f32 %v2194, 0.0
        %v2623 = vmax.f32 %v2265, 0.0
        %v2624 = vmax.f32 %v2267, 0.0
        %v2625 = vmax.f32 %v2338, 0.0
        %v2626 = vmax.f32 %v2340, 0.0
        %v2627 = vmax.f32 %v2411, 0.0
        %v2628 = vmax.f32 %v2413, 0.0
        %v2629 = vmax.f32 %v2484, 0.0
        %v2630 = vmax.f32 %v2486, 0.0
        %v2631 = vmax.f32 %v2557, 0.0
        %v2632 = vmax.f32 %v2559, 0.0
        %v2633 = vmax.f32 %v2050, 0.0
        %v2634 = vmax.f32 %v2052, 0.0
        %v2635 = vmax.f32 %v2123, 0.0
        %v2636 = vmax.f32 %v2125, 0.0
        %v2637 = vmax.f32 %v2196, 0.0
        %v2638 = vmax.f32 %v2198, 0.0
        %v2639 = vmax.f32 %v2269, 0.0
        %v2640 = vmax.f32 %v2271, 0.0
        %v2641 = vmax.f32 %v2342, 0.0
        %v2642 = vmax.f32 %v2344, 0.0
        %v2643 = vmax.f32 %v2415, 0.0
        %v2644 = vmax.f32 %v2417, 0.0
        %v2645 = vmax.f32 %v2488, 0.0
        %v2646 = vmax.f32 %v2490, 0.0
        %v2647 = vmax.f32 %v2561, 0.0
        %v2648 = vmax.f32 %v2563, 0.0
        %v2649 = vmax.f32 %v2056, 0.0
        %v2650 = vmax.f32 %v2058, 0.0
        %v2651 = vmax.f32 %v2129, 0.0
        %v2652 = vmax.f32 %v2131, 0.0
        %v2653 = vmax.f32 %v2202, 0.0
        %v2654 = vmax.f32 %v2204, 0.0
        %v2655 = vmax.f32 %v2275, 0.0
        %v2656 = vmax.f32 %v2277, 0.0
        %v2657 = vmax.f32 %v2348, 0.0
        %v2658 = vmax.f32 %v2350, 0.0
        %v2659 = vmax.f32 %v2421, 0.0
        %v2660 = vmax.f32 %v2423, 0.0
        %v2661 = vmax.f32 %v2494, 0.0
        %v2662 = vmax.f32 %v2496, 0.0
        %v2663 = vmax.f32 %v2567, 0.0
        %v2664 = vmax.f32 %v2569, 0.0
        %v2665 = vmax.f32 %v2060, 0.0
        %v2666 = vmax.f32 %v2062, 0.0
        %v2667 = vmax.f32 %v2133, 0.0
        %v2668 = vmax.f32 %v2135, 0.0
        %v2669 = vmax.f32 %v2206, 0.0
        %v2670 = vmax.f32 %v2208, 0.0
        %v2671 = vmax.f32 %v2279, 0.0
        %v2672 = vmax.f32 %v2281, 0.0
        %v2673 = vmax.f32 %v2352, 0.0
        %v2674 = vmax.f32 %v2354, 0.0
        %v2675 = vmax.f32 %v2425, 0.0
        %v2676 = vmax.f32 %v2427, 0.0
        %v2677 = vmax.f32 %v2498, 0.0
        %v2678 = vmax.f32 %v2500, 0.0
        %v2679 = vmax.f32 %v2571, 0.0
        %v2680 = vmax.f32 %v2573, 0.0
        %v2681 = vmax.f32 %v2066, 0.0
        %v2682 = vmax.f32 %v2068, 0.0
        %v2683 = vmax.f32 %v2139, 0.0
        %v2684 = vmax.f32 %v2141, 0.0
        %v2685 = vmax.f32 %v2212, 0.0
        %v2686 = vmax.f32 %v2214, 0.0
        %v2687 = vmax.f32 %v2285, 0.0
        %v2688 = vmax.f32 %v2287, 0.0
        %v2689 = vmax.f32 %v2358, 0.0
        %v2690 = vmax.f32 %v2360, 0.0
        %v2691 = vmax.f32 %v2431, 0.0
        %v2692 = vmax.f32 %v2433, 0.0
        %v2693 = vmax.f32 %v2504, 0.0
        %v2694 = vmax.f32 %v2506, 0.0
        %v2695 = vmax.f32 %v2577, 0.0
        %v2696 = vmax.f32 %v2579, 0.0
        %v2697 = vmax.f32 %v2070, 0.0
        %v2698 = vmax.f32 %v2072, 0.0
        %v2699 = vmax.f32 %v2143, 0.0
        %v2700 = vmax.f32 %v2145, 0.0
        %v2701 = vmax.f32 %v2216, 0.0
        %v2702 = vmax.f32 %v2218, 0.0
        %v2703 = vmax.f32 %v2289, 0.0
        %v2704 = vmax.f32 %v2291, 0.0
        %v2705 = vmax.f32 %v2362, 0.0
        %v2706 = vmax.f32 %v2364, 0.0
        %v2707 = vmax.f32 %v2435, 0.0
        %v2708 = vmax.f32 %v2437, 0.0
        %v2709 = vmax.f32 %v2508, 0.0
        %v2710 = vmax.f32 %v2510, 0.0
        %v2711 = vmax.f32 %v2581, 0.0
        %v2712 = vmax.f32 %v2583, 0.0
        %v2713 = vpack.c.bf16 %v2601, %v2585
        %v2714 = vpack.c.bf16 %v2602, %v2586
        %v2715 = vpack.c.bf16 %v2603, %v2587
        %v2716 = vpack.c.bf16 %v2604, %v2588
        %v2717 = vpack.c.bf16 %v2605, %v2589
        %v2718 = vpack.c.bf16 %v2606, %v2590
        %v2719 = vpack.c.bf16 %v2607, %v2591
        %v2720 = vpack.c.bf16 %v2608, %v2592
        %v2721 = vpack.c.bf16 %v2609, %v2593
        %v2722 = vpack.c.bf16 %v2610, %v2594
        %v2723 = vpack.c.bf16 %v2611, %v2595
        %v2724 = vpack.c.bf16 %v2612, %v2596
        %v2725 = vpack.c.bf16 %v2613, %v2597
        %v2726 = vpack.c.bf16 %v2614, %v2598
        %v2727 = vpack.c.bf16 %v2615, %v2599
        %v2728 = vpack.c.bf16 %v2616, %v2600
        %v2729 = vpack.c.bf16 %v2633, %v2617
        %v2730 = vpack.c.bf16 %v2634, %v2618
        %v2731 = vpack.c.bf16 %v2635, %v2619
        %v2732 = vpack.c.bf16 %v2636, %v2620
        %v2733 = vpack.c.bf16 %v2637, %v2621
        %v2734 = vpack.c.bf16 %v2638, %v2622
        %v2735 = vpack.c.bf16 %v2639, %v2623
        %v2736 = vpack.c.bf16 %v2640, %v2624
        %v2737 = vpack.c.bf16 %v2641, %v2625
        %v2738 = vpack.c.bf16 %v2642, %v2626
        %v2739 = vpack.c.bf16 %v2643, %v2627
        %v2740 = vpack.c.bf16 %v2644, %v2628
        %v2741 = vpack.c.bf16 %v2645, %v2629
        %v2742 = vpack.c.bf16 %v2646, %v2630
        %v2743 = vpack.c.bf16 %v2647, %v2631
        %v2744 = vpack.c.bf16 %v2648, %v2632
        %v2745 = vpack.c.bf16 %v2665, %v2649
        %v2746 = vpack.c.bf16 %v2666, %v2650
        %v2747 = vpack.c.bf16 %v2667, %v2651
        %v2748 = vpack.c.bf16 %v2668, %v2652
        %v2749 = vpack.c.bf16 %v2669, %v2653
        %v2750 = vpack.c.bf16 %v2670, %v2654
        %v2751 = vpack.c.bf16 %v2671, %v2655
        %v2752 = vpack.c.bf16 %v2672, %v2656
        %v2753 = vpack.c.bf16 %v2673, %v2657
        %v2754 = vpack.c.bf16 %v2674, %v2658
        %v2755 = vpack.c.bf16 %v2675, %v2659
        %v2756 = vpack.c.bf16 %v2676, %v2660
        %v2757 = vpack.c.bf16 %v2677, %v2661
        %v2758 = vpack.c.bf16 %v2678, %v2662
        %v2759 = vpack.c.bf16 %v2679, %v2663
        %v2760 = vpack.c.bf16 %v2680, %v2664
        %v2761 = vpack.c.bf16 %v2697, %v2681
        %v2762 = vpack.c.bf16 %v2698, %v2682
        %v2763 = vpack.c.bf16 %v2699, %v2683
        %v2764 = vpack.c.bf16 %v2700, %v2684
        %v2765 = vpack.c.bf16 %v2701, %v2685
        %v2766 = vpack.c.bf16 %v2702, %v2686
        %v2767 = vpack.c.bf16 %v2703, %v2687
        %v2768 = vpack.c.bf16 %v2704, %v2688
        %v2769 = vpack.c.bf16 %v2705, %v2689
        %v2770 = vpack.c.bf16 %v2706, %v2690
        %v2771 = vpack.c.bf16 %v2707, %v2691
        %v2772 = vpack.c.bf16 %v2708, %v2692
        %v2773 = vpack.c.bf16 %v2709, %v2693
        %v2774 = vpack.c.bf16 %v2710, %v2694
        %v2775 = vpack.c.bf16 %v2711, %v2695
        %v2776 = vpack.c.bf16 %v2712, %v2696
        %2777 = vst [vmem:[#allocation3] sm:$0xff] %v2713
        %2778 = vst [vmem:[#allocation3 + $0x8] sm:$0xff] %v2714
        %2779 = vst [vmem:[#allocation3 + $0x10] sm:$0xff] %v2715
        %2780 = vst [vmem:[#allocation3 + $0x18] sm:$0xff] %v2716
        %2781 = vst [vmem:[#allocation3 + $0x20] sm:$0xff] %v2717
        %2782 = vst [vmem:[#allocation3 + $0x28] sm:$0xff] %v2718
        %2783 = vst [vmem:[#allocation3 + $0x30] sm:$0xff] %v2719
        %2784 = vst [vmem:[#allocation3 + $0x38] sm:$0xff] %v2720
        %2785 = vst [vmem:[#allocation3 + $0x40] sm:$0xff] %v2721
        %2786 = vst [vmem:[#allocation3 + $0x48] sm:$0xff] %v2722
        %2787 = vst [vmem:[#allocation3 + $0x50] sm:$0xff] %v2723
        %2788 = vst [vmem:[#allocation3 + $0x58] sm:$0xff] %v2724
        %2789 = vst [vmem:[#allocation3 + $0x60] sm:$0xff] %v2725
        %2790 = vst [vmem:[#allocation3 + $0x68] sm:$0xff] %v2726
        %2791 = vst [vmem:[#allocation3 + $0x70] sm:$0xff] %v2727
        %2792 = vst [vmem:[#allocation3 + $0x78] sm:$0xff] %v2728
        %2793 = vst [vmem:[#allocation3 + $0x80] sm:$0xff] %v2729
        %2794 = vst [vmem:[#allocation3 + $0x88] sm:$0xff] %v2730
        %2795 = vst [vmem:[#allocation3 + $0x90] sm:$0xff] %v2731
        %2796 = vst [vmem:[#allocation3 + $0x98] sm:$0xff] %v2732
        %2797 = vst [vmem:[#allocation3 + $0xa0] sm:$0xff] %v2733
        %2798 = vst [vmem:[#allocation3 + $0xa8] sm:$0xff] %v2734
        %2799 = vst [vmem:[#allocation3 + $0xb0] sm:$0xff] %v2735
        %2800 = vst [vmem:[#allocation3 + $0xb8] sm:$0xff] %v2736
        %2801 = vst [vmem:[#allocation3 + $0xc0] sm:$0xff] %v2737
        %2802 = vst [vmem:[#allocation3 + $0xc8] sm:$0xff] %v2738
        %2803 = vst [vmem:[#allocation3 + $0xd0] sm:$0xff] %v2739
        %2804 = vst [vmem:[#allocation3 + $0xd8] sm:$0xff] %v2740
        %2805 = vst [vmem:[#allocation3 + $0xe0] sm:$0xff] %v2741
        %2806 = vst [vmem:[#allocation3 + $0xe8] sm:$0xff] %v2742
        %2807 = vst [vmem:[#allocation3 + $0xf0] sm:$0xff] %v2743
        %2808 = vst [vmem:[#allocation3 + $0xf8] sm:$0xff] %v2744
        %2809 = vst [vmem:[#allocation3 + $0x100] sm:$0xff] %v2745
        %2810 = vst [vmem:[#allocation3 + $0x108] sm:$0xff] %v2746
        %2811 = vst [vmem:[#allocation3 + $0x110] sm:$0xff] %v2747
        %2812 = vst [vmem:[#allocation3 + $0x118] sm:$0xff] %v2748
        %2813 = vst [vmem:[#allocation3 + $0x120] sm:$0xff] %v2749
        %2814 = vst [vmem:[#allocation3 + $0x128] sm:$0xff] %v2750
        %2815 = vst [vmem:[#allocation3 + $0x130] sm:$0xff] %v2751
        %2816 = vst [vmem:[#allocation3 + $0x138] sm:$0xff] %v2752
        %2817 = vst [vmem:[#allocation3 + $0x140] sm:$0xff] %v2753
        %2818 = vst [vmem:[#allocation3 + $0x148] sm:$0xff] %v2754
        %2819 = vst [vmem:[#allocation3 + $0x150] sm:$0xff] %v2755
        %2820 = vst [vmem:[#allocation3 + $0x158] sm:$0xff] %v2756
        %2821 = vst [vmem:[#allocation3 + $0x160] sm:$0xff] %v2757
        %2822 = vst [vmem:[#allocation3 + $0x168] sm:$0xff] %v2758
        %2823 = vst [vmem:[#allocation3 + $0x170] sm:$0xff] %v2759
        %2824 = vst [vmem:[#allocation3 + $0x178] sm:$0xff] %v2760
        %2825 = vst [vmem:[#allocation3 + $0x180] sm:$0xff] %v2761
        %2826 = vst [vmem:[#allocation3 + $0x188] sm:$0xff] %v2762
        %2827 = vst [vmem:[#allocation3 + $0x190] sm:$0xff] %v2763
        %2828 = vst [vmem:[#allocation3 + $0x198] sm:$0xff] %v2764
        %2829 = vst [vmem:[#allocation3 + $0x1a0] sm:$0xff] %v2765
        %2830 = vst [vmem:[#allocation3 + $0x1a8] sm:$0xff] %v2766
        %2831 = vst [vmem:[#allocation3 + $0x1b0] sm:$0xff] %v2767
        %2832 = vst [vmem:[#allocation3 + $0x1b8] sm:$0xff] %v2768
        %2833 = vst [vmem:[#allocation3 + $0x1c0] sm:$0xff] %v2769
        %2834 = vst [vmem:[#allocation3 + $0x1c8] sm:$0xff] %v2770
        %2835 = vst [vmem:[#allocation3 + $0x1d0] sm:$0xff] %v2771
        %2836 = vst [vmem:[#allocation3 + $0x1d8] sm:$0xff] %v2772
        %2837 = vst [vmem:[#allocation3 + $0x1e0] sm:$0xff] %v2773
        %2838 = vst [vmem:[#allocation3 + $0x1e8] sm:$0xff] %v2774
        %2839 = vst [vmem:[#allocation3 + $0x1f0] sm:$0xff] %v2775
        %2840 = vst [vmem:[#allocation3 + $0x1f8] sm:$0xff] %v2776
        %v2841 = vld [vmem:[%s7] sm:$0xf]
        %v2842 = vld [vmem:[%s7 + $0x4] sm:$0xf]
        %v2843 = vld [vmem:[#allocation3] sm:$0xff]
        %v2844 = vld [vmem:[#allocation3 + $0x8] sm:$0xff]
        %v2845 = vld [vmem:[#allocation3 + $0x10] sm:$0xff]
        %v2846 = vld [vmem:[#allocation3 + $0x18] sm:$0xff]
        %v2847 = vld [vmem:[#allocation3 + $0x20] sm:$0xff]
        %v2848 = vld [vmem:[#allocation3 + $0x28] sm:$0xff]
        %v2849 = vld [vmem:[#allocation3 + $0x30] sm:$0xff]
        %v2850 = vld [vmem:[#allocation3 + $0x38] sm:$0xff]
        %v2851 = vld [vmem:[#allocation3 + $0x40] sm:$0xff]
        %v2852 = vld [vmem:[#allocation3 + $0x48] sm:$0xff]
        %v2853 = vld [vmem:[#allocation3 + $0x50] sm:$0xff]
        %v2854 = vld [vmem:[#allocation3 + $0x58] sm:$0xff]
        %v2855 = vld [vmem:[#allocation3 + $0x60] sm:$0xff]
        %v2856 = vld [vmem:[#allocation3 + $0x68] sm:$0xff]
        %v2857 = vld [vmem:[#allocation3 + $0x70] sm:$0xff]
        %v2858 = vld [vmem:[#allocation3 + $0x78] sm:$0xff]
        %v2859 = vld [vmem:[#allocation3 + $0x80] sm:$0xff]
        %v2860 = vld [vmem:[#allocation3 + $0x88] sm:$0xff]
        %v2861 = vld [vmem:[#allocation3 + $0x90] sm:$0xff]
        %v2862 = vld [vmem:[#allocation3 + $0x98] sm:$0xff]
        %v2863 = vld [vmem:[#allocation3 + $0xa0] sm:$0xff]
        %v2864 = vld [vmem:[#allocation3 + $0xa8] sm:$0xff]
        %v2865 = vld [vmem:[#allocation3 + $0xb0] sm:$0xff]
        %v2866 = vld [vmem:[#allocation3 + $0xb8] sm:$0xff]
        %v2867 = vld [vmem:[#allocation3 + $0xc0] sm:$0xff]
        %v2868 = vld [vmem:[#allocation3 + $0xc8] sm:$0xff]
        %v2869 = vld [vmem:[#allocation3 + $0xd0] sm:$0xff]
        %v2870 = vld [vmem:[#allocation3 + $0xd8] sm:$0xff]
        %v2871 = vld [vmem:[#allocation3 + $0xe0] sm:$0xff]
        %v2872 = vld [vmem:[#allocation3 + $0xe8] sm:$0xff]
        %v2873 = vld [vmem:[#allocation3 + $0xf0] sm:$0xff]
        %v2874 = vld [vmem:[#allocation3 + $0xf8] sm:$0xff]
        %v2875 = vld [vmem:[#allocation3 + $0x100] sm:$0xff]
        %v2876 = vld [vmem:[#allocation3 + $0x108] sm:$0xff]
        %v2877 = vld [vmem:[#allocation3 + $0x110] sm:$0xff]
        %v2878 = vld [vmem:[#allocation3 + $0x118] sm:$0xff]
        %v2879 = vld [vmem:[#allocation3 + $0x120] sm:$0xff]
        %v2880 = vld [vmem:[#allocation3 + $0x128] sm:$0xff]
        %v2881 = vld [vmem:[#allocation3 + $0x130] sm:$0xff]
        %v2882 = vld [vmem:[#allocation3 + $0x138] sm:$0xff]
        %v2883 = vld [vmem:[#allocation3 + $0x140] sm:$0xff]
        %v2884 = vld [vmem:[#allocation3 + $0x148] sm:$0xff]
        %v2885 = vld [vmem:[#allocation3 + $0x150] sm:$0xff]
        %v2886 = vld [vmem:[#allocation3 + $0x158] sm:$0xff]
        %v2887 = vld [vmem:[#allocation3 + $0x160] sm:$0xff]
        %v2888 = vld [vmem:[#allocation3 + $0x168] sm:$0xff]
        %v2889 = vld [vmem:[#allocation3 + $0x170] sm:$0xff]
        %v2890 = vld [vmem:[#allocation3 + $0x178] sm:$0xff]
        %v2891 = vld [vmem:[#allocation3 + $0x180] sm:$0xff]
        %v2892 = vld [vmem:[#allocation3 + $0x188] sm:$0xff]
        %v2893 = vld [vmem:[#allocation3 + $0x190] sm:$0xff]
        %v2894 = vld [vmem:[#allocation3 + $0x198] sm:$0xff]
        %v2895 = vld [vmem:[#allocation3 + $0x1a0] sm:$0xff]
        %v2896 = vld [vmem:[#allocation3 + $0x1a8] sm:$0xff]
        %v2897 = vld [vmem:[#allocation3 + $0x1b0] sm:$0xff]
        %v2898 = vld [vmem:[#allocation3 + $0x1b8] sm:$0xff]
        %v2899 = vld [vmem:[#allocation3 + $0x1c0] sm:$0xff]
        %v2900 = vld [vmem:[#allocation3 + $0x1c8] sm:$0xff]
        %v2901 = vld [vmem:[#allocation3 + $0x1d0] sm:$0xff]
        %v2902 = vld [vmem:[#allocation3 + $0x1d8] sm:$0xff]
        %v2903 = vld [vmem:[#allocation3 + $0x1e0] sm:$0xff]
        %v2904 = vld [vmem:[#allocation3 + $0x1e8] sm:$0xff]
        %v2905 = vld [vmem:[#allocation3 + $0x1f0] sm:$0xff]
        %v2906 = vld [vmem:[#allocation3 + $0x1f8] sm:$0xff]
        %v2907 = vld [vmem:[%s8] sm:$0xff]
        %v2908 = vld [vmem:[%s8 + $0x8] sm:$0xff]
        %2910 = vset.pattern.permute.xlu0 0
        %2911 = vperm.xlu0 %2910, %v2907
        %v2912 = vpop.permute.xlu0 %2911
        %2915 = vset.pattern.permute.xlu0 0
        %2916 = vperm.xlu0 %2915, %v2908
        %v2917 = vpop.permute.xlu0 %2916
        %v2921 = vunpack.c.l.b16 %v2841
        %v2922 = vunpack.c.l.b16 %v2842
        %v2923 = vpack.c.b16 %v2922, %v2921
        %v2925 = vsel %vm1988, %v2923, 0
        %2927 = vmatprep.subr.bf16.mxu0 %v2844
        %2928 = vmatpush1.bf16.msra.mxu0 %v2843
        %2929 = vmatprep.subr.bf16.mxu0 %v2860
        %2930 = vmatpush1.bf16.msra.mxu0 %v2859
        %2931 = vmatprep.subr.bf16.mxu0 %v2876
        %2932 = vmatpush1.bf16.msra.mxu0 %v2875
        %2933 = vmatprep.subr.bf16.mxu0 %v2892
        %2934 = vmatpush1.bf16.msra.mxu0 %v2891
        %2935 = vmatprep.subr.bf16.mxu0 0
        %2936 = vmatpush1.bf16.msra.mxu0 0
        %2937 = vmatprep.subr.bf16.mxu0 0
        %2938 = vmatpush1.bf16.msra.mxu0 0
        %2939 = vmatprep.subr.bf16.mxu0 0
        %2940 = vmatpush1.bf16.msra.mxu0 0
        %2941 = vmatprep.subr.bf16.mxu0 0
        %2942 = vmatpush1.bf16.msra.mxu0 0
        %2943 = vmatprep.subr.bf16.mxu0 0
        %2944 = vmatpush1.bf16.msra.mxu0 0
        %2945 = vmatprep.subr.bf16.mxu0 0
        %2946 = vmatpush1.bf16.msra.mxu0 0
        %2947 = vmatprep.subr.bf16.mxu0 0
        %2948 = vmatpush1.bf16.msra.mxu0 0
        %2949 = vmatprep.subr.bf16.mxu0 0
        %2950 = vmatpush1.bf16.msra.mxu0 0
        %2951 = vmatprep.subr.bf16.mxu0 0
        %2952 = vmatpush1.bf16.msra.mxu0 0
        %2953 = vmatprep.subr.bf16.mxu0 0
        %2954 = vmatpush1.bf16.msra.mxu0 0
        %2955 = vmatprep.subr.bf16.mxu0 0
        %2956 = vmatpush1.bf16.msra.mxu0 0
        %2957 = vmatprep.subr.bf16.mxu0 0
        %2958 = vmatpush1.bf16.msra.mxu0 0
        %2959 = vmatprep.mubr.bf16.mxu0 0
        %2960 = vmatmul.mubr.bf16.gmra.mrb[0].mxu0 %v2925
        %v2961 = vpop.f32.mrb[0].mxu0
        %v2962 = vadd.f32 %v2912, %v2961
        %v2963 = vpop.f32.mrb[0].mxu0
        %v2964 = vadd.f32 %v2912, %v2963
        %v2965 = vpop.f32.mrb[0].mxu0
        %v2966 = vadd.f32 %v2917, %v2965
        %v2967 = vpop.f32.mrb[0].mxu0
        %v2968 = vadd.f32 %v2917, %v2967
        %2969 = vdwg.mxu0
        %2970 = vmatprep.subr.bf16.mxu0 %v2846
        %2971 = vmatpush1.bf16.msra.mxu0 %v2845
        %2972 = vmatprep.subr.bf16.mxu0 %v2862
        %2973 = vmatpush1.bf16.msra.mxu0 %v2861
        %2974 = vmatprep.subr.bf16.mxu0 %v2878
        %2975 = vmatpush1.bf16.msra.mxu0 %v2877
        %2976 = vmatprep.subr.bf16.mxu0 %v2894
        %2977 = vmatpush1.bf16.msra.mxu0 %v2893
        %2978 = vmatprep.subr.bf16.mxu0 0
        %2979 = vmatpush1.bf16.msra.mxu0 0
        %2980 = vmatprep.subr.bf16.mxu0 0
        %2981 = vmatpush1.bf16.msra.mxu0 0
        %2982 = vmatprep.subr.bf16.mxu0 0
        %2983 = vmatpush1.bf16.msra.mxu0 0
        %2984 = vmatprep.subr.bf16.mxu0 0
        %2985 = vmatpush1.bf16.msra.mxu0 0
        %2986 = vmatprep.subr.bf16.mxu0 0
        %2987 = vmatpush1.bf16.msra.mxu0 0
        %2988 = vmatprep.subr.bf16.mxu0 0
        %2989 = vmatpush1.bf16.msra.mxu0 0
        %2990 = vmatprep.subr.bf16.mxu0 0
        %2991 = vmatpush1.bf16.msra.mxu0 0
        %2992 = vmatprep.subr.bf16.mxu0 0
        %2993 = vmatpush1.bf16.msra.mxu0 0
        %2994 = vmatprep.subr.bf16.mxu0 0
        %2995 = vmatpush1.bf16.msra.mxu0 0
        %2996 = vmatprep.subr.bf16.mxu0 0
        %2997 = vmatpush1.bf16.msra.mxu0 0
        %2998 = vmatprep.subr.bf16.mxu0 0
        %2999 = vmatpush1.bf16.msra.mxu0 0
        %3000 = vmatprep.subr.bf16.mxu0 0
        %3001 = vmatpush1.bf16.msra.mxu0 0
        %3002 = vmatprep.mubr.bf16.mxu0 0
        %3003 = vmatmul.mubr.bf16.gmra.mrb[0].mxu0 %v2925
        %v3004 = vpop.f32.mrb[0].mxu0
        %v3005 = vadd.f32 %v2912, %v3004
        %v3006 = vpop.f32.mrb[0].mxu0
        %v3007 = vadd.f32 %v2912, %v3006
        %v3008 = vpop.f32.mrb[0].mxu0
        %v3009 = vadd.f32 %v2917, %v3008
        %v3010 = vpop.f32.mrb[0].mxu0
        %v3011 = vadd.f32 %v2917, %v3010
        %3012 = vdwg.mxu0
        %3013 = vmatprep.subr.bf16.mxu0 %v2848
        %3014 = vmatpush1.bf16.msra.mxu0 %v2847
        %3015 = vmatprep.subr.bf16.mxu0 %v2864
        %3016 = vmatpush1.bf16.msra.mxu0 %v2863
        %3017 = vmatprep.subr.bf16.mxu0 %v2880
        %3018 = vmatpush1.bf16.msra.mxu0 %v2879
        %3019 = vmatprep.subr.bf16.mxu0 %v2896
        %3020 = vmatpush1.bf16.msra.mxu0 %v2895
        %3021 = vmatprep.subr.bf16.mxu0 0
        %3022 = vmatpush1.bf16.msra.mxu0 0
        %3023 = vmatprep.subr.bf16.mxu0 0
        %3024 = vmatpush1.bf16.msra.mxu0 0
        %3025 = vmatprep.subr.bf16.mxu0 0
        %3026 = vmatpush1.bf16.msra.mxu0 0
        %3027 = vmatprep.subr.bf16.mxu0 0
        %3028 = vmatpush1.bf16.msra.mxu0 0
        %3029 = vmatprep.subr.bf16.mxu0 0
        %3030 = vmatpush1.bf16.msra.mxu0 0
        %3031 = vmatprep.subr.bf16.mxu0 0
        %3032 = vmatpush1.bf16.msra.mxu0 0
        %3033 = vmatprep.subr.bf16.mxu0 0
        %3034 = vmatpush1.bf16.msra.mxu0 0
        %3035 = vmatprep.subr.bf16.mxu0 0
        %3036 = vmatpush1.bf16.msra.mxu0 0
        %3037 = vmatprep.subr.bf16.mxu0 0
        %3038 = vmatpush1.bf16.msra.mxu0 0
        %3039 = vmatprep.subr.bf16.mxu0 0
        %3040 = vmatpush1.bf16.msra.mxu0 0
        %3041 = vmatprep.subr.bf16.mxu0 0
        %3042 = vmatpush1.bf16.msra.mxu0 0
        %3043 = vmatprep.subr.bf16.mxu0 0
        %3044 = vmatpush1.bf16.msra.mxu0 0
        %3045 = vmatprep.mubr.bf16.mxu0 0
        %3046 = vmatmul.mubr.bf16.gmra.mrb[0].mxu0 %v2925
        %v3047 = vpop.f32.mrb[0].mxu0
        %v3048 = vadd.f32 %v2912, %v3047
        %v3049 = vpop.f32.mrb[0].mxu0
        %v3050 = vadd.f32 %v2912, %v3049
        %v3051 = vpop.f32.mrb[0].mxu0
        %v3052 = vadd.f32 %v2917, %v3051
        %v3053 = vpop.f32.mrb[0].mxu0
        %v3054 = vadd.f32 %v2917, %v3053
        %3055 = vdwg.mxu0
        %3056 = vmatprep.subr.bf16.mxu0 %v2850
        %3057 = vmatpush1.bf16.msra.mxu0 %v2849
        %3058 = vmatprep.subr.bf16.mxu0 %v2866
        %3059 = vmatpush1.bf16.msra.mxu0 %v2865
        %3060 = vmatprep.subr.bf16.mxu0 %v2882
        %3061 = vmatpush1.bf16.msra.mxu0 %v2881
        %3062 = vmatprep.subr.bf16.mxu0 %v2898
        %3063 = vmatpush1.bf16.msra.mxu0 %v2897
        %3064 = vmatprep.subr.bf16.mxu0 0
        %3065 = vmatpush1.bf16.msra.mxu0 0
        %3066 = vmatprep.subr.bf16.mxu0 0
        %3067 = vmatpush1.bf16.msra.mxu0 0
        %3068 = vmatprep.subr.bf16.mxu0 0
        %3069 = vmatpush1.bf16.msra.mxu0 0
        %3070 = vmatprep.subr.bf16.mxu0 0
        %3071 = vmatpush1.bf16.msra.mxu0 0
        %3072 = vmatprep.subr.bf16.mxu0 0
        %3073 = vmatpush1.bf16.msra.mxu0 0
        %3074 = vmatprep.subr.bf16.mxu0 0
        %3075 = vmatpush1.bf16.msra.mxu0 0
        %3076 = vmatprep.subr.bf16.mxu0 0
        %3077 = vmatpush1.bf16.msra.mxu0 0
        %3078 = vmatprep.subr.bf16.mxu0 0
        %3079 = vmatpush1.bf16.msra.mxu0 0
        %3080 = vmatprep.subr.bf16.mxu0 0
        %3081 = vmatpush1.bf16.msra.mxu0 0
        %3082 = vmatprep.subr.bf16.mxu0 0
        %3083 = vmatpush1.bf16.msra.mxu0 0
        %3084 = vmatprep.subr.bf16.mxu0 0
        %3085 = vmatpush1.bf16.msra.mxu0 0
        %3086 = vmatprep.subr.bf16.mxu0 0
        %3087 = vmatpush1.bf16.msra.mxu0 0
        %3088 = vmatprep.mubr.bf16.mxu0 0
        %3089 = vmatmul.mubr.bf16.gmra.mrb[0].mxu0 %v2925
        %v3090 = vpop.f32.mrb[0].mxu0
        %v3091 = vadd.f32 %v2912, %v3090
        %v3092 = vpop.f32.mrb[0].mxu0
        %v3093 = vadd.f32 %v2912, %v3092
        %v3094 = vpop.f32.mrb[0].mxu0
        %v3095 = vadd.f32 %v2917, %v3094
        %v3096 = vpop.f32.mrb[0].mxu0
        %v3097 = vadd.f32 %v2917, %v3096
        %3098 = vdwg.mxu0
        %3099 = vmatprep.subr.bf16.mxu0 %v2852
        %3100 = vmatpush1.bf16.msra.mxu0 %v2851
        %3101 = vmatprep.subr.bf16.mxu0 %v2868
        %3102 = vmatpush1.bf16.msra.mxu0 %v2867
        %3103 = vmatprep.subr.bf16.mxu0 %v2884
        %3104 = vmatpush1.bf16.msra.mxu0 %v2883
        %3105 = vmatprep.subr.bf16.mxu0 %v2900
        %3106 = vmatpush1.bf16.msra.mxu0 %v2899
        %3107 = vmatprep.subr.bf16.mxu0 0
        %3108 = vmatpush1.bf16.msra.mxu0 0
        %3109 = vmatprep.subr.bf16.mxu0 0
        %3110 = vmatpush1.bf16.msra.mxu0 0
        %3111 = vmatprep.subr.bf16.mxu0 0
        %3112 = vmatpush1.bf16.msra.mxu0 0
        %3113 = vmatprep.subr.bf16.mxu0 0
        %3114 = vmatpush1.bf16.msra.mxu0 0
        %3115 = vmatprep.subr.bf16.mxu0 0
        %3116 = vmatpush1.bf16.msra.mxu0 0
        %3117 = vmatprep.subr.bf16.mxu0 0
        %3118 = vmatpush1.bf16.msra.mxu0 0
        %3119 = vmatprep.subr.bf16.mxu0 0
        %3120 = vmatpush1.bf16.msra.mxu0 0
        %3121 = vmatprep.subr.bf16.mxu0 0
        %3122 = vmatpush1.bf16.msra.mxu0 0
        %3123 = vmatprep.subr.bf16.mxu0 0
        %3124 = vmatpush1.bf16.msra.mxu0 0
        %3125 = vmatprep.subr.bf16.mxu0 0
        %3126 = vmatpush1.bf16.msra.mxu0 0
        %3127 = vmatprep.subr.bf16.mxu0 0
        %3128 = vmatpush1.bf16.msra.mxu0 0
        %3129 = vmatprep.subr.bf16.mxu0 0
        %3130 = vmatpush1.bf16.msra.mxu0 0
        %3131 = vmatprep.mubr.bf16.mxu0 0
        %3132 = vmatmul.mubr.bf16.gmra.mrb[0].mxu0 %v2925
        %v3133 = vpop.f32.mrb[0].mxu0
        %v3134 = vadd.f32 %v2912, %v3133
        %v3135 = vpop.f32.mrb[0].mxu0
        %v3136 = vadd.f32 %v2912, %v3135
        %v3137 = vpop.f32.mrb[0].mxu0
        %v3138 = vadd.f32 %v2917, %v3137
        %v3139 = vpop.f32.mrb[0].mxu0
        %v3140 = vadd.f32 %v2917, %v3139
        %3141 = vdwg.mxu0
        %3142 = vmatprep.subr.bf16.mxu0 %v2854
        %3143 = vmatpush1.bf16.msra.mxu0 %v2853
        %3144 = vmatprep.subr.bf16.mxu0 %v2870
        %3145 = vmatpush1.bf16.msra.mxu0 %v2869
        %3146 = vmatprep.subr.bf16.mxu0 %v2886
        %3147 = vmatpush1.bf16.msra.mxu0 %v2885
        %3148 = vmatprep.subr.bf16.mxu0 %v2902
        %3149 = vmatpush1.bf16.msra.mxu0 %v2901
        %3150 = vmatprep.subr.bf16.mxu0 0
        %3151 = vmatpush1.bf16.msra.mxu0 0
        %3152 = vmatprep.subr.bf16.mxu0 0
        %3153 = vmatpush1.bf16.msra.mxu0 0
        %3154 = vmatprep.subr.bf16.mxu0 0
        %3155 = vmatpush1.bf16.msra.mxu0 0
        %3156 = vmatprep.subr.bf16.mxu0 0
        %3157 = vmatpush1.bf16.msra.mxu0 0
        %3158 = vmatprep.subr.bf16.mxu0 0
        %3159 = vmatpush1.bf16.msra.mxu0 0
        %3160 = vmatprep.subr.bf16.mxu0 0
        %3161 = vmatpush1.bf16.msra.mxu0 0
        %3162 = vmatprep.subr.bf16.mxu0 0
        %3163 = vmatpush1.bf16.msra.mxu0 0
        %3164 = vmatprep.subr.bf16.mxu0 0
        %3165 = vmatpush1.bf16.msra.mxu0 0
        %3166 = vmatprep.subr.bf16.mxu0 0
        %3167 = vmatpush1.bf16.msra.mxu0 0
        %3168 = vmatprep.subr.bf16.mxu0 0
        %3169 = vmatpush1.bf16.msra.mxu0 0
        %3170 = vmatprep.subr.bf16.mxu0 0
        %3171 = vmatpush1.bf16.msra.mxu0 0
        %3172 = vmatprep.subr.bf16.mxu0 0
        %3173 = vmatpush1.bf16.msra.mxu0 0
        %3174 = vmatprep.mubr.bf16.mxu0 0
        %3175 = vmatmul.mubr.bf16.gmra.mrb[0].mxu0 %v2925
        %v3176 = vpop.f32.mrb[0].mxu0
        %v3177 = vadd.f32 %v2912, %v3176
        %v3178 = vpop.f32.mrb[0].mxu0
        %v3179 = vadd.f32 %v2912, %v3178
        %v3180 = vpop.f32.mrb[0].mxu0
        %v3181 = vadd.f32 %v2917, %v3180
        %v3182 = vpop.f32.mrb[0].mxu0
        %v3183 = vadd.f32 %v2917, %v3182
        %3184 = vdwg.mxu0
        %3185 = vmatprep.subr.bf16.mxu0 %v2856
        %3186 = vmatpush1.bf16.msra.mxu0 %v2855
        %3187 = vmatprep.subr.bf16.mxu0 %v2872
        %3188 = vmatpush1.bf16.msra.mxu0 %v2871
        %3189 = vmatprep.subr.bf16.mxu0 %v2888
        %3190 = vmatpush1.bf16.msra.mxu0 %v2887
        %3191 = vmatprep.subr.bf16.mxu0 %v2904
        %3192 = vmatpush1.bf16.msra.mxu0 %v2903
        %3193 = vmatprep.subr.bf16.mxu0 0
        %3194 = vmatpush1.bf16.msra.mxu0 0
        %3195 = vmatprep.subr.bf16.mxu0 0
        %3196 = vmatpush1.bf16.msra.mxu0 0
        %3197 = vmatprep.subr.bf16.mxu0 0
        %3198 = vmatpush1.bf16.msra.mxu0 0
        %3199 = vmatprep.subr.bf16.mxu0 0
        %3200 = vmatpush1.bf16.msra.mxu0 0
        %3201 = vmatprep.subr.bf16.mxu0 0
        %3202 = vmatpush1.bf16.msra.mxu0 0
        %3203 = vmatprep.subr.bf16.mxu0 0
        %3204 = vmatpush1.bf16.msra.mxu0 0
        %3205 = vmatprep.subr.bf16.mxu0 0
        %3206 = vmatpush1.bf16.msra.mxu0 0
        %3207 = vmatprep.subr.bf16.mxu0 0
        %3208 = vmatpush1.bf16.msra.mxu0 0
        %3209 = vmatprep.subr.bf16.mxu0 0
        %3210 = vmatpush1.bf16.msra.mxu0 0
        %3211 = vmatprep.subr.bf16.mxu0 0
        %3212 = vmatpush1.bf16.msra.mxu0 0
        %3213 = vmatprep.subr.bf16.mxu0 0
        %3214 = vmatpush1.bf16.msra.mxu0 0
        %3215 = vmatprep.subr.bf16.mxu0 0
        %3216 = vmatpush1.bf16.msra.mxu0 0
        %3217 = vmatprep.mubr.bf16.mxu0 0
        %3218 = vmatmul.mubr.bf16.gmra.mrb[0].mxu0 %v2925
        %v3219 = vpop.f32.mrb[0].mxu0
        %v3220 = vadd.f32 %v2912, %v3219
        %v3221 = vpop.f32.mrb[0].mxu0
        %v3222 = vadd.f32 %v2912, %v3221
        %v3223 = vpop.f32.mrb[0].mxu0
        %v3224 = vadd.f32 %v2917, %v3223
        %v3225 = vpop.f32.mrb[0].mxu0
        %v3226 = vadd.f32 %v2917, %v3225
        %3227 = vdwg.mxu0
        %3228 = vmatprep.subr.bf16.mxu0 %v2858
        %3229 = vmatpush1.bf16.msra.mxu0 %v2857
        %3230 = vmatprep.subr.bf16.mxu0 %v2874
        %3231 = vmatpush1.bf16.msra.mxu0 %v2873
        %3232 = vmatprep.subr.bf16.mxu0 %v2890
        %3233 = vmatpush1.bf16.msra.mxu0 %v2889
        %3234 = vmatprep.subr.bf16.mxu0 %v2906
        %3235 = vmatpush1.bf16.msra.mxu0 %v2905
        %3236 = vmatprep.subr.bf16.mxu0 0
        %3237 = vmatpush1.bf16.msra.mxu0 0
        %3238 = vmatprep.subr.bf16.mxu0 0
        %3239 = vmatpush1.bf16.msra.mxu0 0
        %3240 = vmatprep.subr.bf16.mxu0 0
        %3241 = vmatpush1.bf16.msra.mxu0 0
        %3242 = vmatprep.subr.bf16.mxu0 0
        %3243 = vmatpush1.bf16.msra.mxu0 0
        %3244 = vmatprep.subr.bf16.mxu0 0
        %3245 = vmatpush1.bf16.msra.mxu0 0
        %3246 = vmatprep.subr.bf16.mxu0 0
        %3247 = vmatpush1.bf16.msra.mxu0 0
        %3248 = vmatprep.subr.bf16.mxu0 0
        %3249 = vmatpush1.bf16.msra.mxu0 0
        %3250 = vmatprep.subr.bf16.mxu0 0
        %3251 = vmatpush1.bf16.msra.mxu0 0
        %3252 = vmatprep.subr.bf16.mxu0 0
        %3253 = vmatpush1.bf16.msra.mxu0 0
        %3254 = vmatprep.subr.bf16.mxu0 0
        %3255 = vmatpush1.bf16.msra.mxu0 0
        %3256 = vmatprep.subr.bf16.mxu0 0
        %3257 = vmatpush1.bf16.msra.mxu0 0
        %3258 = vmatprep.subr.bf16.mxu0 0
        %3259 = vmatpush1.bf16.msra.mxu0 0
        %3260 = vmatprep.mubr.bf16.mxu0 0
        %3261 = vmatmul.mubr.bf16.gmra.mrb[0].mxu0 %v2925
        %v3262 = vpop.f32.mrb[0].mxu0
        %v3263 = vadd.f32 %v2912, %v3262
        %v3264 = vpop.f32.mrb[0].mxu0
        %v3265 = vadd.f32 %v2912, %v3264
        %v3266 = vpop.f32.mrb[0].mxu0
        %v3267 = vadd.f32 %v2917, %v3266
        %v3268 = vpop.f32.mrb[0].mxu0
        %v3269 = vadd.f32 %v2917, %v3268
        %3270 = vdwg.mxu0
        %v3271 = vmax.f32 %v2962, %v3005
        %v3272 = vmax.f32 %v2964, %v3007
        %v3273 = vmax.f32 %v2966, %v3009
        %v3274 = vmax.f32 %v2968, %v3011
        %v3275 = vmax.f32 %v3271, %v3048
        %v3276 = vmax.f32 %v3272, %v3050
        %v3277 = vmax.f32 %v3273, %v3052
        %v3278 = vmax.f32 %v3274, %v3054
        %v3279 = vmax.f32 %v3275, %v3091
        %v3280 = vmax.f32 %v3276, %v3093
        %v3281 = vmax.f32 %v3277, %v3095
        %v3282 = vmax.f32 %v3278, %v3097
        %v3283 = vmax.f32 %v3279, %v3134
        %v3284 = vmax.f32 %v3280, %v3136
        %v3285 = vmax.f32 %v3281, %v3138
        %v3286 = vmax.f32 %v3282, %v3140
        %v3287 = vmax.f32 %v3283, %v3177
        %v3288 = vmax.f32 %v3284, %v3179
        %v3289 = vmax.f32 %v3285, %v3181
        %v3290 = vmax.f32 %v3286, %v3183
        %v3291 = vmax.f32 %v3287, %v3220
        %v3292 = vmax.f32 %v3288, %v3222
        %v3293 = vmax.f32 %v3289, %v3224
        %v3294 = vmax.f32 %v3290, %v3226
        %v3295 = vmax.f32 %v3291, %v3263
        %v3296 = vmax.f32 %v3292, %v3265
        %v3297 = vmax.f32 %v3293, %v3267
        %v3298 = vmax.f32 %v3294, %v3269
        %v3299 = vadd.f32 %v3295, %v417
        %v3300 = vadd.f32 %v3296, %v418
        %v3301 = vadd.f32 %v3297, %v419
        %v3302 = vadd.f32 %v3298, %v420
        %3303 = vst [vmem:[%s412] sm:$0xff] %v3299
        %3304 = vst [vmem:[%s412 + $0x8] sm:$0xff] %v3300
        %3305 = vst [vmem:[%s412 + $0x10] sm:$0xff] %v3301
        %3306 = vst [vmem:[%s412 + $0x18] sm:$0xff] %v3302
        %s3307 = sand.u32 %s254, 1
        %s3308 = scalar_lea.sflag [#allocation6], %s3307
        %s3309 = sand.u32 %s254, 1
        %s3310 = smul.addr %s3309, 32
        %s3311 = scalar_lea.vmem [#allocation9], %s3310
        // Predicated region
        $region65: #{tpu_custom_call.1} parent=55 // pred_check
          %p3312 = pneg %p264
        $region66: #{tpu_custom_call.1} parent=55 // pred_check_branch
          %3314 = sbr.rel (%p3312) target = $region68
        $region67: #{tpu_custom_call.1} parent=55 // pred_region
          %s3315 = smul.u32 2, %s34
          %s3317 = ssub.s32 512, 512
          %3318 = vsyncadd %s3308, %s3317
          %s3319 = smul.addr %s33, 16
          %s3320 = sadd.s32 %s3315, %s3319
          %s3321 = smul.addr %s3320, 128
          %s3322 = scalar_lea.hbm %s9, %s3321
          %s3323 = sshll.u32 %s3311, 4
          %s3324 = int_to_ptr.vmem [resolvable:$true] %s3323
          %3329 = dma.vmem_to_hbm [thread:$0]  %s3324, 512, %s3322, %s3308, 256, 1024, 16
        $region68: #{tpu_custom_call.1} parent=55 // pred_fallthru
          _
      $region56: #{tpu_custom_call.1} parent=5 // pred_fallthru
        _
      %p3330 = scmp.le.s32.totalorder 2, %s24
      // Predicated region
      $region69: #{tpu_custom_call.1} parent=5 // pred_check
        %p3331 = pneg %p3330
      $region70: #{tpu_custom_call.1} parent=5 // pred_check_branch
        %3333 = sbr.rel (%p3331) target = $region72
      $region71: #{tpu_custom_call.1} parent=5 // pred_region
        %s3334 = ssub.s32 %s24, 2
        // Predicated region
        $region73: #{tpu_custom_call.1} parent=71 // pred_check
          %p3335 = pneg %p270
        $region74: #{tpu_custom_call.1} parent=71 // pred_check_branch
          %3337 = sbr.rel (%p3335) target = $region76
        $region75: #{tpu_custom_call.1} parent=71 // pred_region
          %s3338 = sand.u32 %s255, 1
          %s3339 = scalar_lea.sflag [#allocation6], %s3338
          %s3340 = sand.u32 %s255, 1
          %s3341 = smul.addr %s3340, 32
          %s3342 = scalar_lea.vmem [#allocation9], %s3341
          %3343 = dma.done %s3339, 512
        $region76: #{tpu_custom_call.1} parent=71 // pred_fallthru
          _
      $region72: #{tpu_custom_call.1} parent=5 // pred_fallthru
        _
    $region6: #{tpu_custom_call.1} parent=1 // loop_footer
      %s28 = sadd.s32 1, %s24
    $region7: #{tpu_custom_call.1} parent=1 // loop_footer_branch
      %23 = sbr.rel target = $region3
    $region8: #{tpu_custom_call.1} parent=1 // loop_exit
      _
    %3344 = vsyncpa [#allocation5], 1
    %s3345 = scalar_lea.sflag [#allocation5], 1
    %3346 = vsyncpa %s3345, 1
    %3347 = vsyncpa [#allocation8], 1
    %s3348 = scalar_lea.sflag [#allocation8], 1
    %3349 = vsyncpa %s3348, 1
    %3350 = vsyncpa [#allocation6], 1
    %s3351 = scalar_lea.sflag [#allocation6], 1
    %3352 = vsyncpa %s3351, 1

</llo_original>
